<compile_context>
chip_gen: v7x
topology: tpu7x:2x2x1
jax: 0.10.0
libtpu: 0.0.40
codegen_flags: <defaults>
</compile_context>

<pallas_src>
import functools

import jax
import jax.numpy as jnp
from jax.experimental import pallas as pl
from jax.experimental.pallas import tpu as pltpu


BACKBONE_CH = [16, 24, 32, 48]   # stem, stage2, stage3, stage4
FPN_CH = 32
NUM_CLASSES = 4
REG_MAX = 7
HEAD_OUT = NUM_CLASSES + 4 * (REG_MAX + 1)   # 36


# ----------------------------------------------------------------------------
# Pallas kernels
# ----------------------------------------------------------------------------
def _matmul_bias_act_kernel(x_ref, w_ref, b_ref, o_ref, *, apply_relu):
    # x: (tile_m, K) bf16   w: (K, N) bf16   b: (1, N) f32   o: (tile_m, N)
    acc = jnp.dot(x_ref[...], w_ref[...], preferred_element_type=jnp.float32)
    acc = acc + b_ref[...]
    if apply_relu:
        acc = jnp.maximum(acc, 0.0)
    o_ref[...] = acc.astype(o_ref.dtype)


def _fpn_fused_kernel(c2_ref, c3_ref, c4_ref,
                      w2_ref, b2_ref, w3_ref, b3_ref, w4_ref, b4_ref,
                      u43_ref, u32_ref,
                      p2_ref, p3_ref, p4_ref):
    # Lateral 1x1 convs (matmuls) + top-down fusion.  Nearest 2x upsample is a
    # 0/1 selection matmul (u43 / u32), so the whole top-down path stays in
    # VMEM -- no pallas_add calls, no jnp.repeat HBM slabs.
    p4 = jnp.dot(c4_ref[...], w4_ref[...],
                 preferred_element_type=jnp.float32) + b4_ref[...]
    p3 = (jnp.dot(c3_ref[...], w3_ref[...],
                  preferred_element_type=jnp.float32) + b3_ref[...]
          + jnp.dot(u43_ref[...], p4, preferred_element_type=jnp.float32))
    p2 = (jnp.dot(c2_ref[...], w2_ref[...],
                  preferred_element_type=jnp.float32) + b2_ref[...]
          + jnp.dot(u32_ref[...], p3, preferred_element_type=jnp.float32))
    p2_ref[...] = p2.astype(p2_ref.dtype)
    p3_ref[...] = p3.astype(p3_ref.dtype)
    p4_ref[...] = p4.astype(p4_ref.dtype)


def _head_fused_kernel(cols_ref, wc_ref, bc_ref, wp_ref, bp_ref, o_ref):
    # Shared head over all levels at once: (3x3 conv + ReLU) -> 1x1 pred.
    # The 3x3 intermediate `h` never touches HBM.
    h = jnp.dot(cols_ref[...], wc_ref[...], preferred_element_type=jnp.float32)
    h = jnp.maximum(h + bc_ref[...], 0.0)
    out = jnp.dot(h.astype(wp_ref.dtype), wp_ref[...],
                  preferred_element_type=jnp.float32)
    o_ref[...] = (out + bp_ref[...]).astype(o_ref.dtype)


# ----------------------------------------------------------------------------
# Pallas wrappers
# ----------------------------------------------------------------------------
def pallas_matmul_bias(x, w, b, *, relu, out_dtype=jnp.float32):
    """(M,K) @ (K,N) + b with optional ReLU.  Single VMEM-resident block for
    small M; tiled over M (grid, parallel) only when M is large."""
    M, K = x.shape
    Kw, N = w.shape
    assert K == Kw
    b2 = b.reshape(1, N).astype(jnp.float32)
    kernel = functools.partial(_matmul_bias_act_kernel, apply_relu=relu)

    if M > 1024 and M % 512 == 0:          # safety valve for larger inputs
        tile_m = 512
        return pl.pallas_call(
            kernel,
            out_shape=jax.ShapeDtypeStruct((M, N), out_dtype),
            grid=(M // tile_m,),
            in_specs=[pl.BlockSpec((tile_m, K), lambda i: (i, 0)),
                      pl.BlockSpec((K, N), lambda i: (0, 0)),
                      pl.BlockSpec((1, N), lambda i: (0, 0))],
            out_specs=pl.BlockSpec((tile_m, N), lambda i: (i, 0)),
            compiler_params=pltpu.CompilerParams(
                dimension_semantics=("parallel",)),
        )(x, w, b2)

    # Small M: one grid step, whole operands resident in VMEM.
    return pl.pallas_call(
        kernel,
        out_shape=jax.ShapeDtypeStruct((M, N), out_dtype),
    )(x, w, b2)


# ----------------------------------------------------------------------------
# JAX glue: im2col, weight reshaping, upsample selection matrices
# ----------------------------------------------------------------------------
def im2col(x_nhwc, ksize, stride, pad):
    N, H, W, C = x_nhwc.shape
    xp = jnp.pad(x_nhwc, ((0, 0), (pad, pad), (pad, pad), (0, 0)))
    Ho = (H + 2 * pad - ksize) // stride + 1
    Wo = (W + 2 * pad - ksize) // stride + 1
    cols = []
    for kh in range(ksize):
        for kw in range(ksize):
            patch = xp[:, kh:kh + stride * Ho:stride,
                       kw:kw + stride * Wo:stride, :]
            cols.append(patch)
    cols = jnp.concatenate(cols, axis=-1)            # (N, Ho, Wo, k*k*C)
    return cols.reshape(N * Ho * Wo, ksize * ksize * C), (N, Ho, Wo)


def conv_w_mat(w_oihw, dtype=jnp.bfloat16):
    # OIHW -> (kh, kw, Cin, Cout) -> (kh*kw*Cin, Cout), matching im2col order.
    Cout, Cin, kh, kw = w_oihw.shape
    return jnp.transpose(w_oihw, (2, 3, 1, 0)).reshape(kh * kw * Cin,
                                                       Cout).astype(dtype)


def conv2d(x_nhwc, w_oihw, b, *, stride, pad, relu, out_dtype=jnp.bfloat16):
    Cout, Cin, kh, kw = w_oihw.shape
    cols, (N, Ho, Wo) = im2col(x_nhwc.astype(jnp.bfloat16), kh, stride, pad)
    y = pallas_matmul_bias(cols, conv_w_mat(w_oihw), b,
                           relu=relu, out_dtype=out_dtype)
    return y.reshape(N, Ho, Wo, Cout)


def _upsample2x_matrix(N, H, W, dtype=jnp.float32):
    # 0/1 matrix mapping flattened (N,H,W) rows -> flattened (N,2H,2W) rows
    # (nearest-neighbour 2x).  Used as an in-kernel matmul.
    Ho, Wo = 2 * H, 2 * W
    n = jnp.arange(N)[:, None, None]
    ho = jnp.arange(Ho)[None, :, None]
    wo = jnp.arange(Wo)[None, None, :]
    src = (n * (H * W) + (ho // 2) * W + (wo // 2)).reshape(-1)   # (N*Ho*Wo,)
    return (src[:, None] == jnp.arange(N * H * W)[None, :]).astype(dtype)


# ----------------------------------------------------------------------------
# Model definition (synthetic, deterministic parameters)
# ----------------------------------------------------------------------------
def init_params(key):
    def conv_p(key, cout, cin, k):
        kw_, kb_ = jax.random.split(key)
        w = 0.05 * jax.random.normal(kw_, (cout, cin, k, k), jnp.float32)
        b = 0.01 * jax.random.normal(kb_, (cout,), jnp.float32)
        return {"w": w, "b": b}

    keys = jax.random.split(key, 12)
    p = {}
    p["stem"] = conv_p(keys[0], BACKBONE_CH[0], 3, 3)
    p["stage2"] = conv_p(keys[1], BACKBONE_CH[1], BACKBONE_CH[0], 3)
    p["stage3"] = conv_p(keys[2], BACKBONE_CH[2], BACKBONE_CH[1], 3)
    p["stage4"] = conv_p(keys[3], BACKBONE_CH[3], BACKBONE_CH[2], 3)
    p["lat2"] = conv_p(keys[4], FPN_CH, BACKBONE_CH[1], 1)
    p["lat3"] = conv_p(keys[5], FPN_CH, BACKBONE_CH[2], 1)
    p["lat4"] = conv_p(keys[6], FPN_CH, BACKBONE_CH[3], 1)
    p["head_conv"] = conv_p(keys[7], FPN_CH, FPN_CH, 3)
    p["head_pred"] = conv_p(keys[8], HEAD_OUT, FPN_CH, 1)
    return p


def backbone(params, x_nhwc):
    s1 = conv2d(x_nhwc, params["stem"]["w"], params["stem"]["b"],
                stride=2, pad=1, relu=True)
    s2 = conv2d(s1, params["stage2"]["w"], params["stage2"]["b"],
                stride=2, pad=1, relu=True)
    s3 = conv2d(s2, params["stage3"]["w"], params["stage3"]["b"],
                stride=2, pad=1, relu=True)
    s4 = conv2d(s3, params["stage4"]["w"], params["stage4"]["b"],
                stride=2, pad=1, relu=True)
    return (s2, s3, s4)


def fpn(params, feats):
    """Lateral 1x1 convs + top-down (upsample + add), as ONE fused kernel."""
    c2, c3, c4 = feats
    N, H2, W2, _ = c2.shape
    _, H3, W3, _ = c3.shape
    _, H4, W4, _ = c4.shape
    assert H3 == 2 * H4 and W3 == 2 * W4 and H2 == 2 * H3 and W2 == 2 * W3

    u43 = _upsample2x_matrix(N, H4, W4)          # (N*H3*W3, N*H4*W4)
    u32 = _upsample2x_matrix(N, H3, W3)          # (N*H2*W2, N*H3*W3)

    def lat(name):
        w = conv_w_mat(params[name]["w"])                       # (Cin, FPN_CH)
        b = params[name]["b"].reshape(1, FPN_CH).astype(jnp.float32)
        return w, b

    w2, b2 = lat("lat2")
    w3, b3 = lat("lat3")
    w4, b4 = lat("lat4")

    p2, p3, p4 = pl.pallas_call(
        _fpn_fused_kernel,
        out_shape=(jax.ShapeDtypeStruct((N * H2 * W2, FPN_CH), jnp.bfloat16),
                   jax.ShapeDtypeStruct((N * H3 * W3, FPN_CH), jnp.bfloat16),
                   jax.ShapeDtypeStruct((N * H4 * W4, FPN_CH), jnp.bfloat16)),
    )(c2.reshape(-1, c2.shape[-1]),
      c3.reshape(-1, c3.shape[-1]),
      c4.reshape(-1, c4.shape[-1]),
      w2, b2, w3, b3, w4, b4, u43, u32)

    return (p2.reshape(N, H2, W2, FPN_CH),
            p3.reshape(N, H3, W3, FPN_CH),
            p4.reshape(N, H4, W4, FPN_CH))


def head_all_levels(params, feats):
    """Shared head applied to every FPN level, batched into ONE fused kernel."""
    cols_list, shapes = [], []
    for f in feats:
        cols, shp = im2col(f, 3, 1, 1)       # bf16 cols, (N*H*W, 9*FPN_CH)
        cols_list.append(cols)
        shapes.append(shp)
    cols = jnp.concatenate(cols_list, axis=0)

    wc = conv_w_mat(params["head_conv"]["w"])                     # (288, 32)
    bc = params["head_conv"]["b"].reshape(1, FPN_CH).astype(jnp.float32)
    wp = conv_w_mat(params["head_pred"]["w"])                     # (32, 36)
    bp = params["head_pred"]["b"].reshape(1, HEAD_OUT).astype(jnp.float32)

    M = cols.shape[0]
    out = pl.pallas_call(
        _head_fused_kernel,
        out_shape=jax.ShapeDtypeStruct((M, HEAD_OUT), jnp.float32),
    )(cols, wc, bc, wp, bp)

    preds, off = [], 0
    for (N, Ho, Wo) in shapes:
        m = N * Ho * Wo
        preds.append(out[off:off + m].reshape(N, Ho, Wo, HEAD_OUT))
        off += m
    return tuple(preds)


def one_stage_forward(params, x_nchw):
    """Equivalent of OneStage.forward: backbone -> fpn -> head on each level."""
    x = jnp.transpose(x_nchw, (0, 2, 3, 1))        # NCHW -> NHWC (internal)
    feats = backbone(params, x)
    feats = fpn(params, feats)
    preds = head_all_levels(params, feats)
    # back to NCHW like PyTorch
    return tuple(jnp.transpose(p, (0, 3, 1, 2)) for p in preds)

# TODO(synk): head.post_process / head.loss (inference / forward_train paths)
# are dataset/decoder logic, not part of forward(); not implemented here.


if __name__ == "__main__":
    key = jax.random.PRNGKey(0)
    pkey, xkey = jax.random.split(key)
    params = init_params(pkey)

    # PyTorch-style NCHW input: batch=2, 3 channels, 32x32 image.
    x = jax.random.normal(xkey, (2, 3, 32, 32), jnp.float32)

    fwd = jax.jit(one_stage_forward)
    outs = jax.block_until_ready(fwd(params, x))

    expected = [(2, HEAD_OUT, 8, 8), (2, HEAD_OUT, 4, 4), (2, HEAD_OUT, 2, 2)]
    assert isinstance(outs, tuple) and len(outs) == 3
    for o, shp in zip(outs, expected):
        assert o.shape == shp, (o.shape, shp)
        assert jnp.all(jnp.isfinite(o))
    print("KERNEL_OK")
</pallas_src>

<mosaic_0001>
module attributes {stable_mosaic.version = 11 : i64} {
  func.func @_matmul_bias_act_kernel(%arg0: memref<512x27xbf16, #tpu.memory_space<vmem>>, %arg1: memref<27x16xbf16, #tpu.memory_space<vmem>>, %arg2: memref<1x16xf32, #tpu.memory_space<vmem>>, %arg3: memref<512x16xbf16, #tpu.memory_space<vmem>>) attributes {dimension_semantics = [], scalar_prefetch = 0 : i64, scratch_operands = 0 : i64, tpu.core_type = #tpu.core_type<tc>} {
    %c0 = arith.constant 0 : index
    %c0_0 = arith.constant 0 : index
    %0 = vector.load %arg0[%c0, %c0_0] : memref<512x27xbf16, #tpu.memory_space<vmem>>, vector<512x27xbf16>
    %c0_1 = arith.constant 0 : index
    %c0_2 = arith.constant 0 : index
    %1 = vector.load %arg1[%c0_1, %c0_2] : memref<27x16xbf16, #tpu.memory_space<vmem>>, vector<27x16xbf16>
    %cst = arith.constant dense<0.000000e+00> : vector<512x16xf32>
    %2 = tpu.matmul %0, %1, %cst {dimension_numbers = #tpu.dot_dimension_numbers<[1], [0], [0], [1], [0, 0, 1, 1], [], []>} : vector<512x27xbf16>, vector<27x16xbf16>, vector<512x16xf32> -> vector<512x16xf32>
    %c0_3 = arith.constant 0 : index
    %c0_4 = arith.constant 0 : index
    %3 = vector.load %arg2[%c0_3, %c0_4] : memref<1x16xf32, #tpu.memory_space<vmem>>, vector<1x16xf32>
    %4 = vector.broadcast %3 : vector<1x16xf32> to vector<512x16xf32>
    %5 = arith.addf %2, %4 : vector<512x16xf32>
    %cst_5 = arith.constant 0.000000e+00 : f32
    %6 = vector.broadcast %cst_5 : f32 to vector<512x16xf32>
    %7 = arith.maximumf %5, %6 : vector<512x16xf32>
    %8 = arith.truncf %7 : vector<512x16xf32> to vector<512x16xbf16>
    %c0_6 = arith.constant 0 : index
    %c0_7 = arith.constant 0 : index
    %9 = vector.load %arg3[%c0_6, %c0_7] : memref<512x16xbf16, #tpu.memory_space<vmem>>, vector<512x16xbf16>
    tpu.vector_store %arg3[%c0_6, %c0_7], %8 {strides = array<i32>} : memref<512x16xbf16, #tpu.memory_space<vmem>>, vector<512x16xbf16>,
    return
  }
}

module attributes {stable_mosaic.version = 11 : i64} {
  func.func @_matmul_bias_act_kernel(%arg0: memref<128x144xbf16, #tpu.memory_space<vmem>>, %arg1: memref<144x24xbf16, #tpu.memory_space<vmem>>, %arg2: memref<1x24xf32, #tpu.memory_space<vmem>>, %arg3: memref<128x24xbf16, #tpu.memory_space<vmem>>) attributes {dimension_semantics = [], scalar_prefetch = 0 : i64, scratch_operands = 0 : i64, tpu.core_type = #tpu.core_type<tc>} {
    %c0 = arith.constant 0 : index
    %c0_0 = arith.constant 0 : index
    %0 = vector.load %arg0[%c0, %c0_0] : memref<128x144xbf16, #tpu.memory_space<vmem>>, vector<128x144xbf16>
    %c0_1 = arith.constant 0 : index
    %c0_2 = arith.constant 0 : index
    %1 = vector.load %arg1[%c0_1, %c0_2] : memref<144x24xbf16, #tpu.memory_space<vmem>>, vector<144x24xbf16>
    %cst = arith.constant dense<0.000000e+00> : vector<128x24xf32>
    %2 = tpu.matmul %0, %1, %cst {dimension_numbers = #tpu.dot_dimension_numbers<[1], [0], [0], [1], [0, 0, 1, 1], [], []>} : vector<128x144xbf16>, vector<144x24xbf16>, vector<128x24xf32> -> vector<128x24xf32>
    %c0_3 = arith.constant 0 : index
    %c0_4 = arith.constant 0 : index
    %3 = vector.load %arg2[%c0_3, %c0_4] : memref<1x24xf32, #tpu.memory_space<vmem>>, vector<1x24xf32>
    %4 = vector.broadcast %3 : vector<1x24xf32> to vector<128x24xf32>
    %5 = arith.addf %2, %4 : vector<128x24xf32>
    %cst_5 = arith.constant 0.000000e+00 : f32
    %6 = vector.broadcast %cst_5 : f32 to vector<128x24xf32>
    %7 = arith.maximumf %5, %6 : vector<128x24xf32>
    %8 = arith.truncf %7 : vector<128x24xf32> to vector<128x24xbf16>
    %c0_6 = arith.constant 0 : index
    %c0_7 = arith.constant 0 : index
    %9 = vector.load %arg3[%c0_6, %c0_7] : memref<128x24xbf16, #tpu.memory_space<vmem>>, vector<128x24xbf16>
    tpu.vector_store %arg3[%c0_6, %c0_7], %8 {strides = array<i32>} : memref<128x24xbf16, #tpu.memory_space<vmem>>, vector<128x24xbf16>,
    return
  }
}

module attributes {stable_mosaic.version = 11 : i64} {
  func.func @_matmul_bias_act_kernel(%arg0: memref<32x216xbf16, #tpu.memory_space<vmem>>, %arg1: memref<216x32xbf16, #tpu.memory_space<vmem>>, %arg2: memref<1x32xf32, #tpu.memory_space<vmem>>, %arg3: memref<32x32xbf16, #tpu.memory_space<vmem>>) attributes {dimension_semantics = [], scalar_prefetch = 0 : i64, scratch_operands = 0 : i64, tpu.core_type = #tpu.core_type<tc>} {
    %c0 = arith.constant 0 : index
    %c0_0 = arith.constant 0 : index
    %0 = vector.load %arg0[%c0, %c0_0] : memref<32x216xbf16, #tpu.memory_space<vmem>>, vector<32x216xbf16>
    %c0_1 = arith.constant 0 : index
    %c0_2 = arith.constant 0 : index
    %1 = vector.load %arg1[%c0_1, %c0_2] : memref<216x32xbf16, #tpu.memory_space<vmem>>, vector<216x32xbf16>
    %cst = arith.constant dense<0.000000e+00> : vector<32x32xf32>
    %2 = tpu.matmul %0, %1, %cst {dimension_numbers = #tpu.dot_dimension_numbers<[1], [0], [0], [1], [0, 0, 1, 1], [], []>} : vector<32x216xbf16>, vector<216x32xbf16>, vector<32x32xf32> -> vector<32x32xf32>
    %c0_3 = arith.constant 0 : index
    %c0_4 = arith.constant 0 : index
    %3 = vector.load %arg2[%c0_3, %c0_4] : memref<1x32xf32, #tpu.memory_space<vmem>>, vector<1x32xf32>
    %4 = vector.broadcast %3 : vector<1x32xf32> to vector<32x32xf32>
    %5 = arith.addf %2, %4 : vector<32x32xf32>
    %cst_5 = arith.constant 0.000000e+00 : f32
    %6 = vector.broadcast %cst_5 : f32 to vector<32x32xf32>
    %7 = arith.maximumf %5, %6 : vector<32x32xf32>
    %8 = arith.truncf %7 : vector<32x32xf32> to vector<32x32xbf16>
    %c0_6 = arith.constant 0 : index
    %c0_7 = arith.constant 0 : index
    %9 = vector.load %arg3[%c0_6, %c0_7] : memref<32x32xbf16, #tpu.memory_space<vmem>>, vector<32x32xbf16>
    tpu.vector_store %arg3[%c0_6, %c0_7], %8 {strides = array<i32>} : memref<32x32xbf16, #tpu.memory_space<vmem>>, vector<32x32xbf16>,
    return
  }
}

module attributes {stable_mosaic.version = 11 : i64} {
  func.func @_matmul_bias_act_kernel(%arg0: memref<8x288xbf16, #tpu.memory_space<vmem>>, %arg1: memref<288x48xbf16, #tpu.memory_space<vmem>>, %arg2: memref<1x48xf32, #tpu.memory_space<vmem>>, %arg3: memref<8x48xbf16, #tpu.memory_space<vmem>>) attributes {dimension_semantics = [], scalar_prefetch = 0 : i64, scratch_operands = 0 : i64, tpu.core_type = #tpu.core_type<tc>} {
    %c0 = arith.constant 0 : index
    %c0_0 = arith.constant 0 : index
    %0 = vector.load %arg0[%c0, %c0_0] : memref<8x288xbf16, #tpu.memory_space<vmem>>, vector<8x288xbf16>
    %c0_1 = arith.constant 0 : index
    %c0_2 = arith.constant 0 : index
    %1 = vector.load %arg1[%c0_1, %c0_2] : memref<288x48xbf16, #tpu.memory_space<vmem>>, vector<288x48xbf16>
    %cst = arith.constant dense<0.000000e+00> : vector<8x48xf32>
    %2 = tpu.matmul %0, %1, %cst {dimension_numbers = #tpu.dot_dimension_numbers<[1], [0], [0], [1], [0, 0, 1, 1], [], []>} : vector<8x288xbf16>, vector<288x48xbf16>, vector<8x48xf32> -> vector<8x48xf32>
    %c0_3 = arith.constant 0 : index
    %c0_4 = arith.constant 0 : index
    %3 = vector.load %arg2[%c0_3, %c0_4] : memref<1x48xf32, #tpu.memory_space<vmem>>, vector<1x48xf32>
    %4 = vector.broadcast %3 : vector<1x48xf32> to vector<8x48xf32>
    %5 = arith.addf %2, %4 : vector<8x48xf32>
    %cst_5 = arith.constant 0.000000e+00 : f32
    %6 = vector.broadcast %cst_5 : f32 to vector<8x48xf32>
    %7 = arith.maximumf %5, %6 : vector<8x48xf32>
    %8 = arith.truncf %7 : vector<8x48xf32> to vector<8x48xbf16>
    %c0_6 = arith.constant 0 : index
    %c0_7 = arith.constant 0 : index
    %9 = vector.load %arg3[%c0_6, %c0_7] : memref<8x48xbf16, #tpu.memory_space<vmem>>, vector<8x48xbf16>
    tpu.vector_store %arg3[%c0_6, %c0_7], %8 {strides = array<i32>} : memref<8x48xbf16, #tpu.memory_space<vmem>>, vector<8x48xbf16>,
    return
  }
}

module attributes {stable_mosaic.version = 11 : i64} {
  func.func @_fpn_fused_kernel(%arg0: memref<128x24xbf16, #tpu.memory_space<vmem>>, %arg1: memref<32x32xbf16, #tpu.memory_space<vmem>>, %arg2: memref<8x48xbf16, #tpu.memory_space<vmem>>, %arg3: memref<24x32xbf16, #tpu.memory_space<vmem>>, %arg4: memref<1x32xf32, #tpu.memory_space<vmem>>, %arg5: memref<32x32xbf16, #tpu.memory_space<vmem>>, %arg6: memref<1x32xf32, #tpu.memory_space<vmem>>, %arg7: memref<48x32xbf16, #tpu.memory_space<vmem>>, %arg8: memref<1x32xf32, #tpu.memory_space<vmem>>, %arg9: memref<32x8xf32, #tpu.memory_space<vmem>>, %arg10: memref<128x32xf32, #tpu.memory_space<vmem>>, %arg11: memref<128x32xbf16, #tpu.memory_space<vmem>>, %arg12: memref<32x32xbf16, #tpu.memory_space<vmem>>, %arg13: memref<8x32xbf16, #tpu.memory_space<vmem>>) attributes {dimension_semantics = [], scalar_prefetch = 0 : i64, scratch_operands = 0 : i64, tpu.core_type = #tpu.core_type<tc>} {
    %c0 = arith.constant 0 : index
    %c0_0 = arith.constant 0 : index
    %0 = vector.load %arg2[%c0, %c0_0] : memref<8x48xbf16, #tpu.memory_space<vmem>>, vector<8x48xbf16>
    %c0_1 = arith.constant 0 : index
    %c0_2 = arith.constant 0 : index
    %1 = vector.load %arg7[%c0_1, %c0_2] : memref<48x32xbf16, #tpu.memory_space<vmem>>, vector<48x32xbf16>
    %cst = arith.constant dense<0.000000e+00> : vector<8x32xf32>
    %2 = tpu.matmul %0, %1, %cst {dimension_numbers = #tpu.dot_dimension_numbers<[1], [0], [0], [1], [0, 0, 1, 1], [], []>} : vector<8x48xbf16>, vector<48x32xbf16>, vector<8x32xf32> -> vector<8x32xf32>
    %c0_3 = arith.constant 0 : index
    %c0_4 = arith.constant 0 : index
    %3 = vector.load %arg8[%c0_3, %c0_4] : memref<1x32xf32, #tpu.memory_space<vmem>>, vector<1x32xf32>
    %4 = vector.broadcast %3 : vector<1x32xf32> to vector<8x32xf32>
    %5 = arith.addf %2, %4 : vector<8x32xf32>
    %c0_5 = arith.constant 0 : index
    %c0_6 = arith.constant 0 : index
    %6 = vector.load %arg1[%c0_5, %c0_6] : memref<32x32xbf16, #tpu.memory_space<vmem>>, vector<32x32xbf16>
    %c0_7 = arith.constant 0 : index
    %c0_8 = arith.constant 0 : index
    %7 = vector.load %arg5[%c0_7, %c0_8] : memref<32x32xbf16, #tpu.memory_space<vmem>>, vector<32x32xbf16>
    %cst_9 = arith.constant dense<0.000000e+00> : vector<32x32xf32>
    %8 = tpu.matmul %6, %7, %cst_9 {dimension_numbers = #tpu.dot_dimension_numbers<[1], [0], [0], [1], [0, 0, 1, 1], [], []>} : vector<32x32xbf16>, vector<32x32xbf16>, vector<32x32xf32> -> vector<32x32xf32>
    %c0_10 = arith.constant 0 : index
    %c0_11 = arith.constant 0 : index
    %9 = vector.load %arg6[%c0_10, %c0_11] : memref<1x32xf32, #tpu.memory_space<vmem>>, vector<1x32xf32>
    %10 = vector.broadcast %9 : vector<1x32xf32> to vector<32x32xf32>
    %11 = arith.addf %8, %10 : vector<32x32xf32>
    %c0_12 = arith.constant 0 : index
    %c0_13 = arith.constant 0 : index
    %12 = vector.load %arg9[%c0_12, %c0_13] : memref<32x8xf32, #tpu.memory_space<vmem>>, vector<32x8xf32>
    %cst_14 = arith.constant dense<0.000000e+00> : vector<32x32xf32>
    %13 = tpu.matmul %12, %5, %cst_14 {dimension_numbers = #tpu.dot_dimension_numbers<[1], [0], [0], [1], [0, 0, 1, 1], [], []>} : vector<32x8xf32>, vector<8x32xf32>, vector<32x32xf32> -> vector<32x32xf32>
    %14 = arith.addf %11, %13 : vector<32x32xf32>
    %c0_15 = arith.constant 0 : index
    %c0_16 = arith.constant 0 : index
    %15 = vector.load %arg0[%c0_15, %c0_16] : memref<128x24xbf16, #tpu.memory_space<vmem>>, vector<128x24xbf16>
    %c0_17 = arith.constant 0 : index
    %c0_18 = arith.constant 0 : index
    %16 = vector.load %arg3[%c0_17, %c0_18] : memref<24x32xbf16, #tpu.memory_space<vmem>>, vector<24x32xbf16>
    %cst_19 = arith.constant dense<0.000000e+00> : vector<128x32xf32>
    %17 = tpu.matmul %15, %16, %cst_19 {dimension_numbers = #tpu.dot_dimension_numbers<[1], [0], [0], [1], [0, 0, 1, 1], [], []>} : vector<128x24xbf16>, vector<24x32xbf16>, vector<128x32xf32> -> vector<128x32xf32>
    %c0_20 = arith.constant 0 : index
    %c0_21 = arith.constant 0 : index
    %18 = vector.load %arg4[%c0_20, %c0_21] : memref<1x32xf32, #tpu.memory_space<vmem>>, vector<1x32xf32>
    %19 = vector.broadcast %18 : vector<1x32xf32> to vector<128x32xf32>
    %20 = arith.addf %17, %19 : vector<128x32xf32>
    %c0_22 = arith.constant 0 : index
    %c0_23 = arith.constant 0 : index
    %21 = vector.load %arg10[%c0_22, %c0_23] : memref<128x32xf32, #tpu.memory_space<vmem>>, vector<128x32xf32>
    %cst_24 = arith.constant dense<0.000000e+00> : vector<128x32xf32>
    %22 = tpu.matmul %21, %14, %cst_24 {dimension_numbers = #tpu.dot_dimension_numbers<[1], [0], [0], [1], [0, 0, 1, 1], [], []>} : vector<128x32xf32>, vector<32x32xf32>, vector<128x32xf32> -> vector<128x32xf32>
    %23 = arith.addf %20, %22 : vector<128x32xf32>
    %24 = arith.truncf %23 : vector<128x32xf32> to vector<128x32xbf16>
    %c0_25 = arith.constant 0 : index
    %c0_26 = arith.constant 0 : index
    %25 = vector.load %arg11[%c0_25, %c0_26] : memref<128x32xbf16, #tpu.memory_space<vmem>>, vector<128x32xbf16>
    tpu.vector_store %arg11[%c0_25, %c0_26], %24 {strides = array<i32>} : memref<128x32xbf16, #tpu.memory_space<vmem>>, vector<128x32xbf16>,
    %26 = arith.truncf %14 : vector<32x32xf32> to vector<32x32xbf16>
    %c0_27 = arith.constant 0 : index
    %c0_28 = arith.constant 0 : index
    %27 = vector.load %arg12[%c0_27, %c0_28] : memref<32x32xbf16, #tpu.memory_space<vmem>>, vector<32x32xbf16>
    tpu.vector_store %arg12[%c0_27, %c0_28], %26 {strides = array<i32>} : memref<32x32xbf16, #tpu.memory_space<vmem>>, vector<32x32xbf16>,
    %28 = arith.truncf %5 : vector<8x32xf32> to vector<8x32xbf16>
    %c0_29 = arith.constant 0 : index
    %c0_30 = arith.constant 0 : index
    %29 = vector.load %arg13[%c0_29, %c0_30] : memref<8x32xbf16, #tpu.memory_space<vmem>>, vector<8x32xbf16>
    tpu.vector_store %arg13[%c0_29, %c0_30], %28 {strides = array<i32>} : memref<8x32xbf16, #tpu.memory_space<vmem>>, vector<8x32xbf16>,
    return
  }
}

module attributes {stable_mosaic.version = 11 : i64} {
  func.func @_head_fused_kernel(%arg0: memref<168x288xbf16, #tpu.memory_space<vmem>>, %arg1: memref<288x32xbf16, #tpu.memory_space<vmem>>, %arg2: memref<1x32xf32, #tpu.memory_space<vmem>>, %arg3: memref<32x36xbf16, #tpu.memory_space<vmem>>, %arg4: memref<1x36xf32, #tpu.memory_space<vmem>>, %arg5: memref<168x36xf32, #tpu.memory_space<vmem>>) attributes {dimension_semantics = [], scalar_prefetch = 0 : i64, scratch_operands = 0 : i64, tpu.core_type = #tpu.core_type<tc>} {
    %c0 = arith.constant 0 : index
    %c0_0 = arith.constant 0 : index
    %0 = vector.load %arg0[%c0, %c0_0] : memref<168x288xbf16, #tpu.memory_space<vmem>>, vector<168x288xbf16>
    %c0_1 = arith.constant 0 : index
    %c0_2 = arith.constant 0 : index
    %1 = vector.load %arg1[%c0_1, %c0_2] : memref<288x32xbf16, #tpu.memory_space<vmem>>, vector<288x32xbf16>
    %cst = arith.constant dense<0.000000e+00> : vector<168x32xf32>
    %2 = tpu.matmul %0, %1, %cst {dimension_numbers = #tpu.dot_dimension_numbers<[1], [0], [0], [1], [0, 0, 1, 1], [], []>} : vector<168x288xbf16>, vector<288x32xbf16>, vector<168x32xf32> -> vector<168x32xf32>
    %c0_3 = arith.constant 0 : index
    %c0_4 = arith.constant 0 : index
    %3 = vector.load %arg2[%c0_3, %c0_4] : memref<1x32xf32, #tpu.memory_space<vmem>>, vector<1x32xf32>
    %4 = vector.broadcast %3 : vector<1x32xf32> to vector<168x32xf32>
    %5 = arith.addf %2, %4 : vector<168x32xf32>
    %cst_5 = arith.constant 0.000000e+00 : f32
    %6 = vector.broadcast %cst_5 : f32 to vector<168x32xf32>
    %7 = arith.maximumf %5, %6 : vector<168x32xf32>
    %8 = arith.truncf %7 : vector<168x32xf32> to vector<168x32xbf16>
    %c0_6 = arith.constant 0 : index
    %c0_7 = arith.constant 0 : index
    %9 = vector.load %arg3[%c0_6, %c0_7] : memref<32x36xbf16, #tpu.memory_space<vmem>>, vector<32x36xbf16>
    %cst_8 = arith.constant dense<0.000000e+00> : vector<168x36xf32>
    %10 = tpu.matmul %8, %9, %cst_8 {dimension_numbers = #tpu.dot_dimension_numbers<[1], [0], [0], [1], [0, 0, 1, 1], [], []>} : vector<168x32xbf16>, vector<32x36xbf16>, vector<168x36xf32> -> vector<168x36xf32>
    %c0_9 = arith.constant 0 : index
    %c0_10 = arith.constant 0 : index
    %11 = vector.load %arg4[%c0_9, %c0_10] : memref<1x36xf32, #tpu.memory_space<vmem>>, vector<1x36xf32>
    %12 = vector.broadcast %11 : vector<1x36xf32> to vector<168x36xf32>
    %13 = arith.addf %10, %12 : vector<168x36xf32>
    %c0_11 = arith.constant 0 : index
    %c0_12 = arith.constant 0 : index
    %14 = vector.load %arg5[%c0_11, %c0_12] : memref<168x36xf32, #tpu.memory_space<vmem>>, vector<168x36xf32>
    tpu.vector_store %arg5[%c0_11, %c0_12], %13 {strides = array<i32>} : memref<168x36xf32, #tpu.memory_space<vmem>>, vector<168x36xf32>,
    return
  }
}

</mosaic_0001>

<llo_original>
// kernel: one_stage_forward.6
$region0: #{one_stage_forward.6}
  #allocation0 [shape = 'u32[]', space=smem, size = 0x4, offset = 0x4, fixed_abs, tag = 'smem constant byte address 0x4 - core index']
  #allocation1 [shape = 'u32[144,128]{1,0:T(1,128)}', space=vmem, size = 0x12000, scoped, tag = 'internal scratch']
  %s0 = inlined_call_operand.vmem [shape: bf16[512,27], index: 0, kind: input, shape index: {}]
  %s1 = inlined_call_operand.vmem [shape: bf16[27,16], index: 1, kind: input, shape index: {}]
  %s2 = inlined_call_operand.vmem [shape: f32[1,16], index: 2, kind: input, shape index: {}]
  %s3 = inlined_call_operand.vmem [shape: bf16[512,16], index: 3, kind: output, shape index: {}]
  %s4 = sld [smem:[#allocation0]]
  $region22: #{one_stage_forward.6} parent=0
    _
  %s6 = ssub.s32 1, %s4
  %s7 = scalar_select 0, %s6, %s4
  // Predicated region
  $region2: #{one_stage_forward.6} parent=0 // pred_check
    _
  $region3: #{one_stage_forward.6} parent=0 // pred_check_branch
    %9 = sbr.rel (0) target = $region5
  $region4: #{one_stage_forward.6} parent=0 // pred_region
    _
  $region5: #{one_stage_forward.6} parent=0 // pred_fallthru
    _
  // Predicated region
  $region6: #{one_stage_forward.6} parent=0 // pred_check
    _
  $region7: #{one_stage_forward.6} parent=0 // pred_check_branch
    %11 = sbr.rel (0) target = $region9
  $region8: #{one_stage_forward.6} parent=0 // pred_region
    _
  $region9: #{one_stage_forward.6} parent=0 // pred_fallthru
    _
  // Predicated region
  $region10: #{one_stage_forward.6} parent=0 // pred_check
    _
  $region11: #{one_stage_forward.6} parent=0 // pred_check_branch
    %13 = sbr.rel (0) target = $region13
  $region12: #{one_stage_forward.6} parent=0 // pred_region
    _
  $region13: #{one_stage_forward.6} parent=0 // pred_fallthru
    _
  %v15 = vld [vmem:[%s0] sm:$0xf]
  %v16 = vld [vmem:[%s0 + $0x4] sm:$0xf]
  %v17 = vld [vmem:[%s0 + $0x8] sm:$0xf]
  %v18 = vld [vmem:[%s0 + $0xc] sm:$0xf]
  %v19 = vld [vmem:[%s0 + $0x10] sm:$0xf]
  %v20 = vld [vmem:[%s0 + $0x14] sm:$0xf]
  %v21 = vld [vmem:[%s0 + $0x18] sm:$0xf]
  %v22 = vld [vmem:[%s0 + $0x1c] sm:$0xf]
  %v23 = vld [vmem:[%s0 + $0x20] sm:$0xf]
  %v24 = vld [vmem:[%s0 + $0x24] sm:$0xf]
  %v25 = vld [vmem:[%s0 + $0x28] sm:$0xf]
  %v26 = vld [vmem:[%s0 + $0x2c] sm:$0xf]
  %v27 = vld [vmem:[%s0 + $0x30] sm:$0xf]
  %v28 = vld [vmem:[%s0 + $0x34] sm:$0xf]
  %v29 = vld [vmem:[%s0 + $0x38] sm:$0xf]
  %v30 = vld [vmem:[%s0 + $0x3c] sm:$0xf]
  %v31 = vld [vmem:[%s0 + $0x40] sm:$0xf]
  %v32 = vld [vmem:[%s0 + $0x44] sm:$0xf]
  %v33 = vld [vmem:[%s0 + $0x48] sm:$0xf]
  %v34 = vld [vmem:[%s0 + $0x4c] sm:$0xf]
  %v35 = vld [vmem:[%s0 + $0x50] sm:$0xf]
  %v36 = vld [vmem:[%s0 + $0x54] sm:$0xf]
  %v37 = vld [vmem:[%s0 + $0x58] sm:$0xf]
  %v38 = vld [vmem:[%s0 + $0x5c] sm:$0xf]
  %v39 = vld [vmem:[%s0 + $0x60] sm:$0xf]
  %v40 = vld [vmem:[%s0 + $0x64] sm:$0xf]
  %v41 = vld [vmem:[%s0 + $0x68] sm:$0xf]
  %v42 = vld [vmem:[%s0 + $0x6c] sm:$0xf]
  %v43 = vld [vmem:[%s0 + $0x70] sm:$0xf]
  %v44 = vld [vmem:[%s0 + $0x74] sm:$0xf]
  %v45 = vld [vmem:[%s0 + $0x78] sm:$0xf]
  %v46 = vld [vmem:[%s0 + $0x7c] sm:$0xf]
  %v47 = vld [vmem:[%s0 + $0x80] sm:$0xf]
  %v48 = vld [vmem:[%s0 + $0x84] sm:$0xf]
  %v49 = vld [vmem:[%s0 + $0x88] sm:$0xf]
  %v50 = vld [vmem:[%s0 + $0x8c] sm:$0xf]
  %v51 = vld [vmem:[%s0 + $0x90] sm:$0xf]
  %v52 = vld [vmem:[%s0 + $0x94] sm:$0xf]
  %v53 = vld [vmem:[%s0 + $0x98] sm:$0xf]
  %v54 = vld [vmem:[%s0 + $0x9c] sm:$0xf]
  %v55 = vld [vmem:[%s0 + $0xa0] sm:$0xf]
  %v56 = vld [vmem:[%s0 + $0xa4] sm:$0xf]
  %v57 = vld [vmem:[%s0 + $0xa8] sm:$0xf]
  %v58 = vld [vmem:[%s0 + $0xac] sm:$0xf]
  %v59 = vld [vmem:[%s0 + $0xb0] sm:$0xf]
  %v60 = vld [vmem:[%s0 + $0xb4] sm:$0xf]
  %v61 = vld [vmem:[%s0 + $0xb8] sm:$0xf]
  %v62 = vld [vmem:[%s0 + $0xbc] sm:$0xf]
  %v63 = vld [vmem:[%s0 + $0xc0] sm:$0xf]
  %v64 = vld [vmem:[%s0 + $0xc4] sm:$0xf]
  %v65 = vld [vmem:[%s0 + $0xc8] sm:$0xf]
  %v66 = vld [vmem:[%s0 + $0xcc] sm:$0xf]
  %v67 = vld [vmem:[%s0 + $0xd0] sm:$0xf]
  %v68 = vld [vmem:[%s0 + $0xd4] sm:$0xf]
  %v69 = vld [vmem:[%s0 + $0xd8] sm:$0xf]
  %v70 = vld [vmem:[%s0 + $0xdc] sm:$0xf]
  %v71 = vld [vmem:[%s0 + $0xe0] sm:$0xf]
  %v72 = vld [vmem:[%s0 + $0xe4] sm:$0xf]
  %v73 = vld [vmem:[%s0 + $0xe8] sm:$0xf]
  %v74 = vld [vmem:[%s0 + $0xec] sm:$0xf]
  %v75 = vld [vmem:[%s0 + $0xf0] sm:$0xf]
  %v76 = vld [vmem:[%s0 + $0xf4] sm:$0xf]
  %v77 = vld [vmem:[%s0 + $0xf8] sm:$0xf]
  %v78 = vld [vmem:[%s0 + $0xfc] sm:$0xf]
  %v79 = vld [vmem:[%s1] sm:$0xf]
  %v80 = vld [vmem:[%s1 + $0x4] sm:$0xf]
  %v81 = vld [vmem:[%s1 + $0x8] sm:$0xf]
  %v82 = vld [vmem:[%s1 + $0xc] sm:$0x3]
  %v83 = vld [vmem:[%s2] sm:$0x1]
  %v85 = vlaneseq
  %v86 = vshrl.u32 %v85, 7
  %v87 = vsub.s32 0, %v86
  %v88 = vrot.slane %v83, %v87
  %v154 = vunpack.c.l.b16 %v15
  %v155 = vunpack.c.l.b16 %v16
  %v156 = vunpack.c.l.b16 %v17
  %v157 = vunpack.c.l.b16 %v18
  %v158 = vunpack.c.l.b16 %v19
  %v159 = vunpack.c.l.b16 %v20
  %v160 = vunpack.c.l.b16 %v21
  %v161 = vunpack.c.l.b16 %v22
  %v162 = vunpack.c.l.b16 %v23
  %v163 = vunpack.c.l.b16 %v24
  %v164 = vunpack.c.l.b16 %v25
  %v165 = vunpack.c.l.b16 %v26
  %v166 = vunpack.c.l.b16 %v27
  %v167 = vunpack.c.l.b16 %v28
  %v168 = vunpack.c.l.b16 %v29
  %v169 = vunpack.c.l.b16 %v30
  %v170 = vunpack.c.l.b16 %v31
  %v171 = vunpack.c.l.b16 %v32
  %v172 = vunpack.c.l.b16 %v33
  %v173 = vunpack.c.l.b16 %v34
  %v174 = vunpack.c.l.b16 %v35
  %v175 = vunpack.c.l.b16 %v36
  %v176 = vunpack.c.l.b16 %v37
  %v177 = vunpack.c.l.b16 %v38
  %v178 = vunpack.c.l.b16 %v39
  %v179 = vunpack.c.l.b16 %v40
  %v180 = vunpack.c.l.b16 %v41
  %v181 = vunpack.c.l.b16 %v42
  %v182 = vunpack.c.l.b16 %v43
  %v183 = vunpack.c.l.b16 %v44
  %v184 = vunpack.c.l.b16 %v45
  %v185 = vunpack.c.l.b16 %v46
  %v186 = vunpack.c.l.b16 %v47
  %v187 = vunpack.c.l.b16 %v48
  %v188 = vunpack.c.l.b16 %v49
  %v189 = vunpack.c.l.b16 %v50
  %v190 = vunpack.c.l.b16 %v51
  %v191 = vunpack.c.l.b16 %v52
  %v192 = vunpack.c.l.b16 %v53
  %v193 = vunpack.c.l.b16 %v54
  %v194 = vunpack.c.l.b16 %v55
  %v195 = vunpack.c.l.b16 %v56
  %v196 = vunpack.c.l.b16 %v57
  %v197 = vunpack.c.l.b16 %v58
  %v198 = vunpack.c.l.b16 %v59
  %v199 = vunpack.c.l.b16 %v60
  %v200 = vunpack.c.l.b16 %v61
  %v201 = vunpack.c.l.b16 %v62
  %v202 = vunpack.c.l.b16 %v63
  %v203 = vunpack.c.l.b16 %v64
  %v204 = vunpack.c.l.b16 %v65
  %v205 = vunpack.c.l.b16 %v66
  %v206 = vunpack.c.l.b16 %v67
  %v207 = vunpack.c.l.b16 %v68
  %v208 = vunpack.c.l.b16 %v69
  %v209 = vunpack.c.l.b16 %v70
  %v210 = vunpack.c.l.b16 %v71
  %v211 = vunpack.c.l.b16 %v72
  %v212 = vunpack.c.l.b16 %v73
  %v213 = vunpack.c.l.b16 %v74
  %v214 = vunpack.c.l.b16 %v75
  %v215 = vunpack.c.l.b16 %v76
  %v216 = vunpack.c.l.b16 %v77
  %v217 = vunpack.c.l.b16 %v78
  %v218 = vpack.c.b16 %v155, %v154
  %v219 = vpack.c.b16 %v157, %v156
  %v220 = vpack.c.b16 %v159, %v158
  %v221 = vpack.c.b16 %v161, %v160
  %v222 = vpack.c.b16 %v163, %v162
  %v223 = vpack.c.b16 %v165, %v164
  %v224 = vpack.c.b16 %v167, %v166
  %v225 = vpack.c.b16 %v169, %v168
  %v226 = vpack.c.b16 %v171, %v170
  %v227 = vpack.c.b16 %v173, %v172
  %v228 = vpack.c.b16 %v175, %v174
  %v229 = vpack.c.b16 %v177, %v176
  %v230 = vpack.c.b16 %v179, %v178
  %v231 = vpack.c.b16 %v181, %v180
  %v232 = vpack.c.b16 %v183, %v182
  %v233 = vpack.c.b16 %v185, %v184
  %v234 = vpack.c.b16 %v187, %v186
  %v235 = vpack.c.b16 %v189, %v188
  %v236 = vpack.c.b16 %v191, %v190
  %v237 = vpack.c.b16 %v193, %v192
  %v238 = vpack.c.b16 %v195, %v194
  %v239 = vpack.c.b16 %v197, %v196
  %v240 = vpack.c.b16 %v199, %v198
  %v241 = vpack.c.b16 %v201, %v200
  %v242 = vpack.c.b16 %v203, %v202
  %v243 = vpack.c.b16 %v205, %v204
  %v244 = vpack.c.b16 %v207, %v206
  %v245 = vpack.c.b16 %v209, %v208
  %v246 = vpack.c.b16 %v211, %v210
  %v247 = vpack.c.b16 %v213, %v212
  %v248 = vpack.c.b16 %v215, %v214
  %v249 = vpack.c.b16 %v217, %v216
  %v254 = vunpack.c.l.b16 %v79
  %v255 = vunpack.c.l.b16 %v80
  %v256 = vunpack.c.l.b16 %v81
  %v257 = vunpack.c.l.b16 %v82
  %v258 = vpack.c.b16 %v255, %v254
  %v259 = vpack.c.b16 %v257, %v256
  %vm261 = vcmask 220160
  %v263 = vsel %vm261, %v218, 0
  %v266 = vsel %vm261, %v219, 0
  %v269 = vsel %vm261, %v220, 0
  %v272 = vsel %vm261, %v221, 0
  %v275 = vsel %vm261, %v222, 0
  %v278 = vsel %vm261, %v223, 0
  %v281 = vsel %vm261, %v224, 0
  %v284 = vsel %vm261, %v225, 0
  %v287 = vsel %vm261, %v226, 0
  %v290 = vsel %vm261, %v227, 0
  %v293 = vsel %vm261, %v228, 0
  %v296 = vsel %vm261, %v229, 0
  %v299 = vsel %vm261, %v230, 0
  %v302 = vsel %vm261, %v231, 0
  %v305 = vsel %vm261, %v232, 0
  %v308 = vsel %vm261, %v233, 0
  %v311 = vsel %vm261, %v234, 0
  %v314 = vsel %vm261, %v235, 0
  %v317 = vsel %vm261, %v236, 0
  %v320 = vsel %vm261, %v237, 0
  %v323 = vsel %vm261, %v238, 0
  %v326 = vsel %vm261, %v239, 0
  %v329 = vsel %vm261, %v240, 0
  %v332 = vsel %vm261, %v241, 0
  %v335 = vsel %vm261, %v242, 0
  %v338 = vsel %vm261, %v243, 0
  %v341 = vsel %vm261, %v244, 0
  %v344 = vsel %vm261, %v245, 0
  %v347 = vsel %vm261, %v246, 0
  %v350 = vsel %vm261, %v247, 0
  %v353 = vsel %vm261, %v248, 0
  %v356 = vsel %vm261, %v249, 0
  %vm358 = vcmask 1044480
  %vm359 = vcmask 1045504
  %v360 = vsel %vm358, 4294967295, 65535
  %v361 = vsel %vm359, %v360, 0
  %v363 = vand.u32 %v259, %v361
  %365 = vmatprep.subr.bf16.mxu0 0
  %366 = vmatpush1.bf16.msra.mxu0 %v258
  %367 = vmatprep.subr.bf16.mxu0 0
  %368 = vmatpush1.bf16.msra.mxu0 %v363
  %369 = vmatprep.subr.bf16.mxu0 0
  %370 = vmatpush1.bf16.msra.mxu0 0
  %371 = vmatprep.subr.bf16.mxu0 0
  %372 = vmatpush1.bf16.msra.mxu0 0
  %373 = vmatprep.subr.bf16.mxu0 0
  %374 = vmatpush1.bf16.msra.mxu0 0
  %375 = vmatprep.subr.bf16.mxu0 0
  %376 = vmatpush1.bf16.msra.mxu0 0
  %377 = vmatprep.subr.bf16.mxu0 0
  %378 = vmatpush1.bf16.msra.mxu0 0
  %379 = vmatprep.subr.bf16.mxu0 0
  %380 = vmatpush1.bf16.msra.mxu0 0
  %381 = vmatprep.subr.bf16.mxu0 0
  %382 = vmatpush1.bf16.msra.mxu0 0
  %383 = vmatprep.subr.bf16.mxu0 0
  %384 = vmatpush1.bf16.msra.mxu0 0
  %385 = vmatprep.subr.bf16.mxu0 0
  %386 = vmatpush1.bf16.msra.mxu0 0
  %387 = vmatprep.subr.bf16.mxu0 0
  %388 = vmatpush1.bf16.msra.mxu0 0
  %389 = vmatprep.subr.bf16.mxu0 0
  %390 = vmatpush1.bf16.msra.mxu0 0
  %391 = vmatprep.subr.bf16.mxu0 0
  %392 = vmatpush1.bf16.msra.mxu0 0
  %393 = vmatprep.subr.bf16.mxu0 0
  %394 = vmatpush1.bf16.msra.mxu0 0
  %395 = vmatprep.subr.bf16.mxu0 0
  %396 = vmatpush1.bf16.msra.mxu0 0
  %397 = vmatprep.mubr.bf16.mxu0 0
  %398 = vmatmul.mubr.bf16.gmra.mrb[0].mxu0 %v263
  %v399 = vpop.f32.mrb[0].mxu0
  %v400 = vadd.f32 %v88, %v399
  %v401 = vpop.f32.mrb[0].mxu0
  %v402 = vpop.f32.mrb[0].mxu0
  %v403 = vadd.f32 %v88, %v402
  %v404 = vpop.f32.mrb[0].mxu0
  %405 = vmatprep.mubr.bf16.mxu0 0
  %406 = vmatmul.mubr.bf16.gmra.mrb[0].mxu0 %v266
  %v407 = vpop.f32.mrb[0].mxu0
  %v408 = vadd.f32 %v88, %v407
  %v409 = vpop.f32.mrb[0].mxu0
  %v410 = vpop.f32.mrb[0].mxu0
  %v411 = vadd.f32 %v88, %v410
  %v412 = vpop.f32.mrb[0].mxu0
  %413 = vmatprep.mubr.bf16.mxu0 0
  %414 = vmatmul.mubr.bf16.gmra.mrb[0].mxu0 %v269
  %v415 = vpop.f32.mrb[0].mxu0
  %v416 = vadd.f32 %v88, %v415
  %v417 = vpop.f32.mrb[0].mxu0
  %v418 = vpop.f32.mrb[0].mxu0
  %v419 = vadd.f32 %v88, %v418
  %v420 = vpop.f32.mrb[0].mxu0
  %421 = vmatprep.mubr.bf16.mxu0 0
  %422 = vmatmul.mubr.bf16.gmra.mrb[0].mxu0 %v272
  %v423 = vpop.f32.mrb[0].mxu0
  %v424 = vadd.f32 %v88, %v423
  %v425 = vpop.f32.mrb[0].mxu0
  %v426 = vpop.f32.mrb[0].mxu0
  %v427 = vadd.f32 %v88, %v426
  %v428 = vpop.f32.mrb[0].mxu0
  %429 = vmatprep.mubr.bf16.mxu0 0
  %430 = vmatmul.mubr.bf16.gmra.mrb[0].mxu0 %v275
  %v431 = vpop.f32.mrb[0].mxu0
  %v432 = vadd.f32 %v88, %v431
  %v433 = vpop.f32.mrb[0].mxu0
  %v434 = vpop.f32.mrb[0].mxu0
  %v435 = vadd.f32 %v88, %v434
  %v436 = vpop.f32.mrb[0].mxu0
  %437 = vmatprep.mubr.bf16.mxu0 0
  %438 = vmatmul.mubr.bf16.gmra.mrb[0].mxu0 %v278
  %v439 = vpop.f32.mrb[0].mxu0
  %v440 = vadd.f32 %v88, %v439
  %v441 = vpop.f32.mrb[0].mxu0
  %v442 = vpop.f32.mrb[0].mxu0
  %v443 = vadd.f32 %v88, %v442
  %v444 = vpop.f32.mrb[0].mxu0
  %445 = vmatprep.mubr.bf16.mxu0 0
  %446 = vmatmul.mubr.bf16.gmra.mrb[0].mxu0 %v281
  %v447 = vpop.f32.mrb[0].mxu0
  %v448 = vadd.f32 %v88, %v447
  %v449 = vpop.f32.mrb[0].mxu0
  %v450 = vpop.f32.mrb[0].mxu0
  %v451 = vadd.f32 %v88, %v450
  %v452 = vpop.f32.mrb[0].mxu0
  %453 = vmatprep.mubr.bf16.mxu0 0
  %454 = vmatmul.mubr.bf16.gmra.mrb[0].mxu0 %v284
  %v455 = vpop.f32.mrb[0].mxu0
  %v456 = vadd.f32 %v88, %v455
  %v457 = vpop.f32.mrb[0].mxu0
  %v458 = vpop.f32.mrb[0].mxu0
  %v459 = vadd.f32 %v88, %v458
  %v460 = vpop.f32.mrb[0].mxu0
  %461 = vmatprep.mubr.bf16.mxu0 0
  %462 = vmatmul.mubr.bf16.gmra.mrb[0].mxu0 %v287
  %v463 = vpop.f32.mrb[0].mxu0
  %v464 = vadd.f32 %v88, %v463
  %v465 = vpop.f32.mrb[0].mxu0
  %v466 = vpop.f32.mrb[0].mxu0
  %v467 = vadd.f32 %v88, %v466
  %v468 = vpop.f32.mrb[0].mxu0
  %469 = vmatprep.mubr.bf16.mxu0 0
  %470 = vmatmul.mubr.bf16.gmra.mrb[0].mxu0 %v290
  %v471 = vpop.f32.mrb[0].mxu0
  %v472 = vadd.f32 %v88, %v471
  %v473 = vpop.f32.mrb[0].mxu0
  %v474 = vpop.f32.mrb[0].mxu0
  %v475 = vadd.f32 %v88, %v474
  %v476 = vpop.f32.mrb[0].mxu0
  %477 = vmatprep.mubr.bf16.mxu0 0
  %478 = vmatmul.mubr.bf16.gmra.mrb[0].mxu0 %v293
  %v479 = vpop.f32.mrb[0].mxu0
  %v480 = vadd.f32 %v88, %v479
  %v481 = vpop.f32.mrb[0].mxu0
  %v482 = vpop.f32.mrb[0].mxu0
  %v483 = vadd.f32 %v88, %v482
  %v484 = vpop.f32.mrb[0].mxu0
  %485 = vmatprep.mubr.bf16.mxu0 0
  %486 = vmatmul.mubr.bf16.gmra.mrb[0].mxu0 %v296
  %v487 = vpop.f32.mrb[0].mxu0
  %v488 = vadd.f32 %v88, %v487
  %v489 = vpop.f32.mrb[0].mxu0
  %v490 = vpop.f32.mrb[0].mxu0
  %v491 = vadd.f32 %v88, %v490
  %v492 = vpop.f32.mrb[0].mxu0
  %493 = vmatprep.mubr.bf16.mxu0 0
  %494 = vmatmul.mubr.bf16.gmra.mrb[0].mxu0 %v299
  %v495 = vpop.f32.mrb[0].mxu0
  %v496 = vadd.f32 %v88, %v495
  %v497 = vpop.f32.mrb[0].mxu0
  %v498 = vpop.f32.mrb[0].mxu0
  %v499 = vadd.f32 %v88, %v498
  %v500 = vpop.f32.mrb[0].mxu0
  %501 = vmatprep.mubr.bf16.mxu0 0
  %502 = vmatmul.mubr.bf16.gmra.mrb[0].mxu0 %v302
  %v503 = vpop.f32.mrb[0].mxu0
  %v504 = vadd.f32 %v88, %v503
  %v505 = vpop.f32.mrb[0].mxu0
  %v506 = vpop.f32.mrb[0].mxu0
  %v507 = vadd.f32 %v88, %v506
  %v508 = vpop.f32.mrb[0].mxu0
  %509 = vmatprep.mubr.bf16.mxu0 0
  %510 = vmatmul.mubr.bf16.gmra.mrb[0].mxu0 %v305
  %v511 = vpop.f32.mrb[0].mxu0
  %v512 = vadd.f32 %v88, %v511
  %v513 = vpop.f32.mrb[0].mxu0
  %v514 = vpop.f32.mrb[0].mxu0
  %v515 = vadd.f32 %v88, %v514
  %v516 = vpop.f32.mrb[0].mxu0
  %517 = vmatprep.mubr.bf16.mxu0 0
  %518 = vmatmul.mubr.bf16.gmra.mrb[0].mxu0 %v308
  %v519 = vpop.f32.mrb[0].mxu0
  %v520 = vadd.f32 %v88, %v519
  %v521 = vpop.f32.mrb[0].mxu0
  %v522 = vpop.f32.mrb[0].mxu0
  %v523 = vadd.f32 %v88, %v522
  %v524 = vpop.f32.mrb[0].mxu0
  %525 = vmatprep.mubr.bf16.mxu0 0
  %526 = vmatmul.mubr.bf16.gmra.mrb[0].mxu0 %v311
  %v527 = vpop.f32.mrb[0].mxu0
  %v528 = vadd.f32 %v88, %v527
  %v529 = vpop.f32.mrb[0].mxu0
  %v530 = vpop.f32.mrb[0].mxu0
  %v531 = vadd.f32 %v88, %v530
  %v532 = vpop.f32.mrb[0].mxu0
  %533 = vmatprep.mubr.bf16.mxu0 0
  %534 = vmatmul.mubr.bf16.gmra.mrb[0].mxu0 %v314
  %v535 = vpop.f32.mrb[0].mxu0
  %v536 = vadd.f32 %v88, %v535
  %v537 = vpop.f32.mrb[0].mxu0
  %v538 = vpop.f32.mrb[0].mxu0
  %v539 = vadd.f32 %v88, %v538
  %v540 = vpop.f32.mrb[0].mxu0
  %541 = vmatprep.mubr.bf16.mxu0 0
  %542 = vmatmul.mubr.bf16.gmra.mrb[0].mxu0 %v317
  %v543 = vpop.f32.mrb[0].mxu0
  %v544 = vadd.f32 %v88, %v543
  %v545 = vpop.f32.mrb[0].mxu0
  %v546 = vpop.f32.mrb[0].mxu0
  %v547 = vadd.f32 %v88, %v546
  %v548 = vpop.f32.mrb[0].mxu0
  %549 = vmatprep.mubr.bf16.mxu0 0
  %550 = vmatmul.mubr.bf16.gmra.mrb[0].mxu0 %v320
  %v551 = vpop.f32.mrb[0].mxu0
  %v552 = vadd.f32 %v88, %v551
  %v553 = vpop.f32.mrb[0].mxu0
  %v554 = vpop.f32.mrb[0].mxu0
  %v555 = vadd.f32 %v88, %v554
  %v556 = vpop.f32.mrb[0].mxu0
  %557 = vmatprep.mubr.bf16.mxu0 0
  %558 = vmatmul.mubr.bf16.gmra.mrb[0].mxu0 %v323
  %v559 = vpop.f32.mrb[0].mxu0
  %v560 = vadd.f32 %v88, %v559
  %v561 = vpop.f32.mrb[0].mxu0
  %v562 = vpop.f32.mrb[0].mxu0
  %v563 = vadd.f32 %v88, %v562
  %v564 = vpop.f32.mrb[0].mxu0
  %565 = vmatprep.mubr.bf16.mxu0 0
  %566 = vmatmul.mubr.bf16.gmra.mrb[0].mxu0 %v326
  %v567 = vpop.f32.mrb[0].mxu0
  %v568 = vadd.f32 %v88, %v567
  %v569 = vpop.f32.mrb[0].mxu0
  %v570 = vpop.f32.mrb[0].mxu0
  %v571 = vadd.f32 %v88, %v570
  %v572 = vpop.f32.mrb[0].mxu0
  %573 = vmatprep.mubr.bf16.mxu0 0
  %574 = vmatmul.mubr.bf16.gmra.mrb[0].mxu0 %v329
  %v575 = vpop.f32.mrb[0].mxu0
  %v576 = vadd.f32 %v88, %v575
  %v577 = vpop.f32.mrb[0].mxu0
  %v578 = vpop.f32.mrb[0].mxu0
  %v579 = vadd.f32 %v88, %v578
  %v580 = vpop.f32.mrb[0].mxu0
  %581 = vmatprep.mubr.bf16.mxu0 0
  %582 = vmatmul.mubr.bf16.gmra.mrb[0].mxu0 %v332
  %v583 = vpop.f32.mrb[0].mxu0
  %v584 = vadd.f32 %v88, %v583
  %v585 = vpop.f32.mrb[0].mxu0
  %v586 = vpop.f32.mrb[0].mxu0
  %v587 = vadd.f32 %v88, %v586
  %v588 = vpop.f32.mrb[0].mxu0
  %589 = vmatprep.mubr.bf16.mxu0 0
  %590 = vmatmul.mubr.bf16.gmra.mrb[0].mxu0 %v335
  %v591 = vpop.f32.mrb[0].mxu0
  %v592 = vadd.f32 %v88, %v591
  %v593 = vpop.f32.mrb[0].mxu0
  %v594 = vpop.f32.mrb[0].mxu0
  %v595 = vadd.f32 %v88, %v594
  %v596 = vpop.f32.mrb[0].mxu0
  %597 = vmatprep.mubr.bf16.mxu0 0
  %598 = vmatmul.mubr.bf16.gmra.mrb[0].mxu0 %v338
  %v599 = vpop.f32.mrb[0].mxu0
  %v600 = vadd.f32 %v88, %v599
  %v601 = vpop.f32.mrb[0].mxu0
  %v602 = vpop.f32.mrb[0].mxu0
  %v603 = vadd.f32 %v88, %v602
  %v604 = vpop.f32.mrb[0].mxu0
  %605 = vmatprep.mubr.bf16.mxu0 0
  %606 = vmatmul.mubr.bf16.gmra.mrb[0].mxu0 %v341
  %v607 = vpop.f32.mrb[0].mxu0
  %v608 = vadd.f32 %v88, %v607
  %v609 = vpop.f32.mrb[0].mxu0
  %v610 = vpop.f32.mrb[0].mxu0
  %v611 = vadd.f32 %v88, %v610
  %v612 = vpop.f32.mrb[0].mxu0
  %613 = vmatprep.mubr.bf16.mxu0 0
  %614 = vmatmul.mubr.bf16.gmra.mrb[0].mxu0 %v344
  %v615 = vpop.f32.mrb[0].mxu0
  %v616 = vadd.f32 %v88, %v615
  %v617 = vpop.f32.mrb[0].mxu0
  %v618 = vpop.f32.mrb[0].mxu0
  %v619 = vadd.f32 %v88, %v618
  %v620 = vpop.f32.mrb[0].mxu0
  %621 = vmatprep.mubr.bf16.mxu0 0
  %622 = vmatmul.mubr.bf16.gmra.mrb[0].mxu0 %v347
  %v623 = vpop.f32.mrb[0].mxu0
  %v624 = vadd.f32 %v88, %v623
  %v625 = vpop.f32.mrb[0].mxu0
  %v626 = vpop.f32.mrb[0].mxu0
  %v627 = vadd.f32 %v88, %v626
  %v628 = vpop.f32.mrb[0].mxu0
  %629 = vmatprep.mubr.bf16.mxu0 0
  %630 = vmatmul.mubr.bf16.gmra.mrb[0].mxu0 %v350
  %v631 = vpop.f32.mrb[0].mxu0
  %v632 = vadd.f32 %v88, %v631
  %v633 = vpop.f32.mrb[0].mxu0
  %v634 = vpop.f32.mrb[0].mxu0
  %v635 = vadd.f32 %v88, %v634
  %v636 = vpop.f32.mrb[0].mxu0
  %637 = vmatprep.mubr.bf16.mxu0 0
  %638 = vmatmul.mubr.bf16.gmra.mrb[0].mxu0 %v353
  %v639 = vpop.f32.mrb[0].mxu0
  %v640 = vadd.f32 %v88, %v639
  %v641 = vpop.f32.mrb[0].mxu0
  %v642 = vpop.f32.mrb[0].mxu0
  %v643 = vadd.f32 %v88, %v642
  %v644 = vpop.f32.mrb[0].mxu0
  %645 = vmatprep.mubr.bf16.mxu0 0
  %646 = vmatmul.mubr.bf16.gmra.mrb[0].mxu0 %v356
  %v647 = vpop.f32.mrb[0].mxu0
  %v648 = vadd.f32 %v88, %v647
  %v649 = vpop.f32.mrb[0].mxu0
  %v650 = vpop.f32.mrb[0].mxu0
  %v651 = vadd.f32 %v88, %v650
  %v652 = vpop.f32.mrb[0].mxu0
  %653 = vdwg.mxu0
  %v654 = vmax.f32 %v400, 0.0
  %v655 = vmax.f32 %v403, 0.0
  %v656 = vmax.f32 %v408, 0.0
  %v657 = vmax.f32 %v411, 0.0
  %v658 = vmax.f32 %v416, 0.0
  %v659 = vmax.f32 %v419, 0.0
  %v660 = vmax.f32 %v424, 0.0
  %v661 = vmax.f32 %v427, 0.0
  %v662 = vmax.f32 %v432, 0.0
  %v663 = vmax.f32 %v435, 0.0
  %v664 = vmax.f32 %v440, 0.0
  %v665 = vmax.f32 %v443, 0.0
  %v666 = vmax.f32 %v448, 0.0
  %v667 = vmax.f32 %v451, 0.0
  %v668 = vmax.f32 %v456, 0.0
  %v669 = vmax.f32 %v459, 0.0
  %v670 = vmax.f32 %v464, 0.0
  %v671 = vmax.f32 %v467, 0.0
  %v672 = vmax.f32 %v472, 0.0
  %v673 = vmax.f32 %v475, 0.0
  %v674 = vmax.f32 %v480, 0.0
  %v675 = vmax.f32 %v483, 0.0
  %v676 = vmax.f32 %v488, 0.0
  %v677 = vmax.f32 %v491, 0.0
  %v678 = vmax.f32 %v496, 0.0
  %v679 = vmax.f32 %v499, 0.0
  %v680 = vmax.f32 %v504, 0.0
  %v681 = vmax.f32 %v507, 0.0
  %v682 = vmax.f32 %v512, 0.0
  %v683 = vmax.f32 %v515, 0.0
  %v684 = vmax.f32 %v520, 0.0
  %v685 = vmax.f32 %v523, 0.0
  %v686 = vmax.f32 %v528, 0.0
  %v687 = vmax.f32 %v531, 0.0
  %v688 = vmax.f32 %v536, 0.0
  %v689 = vmax.f32 %v539, 0.0
  %v690 = vmax.f32 %v544, 0.0
  %v691 = vmax.f32 %v547, 0.0
  %v692 = vmax.f32 %v552, 0.0
  %v693 = vmax.f32 %v555, 0.0
  %v694 = vmax.f32 %v560, 0.0
  %v695 = vmax.f32 %v563, 0.0
  %v696 = vmax.f32 %v568, 0.0
  %v697 = vmax.f32 %v571, 0.0
  %v698 = vmax.f32 %v576, 0.0
  %v699 = vmax.f32 %v579, 0.0
  %v700 = vmax.f32 %v584, 0.0
  %v701 = vmax.f32 %v587, 0.0
  %v702 = vmax.f32 %v592, 0.0
  %v703 = vmax.f32 %v595, 0.0
  %v704 = vmax.f32 %v600, 0.0
  %v705 = vmax.f32 %v603, 0.0
  %v706 = vmax.f32 %v608, 0.0
  %v707 = vmax.f32 %v611, 0.0
  %v708 = vmax.f32 %v616, 0.0
  %v709 = vmax.f32 %v619, 0.0
  %v710 = vmax.f32 %v624, 0.0
  %v711 = vmax.f32 %v627, 0.0
  %v712 = vmax.f32 %v632, 0.0
  %v713 = vmax.f32 %v635, 0.0
  %v714 = vmax.f32 %v640, 0.0
  %v715 = vmax.f32 %v643, 0.0
  %v716 = vmax.f32 %v648, 0.0
  %v717 = vmax.f32 %v651, 0.0
  %v718 = vpack.c.bf16 %v655, %v654
  %v719 = vpack.c.bf16 %v657, %v656
  %v720 = vpack.c.bf16 %v659, %v658
  %v721 = vpack.c.bf16 %v661, %v660
  %v722 = vpack.c.bf16 %v663, %v662
  %v723 = vpack.c.bf16 %v665, %v664
  %v724 = vpack.c.bf16 %v667, %v666
  %v725 = vpack.c.bf16 %v669, %v668
  %v726 = vpack.c.bf16 %v671, %v670
  %v727 = vpack.c.bf16 %v673, %v672
  %v728 = vpack.c.bf16 %v675, %v674
  %v729 = vpack.c.bf16 %v677, %v676
  %v730 = vpack.c.bf16 %v679, %v678
  %v731 = vpack.c.bf16 %v681, %v680
  %v732 = vpack.c.bf16 %v683, %v682
  %v733 = vpack.c.bf16 %v685, %v684
  %v734 = vpack.c.bf16 %v687, %v686
  %v735 = vpack.c.bf16 %v689, %v688
  %v736 = vpack.c.bf16 %v691, %v690
  %v737 = vpack.c.bf16 %v693, %v692
  %v738 = vpack.c.bf16 %v695, %v694
  %v739 = vpack.c.bf16 %v697, %v696
  %v740 = vpack.c.bf16 %v699, %v698
  %v741 = vpack.c.bf16 %v701, %v700
  %v742 = vpack.c.bf16 %v703, %v702
  %v743 = vpack.c.bf16 %v705, %v704
  %v744 = vpack.c.bf16 %v707, %v706
  %v745 = vpack.c.bf16 %v709, %v708
  %v746 = vpack.c.bf16 %v711, %v710
  %v747 = vpack.c.bf16 %v713, %v712
  %v748 = vpack.c.bf16 %v715, %v714
  %v749 = vpack.c.bf16 %v717, %v716
  %v782 = vunpack.c.l.b16 %v718
  %v783 = vunpack.c.h.b16 %v718
  %v784 = vunpack.c.l.b16 %v719
  %v785 = vunpack.c.h.b16 %v719
  %v786 = vunpack.c.l.b16 %v720
  %v787 = vunpack.c.h.b16 %v720
  %v788 = vunpack.c.l.b16 %v721
  %v789 = vunpack.c.h.b16 %v721
  %v790 = vunpack.c.l.b16 %v722
  %v791 = vunpack.c.h.b16 %v722
  %v792 = vunpack.c.l.b16 %v723
  %v793 = vunpack.c.h.b16 %v723
  %v794 = vunpack.c.l.b16 %v724
  %v795 = vunpack.c.h.b16 %v724
  %v796 = vunpack.c.l.b16 %v725
  %v797 = vunpack.c.h.b16 %v725
  %v798 = vunpack.c.l.b16 %v726
  %v799 = vunpack.c.h.b16 %v726
  %v800 = vunpack.c.l.b16 %v727
  %v801 = vunpack.c.h.b16 %v727
  %v802 = vunpack.c.l.b16 %v728
  %v803 = vunpack.c.h.b16 %v728
  %v804 = vunpack.c.l.b16 %v729
  %v805 = vunpack.c.h.b16 %v729
  %v806 = vunpack.c.l.b16 %v730
  %v807 = vunpack.c.h.b16 %v730
  %v808 = vunpack.c.l.b16 %v731
  %v809 = vunpack.c.h.b16 %v731
  %v810 = vunpack.c.l.b16 %v732
  %v811 = vunpack.c.h.b16 %v732
  %v812 = vunpack.c.l.b16 %v733
  %v813 = vunpack.c.h.b16 %v733
  %v814 = vunpack.c.l.b16 %v734
  %v815 = vunpack.c.h.b16 %v734
  %v816 = vunpack.c.l.b16 %v735
  %v817 = vunpack.c.h.b16 %v735
  %v818 = vunpack.c.l.b16 %v736
  %v819 = vunpack.c.h.b16 %v736
  %v820 = vunpack.c.l.b16 %v737
  %v821 = vunpack.c.h.b16 %v737
  %v822 = vunpack.c.l.b16 %v738
  %v823 = vunpack.c.h.b16 %v738
  %v824 = vunpack.c.l.b16 %v739
  %v825 = vunpack.c.h.b16 %v739
  %v826 = vunpack.c.l.b16 %v740
  %v827 = vunpack.c.h.b16 %v740
  %v828 = vunpack.c.l.b16 %v741
  %v829 = vunpack.c.h.b16 %v741
  %v830 = vunpack.c.l.b16 %v742
  %v831 = vunpack.c.h.b16 %v742
  %v832 = vunpack.c.l.b16 %v743
  %v833 = vunpack.c.h.b16 %v743
  %v834 = vunpack.c.l.b16 %v744
  %v835 = vunpack.c.h.b16 %v744
  %v836 = vunpack.c.l.b16 %v745
  %v837 = vunpack.c.h.b16 %v745
  %v838 = vunpack.c.l.b16 %v746
  %v839 = vunpack.c.h.b16 %v746
  %v840 = vunpack.c.l.b16 %v747
  %v841 = vunpack.c.h.b16 %v747
  %v842 = vunpack.c.l.b16 %v748
  %v843 = vunpack.c.h.b16 %v748
  %v844 = vunpack.c.l.b16 %v749
  %v845 = vunpack.c.h.b16 %v749
  %v846 = vpack.c.b16 %v782, %v782
  %v847 = vpack.c.b16 %v783, %v783
  %v848 = vpack.c.b16 %v784, %v784
  %v849 = vpack.c.b16 %v785, %v785
  %v850 = vpack.c.b16 %v786, %v786
  %v851 = vpack.c.b16 %v787, %v787
  %v852 = vpack.c.b16 %v788, %v788
  %v853 = vpack.c.b16 %v789, %v789
  %v854 = vpack.c.b16 %v790, %v790
  %v855 = vpack.c.b16 %v791, %v791
  %v856 = vpack.c.b16 %v792, %v792
  %v857 = vpack.c.b16 %v793, %v793
  %v858 = vpack.c.b16 %v794, %v794
  %v859 = vpack.c.b16 %v795, %v795
  %v860 = vpack.c.b16 %v796, %v796
  %v861 = vpack.c.b16 %v797, %v797
  %v862 = vpack.c.b16 %v798, %v798
  %v863 = vpack.c.b16 %v799, %v799
  %v864 = vpack.c.b16 %v800, %v800
  %v865 = vpack.c.b16 %v801, %v801
  %v866 = vpack.c.b16 %v802, %v802
  %v867 = vpack.c.b16 %v803, %v803
  %v868 = vpack.c.b16 %v804, %v804
  %v869 = vpack.c.b16 %v805, %v805
  %v870 = vpack.c.b16 %v806, %v806
  %v871 = vpack.c.b16 %v807, %v807
  %v872 = vpack.c.b16 %v808, %v808
  %v873 = vpack.c.b16 %v809, %v809
  %v874 = vpack.c.b16 %v810, %v810
  %v875 = vpack.c.b16 %v811, %v811
  %v876 = vpack.c.b16 %v812, %v812
  %v877 = vpack.c.b16 %v813, %v813
  %v878 = vpack.c.b16 %v814, %v814
  %v879 = vpack.c.b16 %v815, %v815
  %v880 = vpack.c.b16 %v816, %v816
  %v881 = vpack.c.b16 %v817, %v817
  %v882 = vpack.c.b16 %v818, %v818
  %v883 = vpack.c.b16 %v819, %v819
  %v884 = vpack.c.b16 %v820, %v820
  %v885 = vpack.c.b16 %v821, %v821
  %v886 = vpack.c.b16 %v822, %v822
  %v887 = vpack.c.b16 %v823, %v823
  %v888 = vpack.c.b16 %v824, %v824
  %v889 = vpack.c.b16 %v825, %v825
  %v890 = vpack.c.b16 %v826, %v826
  %v891 = vpack.c.b16 %v827, %v827
  %v892 = vpack.c.b16 %v828, %v828
  %v893 = vpack.c.b16 %v829, %v829
  %v894 = vpack.c.b16 %v830, %v830
  %v895 = vpack.c.b16 %v831, %v831
  %v896 = vpack.c.b16 %v832, %v832
  %v897 = vpack.c.b16 %v833, %v833
  %v898 = vpack.c.b16 %v834, %v834
  %v899 = vpack.c.b16 %v835, %v835
  %v900 = vpack.c.b16 %v836, %v836
  %v901 = vpack.c.b16 %v837, %v837
  %v902 = vpack.c.b16 %v838, %v838
  %v903 = vpack.c.b16 %v839, %v839
  %v904 = vpack.c.b16 %v840, %v840
  %v905 = vpack.c.b16 %v841, %v841
  %v906 = vpack.c.b16 %v842, %v842
  %v907 = vpack.c.b16 %v843, %v843
  %v908 = vpack.c.b16 %v844, %v844
  %v909 = vpack.c.b16 %v845, %v845
  %vm974 = vcmask 125952
  %975 = vst.msk [vmem:[%s3] sm:$0xf] %vm974, %v846
  %976 = vst.msk [vmem:[%s3 + $0x4] sm:$0xf] %vm974, %v847
  %977 = vst.msk [vmem:[%s3 + $0x8] sm:$0xf] %vm974, %v848
  %978 = vst.msk [vmem:[%s3 + $0xc] sm:$0xf] %vm974, %v849
  %979 = vst.msk [vmem:[%s3 + $0x10] sm:$0xf] %vm974, %v850
  %980 = vst.msk [vmem:[%s3 + $0x14] sm:$0xf] %vm974, %v851
  %981 = vst.msk [vmem:[%s3 + $0x18] sm:$0xf] %vm974, %v852
  %982 = vst.msk [vmem:[%s3 + $0x1c] sm:$0xf] %vm974, %v853
  %983 = vst.msk [vmem:[%s3 + $0x20] sm:$0xf] %vm974, %v854
  %984 = vst.msk [vmem:[%s3 + $0x24] sm:$0xf] %vm974, %v855
  %985 = vst.msk [vmem:[%s3 + $0x28] sm:$0xf] %vm974, %v856
  %986 = vst.msk [vmem:[%s3 + $0x2c] sm:$0xf] %vm974, %v857
  %987 = vst.msk [vmem:[%s3 + $0x30] sm:$0xf] %vm974, %v858
  %988 = vst.msk [vmem:[%s3 + $0x34] sm:$0xf] %vm974, %v859
  %989 = vst.msk [vmem:[%s3 + $0x38] sm:$0xf] %vm974, %v860
  %990 = vst.msk [vmem:[%s3 + $0x3c] sm:$0xf] %vm974, %v861
  %991 = vst.msk [vmem:[%s3 + $0x40] sm:$0xf] %vm974, %v862
  %992 = vst.msk [vmem:[%s3 + $0x44] sm:$0xf] %vm974, %v863
  %993 = vst.msk [vmem:[%s3 + $0x48] sm:$0xf] %vm974, %v864
  %994 = vst.msk [vmem:[%s3 + $0x4c] sm:$0xf] %vm974, %v865
  %995 = vst.msk [vmem:[%s3 + $0x50] sm:$0xf] %vm974, %v866
  %996 = vst.msk [vmem:[%s3 + $0x54] sm:$0xf] %vm974, %v867
  %997 = vst.msk [vmem:[%s3 + $0x58] sm:$0xf] %vm974, %v868
  %998 = vst.msk [vmem:[%s3 + $0x5c] sm:$0xf] %vm974, %v869
  %999 = vst.msk [vmem:[%s3 + $0x60] sm:$0xf] %vm974, %v870
  %1000 = vst.msk [vmem:[%s3 + $0x64] sm:$0xf] %vm974, %v871
  %1001 = vst.msk [vmem:[%s3 + $0x68] sm:$0xf] %vm974, %v872
  %1002 = vst.msk [vmem:[%s3 + $0x6c] sm:$0xf] %vm974, %v873
  %1003 = vst.msk [vmem:[%s3 + $0x70] sm:$0xf] %vm974, %v874
  %1004 = vst.msk [vmem:[%s3 + $0x74] sm:$0xf] %vm974, %v875
  %1005 = vst.msk [vmem:[%s3 + $0x78] sm:$0xf] %vm974, %v876
  %1006 = vst.msk [vmem:[%s3 + $0x7c] sm:$0xf] %vm974, %v877
  %1007 = vst.msk [vmem:[%s3 + $0x80] sm:$0xf] %vm974, %v878
  %1008 = vst.msk [vmem:[%s3 + $0x84] sm:$0xf] %vm974, %v879
  %1009 = vst.msk [vmem:[%s3 + $0x88] sm:$0xf] %vm974, %v880
  %1010 = vst.msk [vmem:[%s3 + $0x8c] sm:$0xf] %vm974, %v881
  %1011 = vst.msk [vmem:[%s3 + $0x90] sm:$0xf] %vm974, %v882
  %1012 = vst.msk [vmem:[%s3 + $0x94] sm:$0xf] %vm974, %v883
  %1013 = vst.msk [vmem:[%s3 + $0x98] sm:$0xf] %vm974, %v884
  %1014 = vst.msk [vmem:[%s3 + $0x9c] sm:$0xf] %vm974, %v885
  %1015 = vst.msk [vmem:[%s3 + $0xa0] sm:$0xf] %vm974, %v886
  %1016 = vst.msk [vmem:[%s3 + $0xa4] sm:$0xf] %vm974, %v887
  %1017 = vst.msk [vmem:[%s3 + $0xa8] sm:$0xf] %vm974, %v888
  %1018 = vst.msk [vmem:[%s3 + $0xac] sm:$0xf] %vm974, %v889
  %1019 = vst.msk [vmem:[%s3 + $0xb0] sm:$0xf] %vm974, %v890
  %1020 = vst.msk [vmem:[%s3 + $0xb4] sm:$0xf] %vm974, %v891
  %1021 = vst.msk [vmem:[%s3 + $0xb8] sm:$0xf] %vm974, %v892
  %1022 = vst.msk [vmem:[%s3 + $0xbc] sm:$0xf] %vm974, %v893
  %1023 = vst.msk [vmem:[%s3 + $0xc0] sm:$0xf] %vm974, %v894
  %1024 = vst.msk [vmem:[%s3 + $0xc4] sm:$0xf] %vm974, %v895
  %1025 = vst.msk [vmem:[%s3 + $0xc8] sm:$0xf] %vm974, %v896
  %1026 = vst.msk [vmem:[%s3 + $0xcc] sm:$0xf] %vm974, %v897
  %1027 = vst.msk [vmem:[%s3 + $0xd0] sm:$0xf] %vm974, %v898
  %1028 = vst.msk [vmem:[%s3 + $0xd4] sm:$0xf] %vm974, %v899
  %1029 = vst.msk [vmem:[%s3 + $0xd8] sm:$0xf] %vm974, %v900
  %1030 = vst.msk [vmem:[%s3 + $0xdc] sm:$0xf] %vm974, %v901
  %1031 = vst.msk [vmem:[%s3 + $0xe0] sm:$0xf] %vm974, %v902
  %1032 = vst.msk [vmem:[%s3 + $0xe4] sm:$0xf] %vm974, %v903
  %1033 = vst.msk [vmem:[%s3 + $0xe8] sm:$0xf] %vm974, %v904
  %1034 = vst.msk [vmem:[%s3 + $0xec] sm:$0xf] %vm974, %v905
  %1035 = vst.msk [vmem:[%s3 + $0xf0] sm:$0xf] %vm974, %v906
  %1036 = vst.msk [vmem:[%s3 + $0xf4] sm:$0xf] %vm974, %v907
  %1037 = vst.msk [vmem:[%s3 + $0xf8] sm:$0xf] %vm974, %v908
  %1038 = vst.msk [vmem:[%s3 + $0xfc] sm:$0xf] %vm974, %v909
  // Predicated region
  $region14: #{one_stage_forward.6} parent=0 // pred_check
    _
  $region15: #{one_stage_forward.6} parent=0 // pred_check_branch
    %1040 = sbr.rel (0) target = $region17
  $region16: #{one_stage_forward.6} parent=0 // pred_region
    _
  $region17: #{one_stage_forward.6} parent=0 // pred_fallthru
    _
  // Predicated region
  $region18: #{one_stage_forward.6} parent=0 // pred_check
    _
  $region19: #{one_stage_forward.6} parent=0 // pred_check_branch
    %1042 = sbr.rel (0) target = $region21
  $region20: #{one_stage_forward.6} parent=0 // pred_region
    _
  $region21: #{one_stage_forward.6} parent=0 // pred_fallthru
    _

// kernel: one_stage_forward.7
$region0: #{one_stage_forward.7}
  #allocation0 [shape = 'u32[]', space=smem, size = 0x4, offset = 0x4, fixed_abs, tag = 'smem constant byte address 0x4 - core index']
  #allocation1 [shape = 'u32[144,128]{1,0:T(1,128)}', space=vmem, size = 0x12000, scoped, tag = 'internal scratch']
  %s0 = inlined_call_operand.vmem [shape: bf16[128,144], index: 0, kind: input, shape index: {}]
  %s1 = inlined_call_operand.vmem [shape: bf16[144,24], index: 1, kind: input, shape index: {}]
  %s2 = inlined_call_operand.vmem [shape: f32[1,24], index: 2, kind: input, shape index: {}]
  %s3 = inlined_call_operand.vmem [shape: bf16[128,24], index: 3, kind: output, shape index: {}]
  %s4 = sld [smem:[#allocation0]]
  $region22: #{one_stage_forward.7} parent=0
    _
  %s6 = ssub.s32 1, %s4
  %s7 = scalar_select 0, %s6, %s4
  // Predicated region
  $region2: #{one_stage_forward.7} parent=0 // pred_check
    _
  $region3: #{one_stage_forward.7} parent=0 // pred_check_branch
    %9 = sbr.rel (0) target = $region5
  $region4: #{one_stage_forward.7} parent=0 // pred_region
    _
  $region5: #{one_stage_forward.7} parent=0 // pred_fallthru
    _
  // Predicated region
  $region6: #{one_stage_forward.7} parent=0 // pred_check
    _
  $region7: #{one_stage_forward.7} parent=0 // pred_check_branch
    %11 = sbr.rel (0) target = $region9
  $region8: #{one_stage_forward.7} parent=0 // pred_region
    _
  $region9: #{one_stage_forward.7} parent=0 // pred_fallthru
    _
  // Predicated region
  $region10: #{one_stage_forward.7} parent=0 // pred_check
    _
  $region11: #{one_stage_forward.7} parent=0 // pred_check_branch
    %13 = sbr.rel (0) target = $region13
  $region12: #{one_stage_forward.7} parent=0 // pred_region
    _
  $region13: #{one_stage_forward.7} parent=0 // pred_fallthru
    _
  %v15 = vld [vmem:[%s0] sm:$0xff]
  %v16 = vld [vmem:[%s0 + $0x8] sm:$0xff]
  %v17 = vld [vmem:[%s0 + $0x10] sm:$0xff]
  %v18 = vld [vmem:[%s0 + $0x18] sm:$0xff]
  %v19 = vld [vmem:[%s0 + $0x20] sm:$0xff]
  %v20 = vld [vmem:[%s0 + $0x28] sm:$0xff]
  %v21 = vld [vmem:[%s0 + $0x30] sm:$0xff]
  %v22 = vld [vmem:[%s0 + $0x38] sm:$0xff]
  %v23 = vld [vmem:[%s0 + $0x40] sm:$0xff]
  %v24 = vld [vmem:[%s0 + $0x48] sm:$0xff]
  %v25 = vld [vmem:[%s0 + $0x50] sm:$0xff]
  %v26 = vld [vmem:[%s0 + $0x58] sm:$0xff]
  %v27 = vld [vmem:[%s0 + $0x60] sm:$0xff]
  %v28 = vld [vmem:[%s0 + $0x68] sm:$0xff]
  %v29 = vld [vmem:[%s0 + $0x70] sm:$0xff]
  %v30 = vld [vmem:[%s0 + $0x78] sm:$0xff]
  %v31 = vld [vmem:[%s1] sm:$0xf]
  %v32 = vld [vmem:[%s1 + $0x4] sm:$0xf]
  %v33 = vld [vmem:[%s1 + $0x8] sm:$0xf]
  %v34 = vld [vmem:[%s1 + $0xc] sm:$0xf]
  %v35 = vld [vmem:[%s1 + $0x10] sm:$0xf]
  %v36 = vld [vmem:[%s1 + $0x14] sm:$0xf]
  %v37 = vld [vmem:[%s1 + $0x18] sm:$0xf]
  %v38 = vld [vmem:[%s1 + $0x1c] sm:$0xf]
  %v39 = vld [vmem:[%s1 + $0x20] sm:$0xf]
  %v40 = vld [vmem:[%s1 + $0x24] sm:$0xf]
  %v41 = vld [vmem:[%s1 + $0x28] sm:$0xf]
  %v42 = vld [vmem:[%s1 + $0x2c] sm:$0xf]
  %v43 = vld [vmem:[%s1 + $0x30] sm:$0xf]
  %v44 = vld [vmem:[%s1 + $0x34] sm:$0xf]
  %v45 = vld [vmem:[%s1 + $0x38] sm:$0xf]
  %v46 = vld [vmem:[%s1 + $0x3c] sm:$0xf]
  %v47 = vld [vmem:[%s1 + $0x40] sm:$0xf]
  %v48 = vld [vmem:[%s1 + $0x44] sm:$0xf]
  %v49 = vld [vmem:[%s2] sm:$0x1]
  %v51 = vlaneseq
  %v52 = vshrl.u32 %v51, 7
  %v53 = vsub.s32 0, %v52
  %v54 = vrot.slane %v49, %v53
  %v72 = vunpack.c.l.b16 %v15
  %v73 = vunpack.c.h.b16 %v15
  %v74 = vunpack.c.l.b16 %v16
  %v75 = vunpack.c.h.b16 %v16
  %v76 = vunpack.c.l.b16 %v17
  %v77 = vunpack.c.h.b16 %v17
  %v78 = vunpack.c.l.b16 %v18
  %v79 = vunpack.c.h.b16 %v18
  %v80 = vunpack.c.l.b16 %v19
  %v81 = vunpack.c.h.b16 %v19
  %v82 = vunpack.c.l.b16 %v20
  %v83 = vunpack.c.h.b16 %v20
  %v84 = vunpack.c.l.b16 %v21
  %v85 = vunpack.c.h.b16 %v21
  %v86 = vunpack.c.l.b16 %v22
  %v87 = vunpack.c.h.b16 %v22
  %v88 = vunpack.c.l.b16 %v23
  %v89 = vunpack.c.h.b16 %v23
  %v90 = vunpack.c.l.b16 %v24
  %v91 = vunpack.c.h.b16 %v24
  %v92 = vunpack.c.l.b16 %v25
  %v93 = vunpack.c.h.b16 %v25
  %v94 = vunpack.c.l.b16 %v26
  %v95 = vunpack.c.h.b16 %v26
  %v96 = vunpack.c.l.b16 %v27
  %v97 = vunpack.c.h.b16 %v27
  %v98 = vunpack.c.l.b16 %v28
  %v99 = vunpack.c.h.b16 %v28
  %v100 = vunpack.c.l.b16 %v29
  %v101 = vunpack.c.h.b16 %v29
  %v102 = vunpack.c.l.b16 %v30
  %v103 = vunpack.c.h.b16 %v30
  %v104 = vpack.c.b16 %v74, %v72
  %v105 = vpack.c.b16 %v75, %v73
  %v106 = vpack.c.b16 %v78, %v76
  %v107 = vpack.c.b16 %v79, %v77
  %v108 = vpack.c.b16 %v82, %v80
  %v109 = vpack.c.b16 %v83, %v81
  %v110 = vpack.c.b16 %v86, %v84
  %v111 = vpack.c.b16 %v87, %v85
  %v112 = vpack.c.b16 %v90, %v88
  %v113 = vpack.c.b16 %v91, %v89
  %v114 = vpack.c.b16 %v94, %v92
  %v115 = vpack.c.b16 %v95, %v93
  %v116 = vpack.c.b16 %v98, %v96
  %v117 = vpack.c.b16 %v99, %v97
  %v118 = vpack.c.b16 %v102, %v100
  %v119 = vpack.c.b16 %v103, %v101
  %v146 = vunpack.c.l.b16 %v31
  %v147 = vunpack.c.l.b16 %v32
  %v148 = vunpack.c.l.b16 %v33
  %v149 = vunpack.c.l.b16 %v34
  %v150 = vunpack.c.l.b16 %v35
  %v151 = vunpack.c.l.b16 %v36
  %v152 = vunpack.c.l.b16 %v37
  %v153 = vunpack.c.l.b16 %v38
  %v154 = vunpack.c.l.b16 %v39
  %v155 = vunpack.c.l.b16 %v40
  %v156 = vunpack.c.l.b16 %v41
  %v157 = vunpack.c.l.b16 %v42
  %v158 = vunpack.c.l.b16 %v43
  %v159 = vunpack.c.l.b16 %v44
  %v160 = vunpack.c.l.b16 %v45
  %v161 = vunpack.c.l.b16 %v46
  %v162 = vunpack.c.l.b16 %v47
  %v163 = vunpack.c.l.b16 %v48
  %v164 = vpack.c.b16 %v147, %v146
  %v165 = vpack.c.b16 %v149, %v148
  %v166 = vpack.c.b16 %v151, %v150
  %v167 = vpack.c.b16 %v153, %v152
  %v168 = vpack.c.b16 %v155, %v154
  %v169 = vpack.c.b16 %v157, %v156
  %v170 = vpack.c.b16 %v159, %v158
  %v171 = vpack.c.b16 %v161, %v160
  %v172 = vpack.c.b16 %v163, %v162
  %vm182 = vcmask 130048
  %v184 = vsel %vm182, %v105, 0
  %v187 = vsel %vm182, %v107, 0
  %v190 = vsel %vm182, %v109, 0
  %v193 = vsel %vm182, %v111, 0
  %v196 = vsel %vm182, %v113, 0
  %v199 = vsel %vm182, %v115, 0
  %v202 = vsel %vm182, %v117, 0
  %v205 = vsel %vm182, %v119, 0
  %207 = vmatprep.subr.bf16.mxu0 0
  %208 = vmatpush1.bf16.msra.mxu0 %v164
  %209 = vmatprep.subr.bf16.mxu0 0
  %210 = vmatpush1.bf16.msra.mxu0 %v165
  %211 = vmatprep.subr.bf16.mxu0 0
  %212 = vmatpush1.bf16.msra.mxu0 %v166
  %213 = vmatprep.subr.bf16.mxu0 0
  %214 = vmatpush1.bf16.msra.mxu0 %v167
  %215 = vmatprep.subr.bf16.mxu0 0
  %216 = vmatpush1.bf16.msra.mxu0 %v168
  %217 = vmatprep.subr.bf16.mxu0 0
  %218 = vmatpush1.bf16.msra.mxu0 %v169
  %219 = vmatprep.subr.bf16.mxu0 0
  %220 = vmatpush1.bf16.msra.mxu0 %v170
  %221 = vmatprep.subr.bf16.mxu0 0
  %222 = vmatpush1.bf16.msra.mxu0 %v171
  %223 = vmatprep.subr.bf16.mxu0 0
  %224 = vmatpush1.bf16.msra.mxu0 %v172
  %225 = vmatprep.subr.bf16.mxu0 0
  %226 = vmatpush1.bf16.msra.mxu0 0
  %227 = vmatprep.subr.bf16.mxu0 0
  %228 = vmatpush1.bf16.msra.mxu0 0
  %229 = vmatprep.subr.bf16.mxu0 0
  %230 = vmatpush1.bf16.msra.mxu0 0
  %231 = vmatprep.subr.bf16.mxu0 0
  %232 = vmatpush1.bf16.msra.mxu0 0
  %233 = vmatprep.subr.bf16.mxu0 0
  %234 = vmatpush1.bf16.msra.mxu0 0
  %235 = vmatprep.subr.bf16.mxu0 0
  %236 = vmatpush1.bf16.msra.mxu0 0
  %237 = vmatprep.subr.bf16.mxu0 0
  %238 = vmatpush1.bf16.msra.mxu0 0
  %239 = vmatprep.mubr.bf16.mxu0 %v184
  %240 = vmatmul.mubr.bf16.gmra.mrb[0].mxu0 %v104
  %v241 = vpop.f32.mrb[0].mxu0
  %v242 = vadd.f32 %v54, %v241
  %v243 = vpop.f32.mrb[0].mxu0
  %v244 = vpop.f32.mrb[0].mxu0
  %v245 = vadd.f32 %v54, %v244
  %v246 = vpop.f32.mrb[0].mxu0
  %247 = vmatprep.mubr.bf16.mxu0 %v187
  %248 = vmatmul.mubr.bf16.gmra.mrb[0].mxu0 %v106
  %v249 = vpop.f32.mrb[0].mxu0
  %v250 = vadd.f32 %v54, %v249
  %v251 = vpop.f32.mrb[0].mxu0
  %v252 = vpop.f32.mrb[0].mxu0
  %v253 = vadd.f32 %v54, %v252
  %v254 = vpop.f32.mrb[0].mxu0
  %255 = vmatprep.mubr.bf16.mxu0 %v190
  %256 = vmatmul.mubr.bf16.gmra.mrb[0].mxu0 %v108
  %v257 = vpop.f32.mrb[0].mxu0
  %v258 = vadd.f32 %v54, %v257
  %v259 = vpop.f32.mrb[0].mxu0
  %v260 = vpop.f32.mrb[0].mxu0
  %v261 = vadd.f32 %v54, %v260
  %v262 = vpop.f32.mrb[0].mxu0
  %263 = vmatprep.mubr.bf16.mxu0 %v193
  %264 = vmatmul.mubr.bf16.gmra.mrb[0].mxu0 %v110
  %v265 = vpop.f32.mrb[0].mxu0
  %v266 = vadd.f32 %v54, %v265
  %v267 = vpop.f32.mrb[0].mxu0
  %v268 = vpop.f32.mrb[0].mxu0
  %v269 = vadd.f32 %v54, %v268
  %v270 = vpop.f32.mrb[0].mxu0
  %271 = vmatprep.mubr.bf16.mxu0 %v196
  %272 = vmatmul.mubr.bf16.gmra.mrb[0].mxu0 %v112
  %v273 = vpop.f32.mrb[0].mxu0
  %v274 = vadd.f32 %v54, %v273
  %v275 = vpop.f32.mrb[0].mxu0
  %v276 = vpop.f32.mrb[0].mxu0
  %v277 = vadd.f32 %v54, %v276
  %v278 = vpop.f32.mrb[0].mxu0
  %279 = vmatprep.mubr.bf16.mxu0 %v199
  %280 = vmatmul.mubr.bf16.gmra.mrb[0].mxu0 %v114
  %v281 = vpop.f32.mrb[0].mxu0
  %v282 = vadd.f32 %v54, %v281
  %v283 = vpop.f32.mrb[0].mxu0
  %v284 = vpop.f32.mrb[0].mxu0
  %v285 = vadd.f32 %v54, %v284
  %v286 = vpop.f32.mrb[0].mxu0
  %287 = vmatprep.mubr.bf16.mxu0 %v202
  %288 = vmatmul.mubr.bf16.gmra.mrb[0].mxu0 %v116
  %v289 = vpop.f32.mrb[0].mxu0
  %v290 = vadd.f32 %v54, %v289
  %v291 = vpop.f32.mrb[0].mxu0
  %v292 = vpop.f32.mrb[0].mxu0
  %v293 = vadd.f32 %v54, %v292
  %v294 = vpop.f32.mrb[0].mxu0
  %295 = vmatprep.mubr.bf16.mxu0 %v205
  %296 = vmatmul.mubr.bf16.gmra.mrb[0].mxu0 %v118
  %v297 = vpop.f32.mrb[0].mxu0
  %v298 = vadd.f32 %v54, %v297
  %v299 = vpop.f32.mrb[0].mxu0
  %v300 = vpop.f32.mrb[0].mxu0
  %v301 = vadd.f32 %v54, %v300
  %v302 = vpop.f32.mrb[0].mxu0
  %303 = vdwg.mxu0
  %v304 = vmax.f32 %v242, 0.0
  %v305 = vmax.f32 %v245, 0.0
  %v306 = vmax.f32 %v250, 0.0
  %v307 = vmax.f32 %v253, 0.0
  %v308 = vmax.f32 %v258, 0.0
  %v309 = vmax.f32 %v261, 0.0
  %v310 = vmax.f32 %v266, 0.0
  %v311 = vmax.f32 %v269, 0.0
  %v312 = vmax.f32 %v274, 0.0
  %v313 = vmax.f32 %v277, 0.0
  %v314 = vmax.f32 %v282, 0.0
  %v315 = vmax.f32 %v285, 0.0
  %v316 = vmax.f32 %v290, 0.0
  %v317 = vmax.f32 %v293, 0.0
  %v318 = vmax.f32 %v298, 0.0
  %v319 = vmax.f32 %v301, 0.0
  %v320 = vpack.c.bf16 %v305, %v304
  %v321 = vpack.c.bf16 %v307, %v306
  %v322 = vpack.c.bf16 %v309, %v308
  %v323 = vpack.c.bf16 %v311, %v310
  %v324 = vpack.c.bf16 %v313, %v312
  %v325 = vpack.c.bf16 %v315, %v314
  %v326 = vpack.c.bf16 %v317, %v316
  %v327 = vpack.c.bf16 %v319, %v318
  %v336 = vunpack.c.l.b16 %v320
  %v337 = vunpack.c.h.b16 %v320
  %v338 = vunpack.c.l.b16 %v321
  %v339 = vunpack.c.h.b16 %v321
  %v340 = vunpack.c.l.b16 %v322
  %v341 = vunpack.c.h.b16 %v322
  %v342 = vunpack.c.l.b16 %v323
  %v343 = vunpack.c.h.b16 %v323
  %v344 = vunpack.c.l.b16 %v324
  %v345 = vunpack.c.h.b16 %v324
  %v346 = vunpack.c.l.b16 %v325
  %v347 = vunpack.c.h.b16 %v325
  %v348 = vunpack.c.l.b16 %v326
  %v349 = vunpack.c.h.b16 %v326
  %v350 = vunpack.c.l.b16 %v327
  %v351 = vunpack.c.h.b16 %v327
  %v352 = vpack.c.b16 %v336, %v336
  %v353 = vpack.c.b16 %v337, %v337
  %v354 = vpack.c.b16 %v338, %v338
  %v355 = vpack.c.b16 %v339, %v339
  %v356 = vpack.c.b16 %v340, %v340
  %v357 = vpack.c.b16 %v341, %v341
  %v358 = vpack.c.b16 %v342, %v342
  %v359 = vpack.c.b16 %v343, %v343
  %v360 = vpack.c.b16 %v344, %v344
  %v361 = vpack.c.b16 %v345, %v345
  %v362 = vpack.c.b16 %v346, %v346
  %v363 = vpack.c.b16 %v347, %v347
  %v364 = vpack.c.b16 %v348, %v348
  %v365 = vpack.c.b16 %v349, %v349
  %v366 = vpack.c.b16 %v350, %v350
  %v367 = vpack.c.b16 %v351, %v351
  %vm384 = vcmask 191488
  %385 = vst.msk [vmem:[%s3] sm:$0xf] %vm384, %v352
  %386 = vst.msk [vmem:[%s3 + $0x4] sm:$0xf] %vm384, %v353
  %387 = vst.msk [vmem:[%s3 + $0x8] sm:$0xf] %vm384, %v354
  %388 = vst.msk [vmem:[%s3 + $0xc] sm:$0xf] %vm384, %v355
  %389 = vst.msk [vmem:[%s3 + $0x10] sm:$0xf] %vm384, %v356
  %390 = vst.msk [vmem:[%s3 + $0x14] sm:$0xf] %vm384, %v357
  %391 = vst.msk [vmem:[%s3 + $0x18] sm:$0xf] %vm384, %v358
  %392 = vst.msk [vmem:[%s3 + $0x1c] sm:$0xf] %vm384, %v359
  %393 = vst.msk [vmem:[%s3 + $0x20] sm:$0xf] %vm384, %v360
  %394 = vst.msk [vmem:[%s3 + $0x24] sm:$0xf] %vm384, %v361
  %395 = vst.msk [vmem:[%s3 + $0x28] sm:$0xf] %vm384, %v362
  %396 = vst.msk [vmem:[%s3 + $0x2c] sm:$0xf] %vm384, %v363
  %397 = vst.msk [vmem:[%s3 + $0x30] sm:$0xf] %vm384, %v364
  %398 = vst.msk [vmem:[%s3 + $0x34] sm:$0xf] %vm384, %v365
  %399 = vst.msk [vmem:[%s3 + $0x38] sm:$0xf] %vm384, %v366
  %400 = vst.msk [vmem:[%s3 + $0x3c] sm:$0xf] %vm384, %v367
  // Predicated region
  $region14: #{one_stage_forward.7} parent=0 // pred_check
    _
  $region15: #{one_stage_forward.7} parent=0 // pred_check_branch
    %402 = sbr.rel (0) target = $region17
  $region16: #{one_stage_forward.7} parent=0 // pred_region
    _
  $region17: #{one_stage_forward.7} parent=0 // pred_fallthru
    _
  // Predicated region
  $region18: #{one_stage_forward.7} parent=0 // pred_check
    _
  $region19: #{one_stage_forward.7} parent=0 // pred_check_branch
    %404 = sbr.rel (0) target = $region21
  $region20: #{one_stage_forward.7} parent=0 // pred_region
    _
  $region21: #{one_stage_forward.7} parent=0 // pred_fallthru
    _

// kernel: one_stage_forward.8
$region0: #{one_stage_forward.8}
  #allocation0 [shape = 'u32[]', space=smem, size = 0x4, offset = 0x4, fixed_abs, tag = 'smem constant byte address 0x4 - core index']
  #allocation1 [shape = 'u32[144,128]{1,0:T(1,128)}', space=vmem, size = 0x12000, scoped, tag = 'internal scratch']
  %s0 = inlined_call_operand.vmem [shape: bf16[32,216], index: 0, kind: input, shape index: {}]
  %s1 = inlined_call_operand.vmem [shape: bf16[216,32], index: 1, kind: input, shape index: {}]
  %s2 = inlined_call_operand.vmem [shape: f32[1,32], index: 2, kind: input, shape index: {}]
  %s3 = inlined_call_operand.vmem [shape: bf16[32,32], index: 3, kind: output, shape index: {}]
  %s4 = sld [smem:[#allocation0]]
  $region22: #{one_stage_forward.8} parent=0
    _
  %s6 = ssub.s32 1, %s4
  %s7 = scalar_select 0, %s6, %s4
  // Predicated region
  $region2: #{one_stage_forward.8} parent=0 // pred_check
    _
  $region3: #{one_stage_forward.8} parent=0 // pred_check_branch
    %9 = sbr.rel (0) target = $region5
  $region4: #{one_stage_forward.8} parent=0 // pred_region
    _
  $region5: #{one_stage_forward.8} parent=0 // pred_fallthru
    _
  // Predicated region
  $region6: #{one_stage_forward.8} parent=0 // pred_check
    _
  $region7: #{one_stage_forward.8} parent=0 // pred_check_branch
    %11 = sbr.rel (0) target = $region9
  $region8: #{one_stage_forward.8} parent=0 // pred_region
    _
  $region9: #{one_stage_forward.8} parent=0 // pred_fallthru
    _
  // Predicated region
  $region10: #{one_stage_forward.8} parent=0 // pred_check
    _
  $region11: #{one_stage_forward.8} parent=0 // pred_check_branch
    %13 = sbr.rel (0) target = $region13
  $region12: #{one_stage_forward.8} parent=0 // pred_region
    _
  $region13: #{one_stage_forward.8} parent=0 // pred_fallthru
    _
  %v15 = vld [vmem:[%s0] sm:$0xff]
  %v16 = vld [vmem:[%s0 + $0x8] sm:$0xff]
  %v17 = vld [vmem:[%s0 + $0x10] sm:$0xff]
  %v18 = vld [vmem:[%s0 + $0x18] sm:$0xff]
  %v19 = vld [vmem:[%s1] sm:$0xf]
  %v20 = vld [vmem:[%s1 + $0x4] sm:$0xf]
  %v21 = vld [vmem:[%s1 + $0x8] sm:$0xf]
  %v22 = vld [vmem:[%s1 + $0xc] sm:$0xf]
  %v23 = vld [vmem:[%s1 + $0x10] sm:$0xf]
  %v24 = vld [vmem:[%s1 + $0x14] sm:$0xf]
  %v25 = vld [vmem:[%s1 + $0x18] sm:$0xf]
  %v26 = vld [vmem:[%s1 + $0x1c] sm:$0xf]
  %v27 = vld [vmem:[%s1 + $0x20] sm:$0xf]
  %v28 = vld [vmem:[%s1 + $0x24] sm:$0xf]
  %v29 = vld [vmem:[%s1 + $0x28] sm:$0xf]
  %v30 = vld [vmem:[%s1 + $0x2c] sm:$0xf]
  %v31 = vld [vmem:[%s1 + $0x30] sm:$0xf]
  %v32 = vld [vmem:[%s1 + $0x34] sm:$0xf]
  %v33 = vld [vmem:[%s1 + $0x38] sm:$0xf]
  %v34 = vld [vmem:[%s1 + $0x3c] sm:$0xf]
  %v35 = vld [vmem:[%s1 + $0x40] sm:$0xf]
  %v36 = vld [vmem:[%s1 + $0x44] sm:$0xf]
  %v37 = vld [vmem:[%s1 + $0x48] sm:$0xf]
  %v38 = vld [vmem:[%s1 + $0x4c] sm:$0xf]
  %v39 = vld [vmem:[%s1 + $0x50] sm:$0xf]
  %v40 = vld [vmem:[%s1 + $0x54] sm:$0xf]
  %v41 = vld [vmem:[%s1 + $0x58] sm:$0xf]
  %v42 = vld [vmem:[%s1 + $0x5c] sm:$0xf]
  %v43 = vld [vmem:[%s1 + $0x60] sm:$0xf]
  %v44 = vld [vmem:[%s1 + $0x64] sm:$0xf]
  %v45 = vld [vmem:[%s1 + $0x68] sm:$0xf]
  %v46 = vld [vmem:[%s2] sm:$0x1]
  %v48 = vlaneseq
  %v49 = vshrl.u32 %v48, 7
  %v50 = vsub.s32 0, %v49
  %v51 = vrot.slane %v46, %v50
  %v57 = vunpack.c.l.b16 %v15
  %v58 = vunpack.c.h.b16 %v15
  %v59 = vunpack.c.l.b16 %v16
  %v60 = vunpack.c.h.b16 %v16
  %v61 = vunpack.c.l.b16 %v17
  %v62 = vunpack.c.h.b16 %v17
  %v63 = vunpack.c.l.b16 %v18
  %v64 = vunpack.c.h.b16 %v18
  %v65 = vpack.c.b16 %v59, %v57
  %v66 = vpack.c.b16 %v60, %v58
  %v67 = vpack.c.b16 %v63, %v61
  %v68 = vpack.c.b16 %v64, %v62
  %v98 = vunpack.c.l.b16 %v19
  %v99 = vunpack.c.l.b16 %v20
  %v100 = vunpack.c.l.b16 %v21
  %v101 = vunpack.c.l.b16 %v22
  %v102 = vunpack.c.l.b16 %v23
  %v103 = vunpack.c.l.b16 %v24
  %v104 = vunpack.c.l.b16 %v25
  %v105 = vunpack.c.l.b16 %v26
  %v106 = vunpack.c.l.b16 %v27
  %v107 = vunpack.c.l.b16 %v28
  %v108 = vunpack.c.l.b16 %v29
  %v109 = vunpack.c.l.b16 %v30
  %v110 = vunpack.c.l.b16 %v31
  %v111 = vunpack.c.l.b16 %v32
  %v112 = vunpack.c.l.b16 %v33
  %v113 = vunpack.c.l.b16 %v34
  %v114 = vunpack.c.l.b16 %v35
  %v115 = vunpack.c.l.b16 %v36
  %v116 = vunpack.c.l.b16 %v37
  %v117 = vunpack.c.l.b16 %v38
  %v118 = vunpack.c.l.b16 %v39
  %v119 = vunpack.c.l.b16 %v40
  %v120 = vunpack.c.l.b16 %v41
  %v121 = vunpack.c.l.b16 %v42
  %v122 = vunpack.c.l.b16 %v43
  %v123 = vunpack.c.l.b16 %v44
  %v124 = vunpack.c.l.b16 %v45
  %v125 = vpack.c.b16 %v99, %v98
  %v126 = vpack.c.b16 %v101, %v100
  %v127 = vpack.c.b16 %v103, %v102
  %v128 = vpack.c.b16 %v105, %v104
  %v129 = vpack.c.b16 %v107, %v106
  %v130 = vpack.c.b16 %v109, %v108
  %v131 = vpack.c.b16 %v111, %v110
  %v132 = vpack.c.b16 %v113, %v112
  %v133 = vpack.c.b16 %v115, %v114
  %v134 = vpack.c.b16 %v117, %v116
  %v135 = vpack.c.b16 %v119, %v118
  %v136 = vpack.c.b16 %v121, %v120
  %v137 = vpack.c.b16 %v123, %v122
  %v138 = vpack.c.b16 %v124, %v124
  %vm152 = vcmask 719872
  %v154 = vsel %vm152, %v66, 0
  %v157 = vsel %vm152, %v68, 0
  %vm159 = vcmask 1043456
  %v161 = vsel %vm159, %v138, 0
  %163 = vmatprep.subr.bf16.mxu0 0
  %164 = vmatpush1.bf16.msra.mxu0 %v125
  %165 = vmatprep.subr.bf16.mxu0 0
  %166 = vmatpush1.bf16.msra.mxu0 %v126
  %167 = vmatprep.subr.bf16.mxu0 0
  %168 = vmatpush1.bf16.msra.mxu0 %v127
  %169 = vmatprep.subr.bf16.mxu0 0
  %170 = vmatpush1.bf16.msra.mxu0 %v128
  %171 = vmatprep.subr.bf16.mxu0 0
  %172 = vmatpush1.bf16.msra.mxu0 %v129
  %173 = vmatprep.subr.bf16.mxu0 0
  %174 = vmatpush1.bf16.msra.mxu0 %v130
  %175 = vmatprep.subr.bf16.mxu0 0
  %176 = vmatpush1.bf16.msra.mxu0 %v131
  %177 = vmatprep.subr.bf16.mxu0 0
  %178 = vmatpush1.bf16.msra.mxu0 %v132
  %179 = vmatprep.subr.bf16.mxu0 0
  %180 = vmatpush1.bf16.msra.mxu0 %v133
  %181 = vmatprep.subr.bf16.mxu0 0
  %182 = vmatpush1.bf16.msra.mxu0 %v134
  %183 = vmatprep.subr.bf16.mxu0 0
  %184 = vmatpush1.bf16.msra.mxu0 %v135
  %185 = vmatprep.subr.bf16.mxu0 0
  %186 = vmatpush1.bf16.msra.mxu0 %v136
  %187 = vmatprep.subr.bf16.mxu0 0
  %188 = vmatpush1.bf16.msra.mxu0 %v137
  %189 = vmatprep.subr.bf16.mxu0 0
  %190 = vmatpush1.bf16.msra.mxu0 %v161
  %191 = vmatprep.subr.bf16.mxu0 0
  %192 = vmatpush1.bf16.msra.mxu0 0
  %193 = vmatprep.subr.bf16.mxu0 0
  %194 = vmatpush1.bf16.msra.mxu0 0
  %195 = vmatprep.mubr.bf16.mxu0 %v154
  %196 = vmatmul.mubr.bf16.gmra.mrb[0].mxu0 %v65
  %v197 = vpop.f32.mrb[0].mxu0
  %v198 = vadd.f32 %v51, %v197
  %v199 = vpop.f32.mrb[0].mxu0
  %v200 = vpop.f32.mrb[0].mxu0
  %v201 = vadd.f32 %v51, %v200
  %v202 = vpop.f32.mrb[0].mxu0
  %203 = vmatprep.mubr.bf16.mxu0 %v157
  %204 = vmatmul.mubr.bf16.gmra.mrb[0].mxu0 %v67
  %v205 = vpop.f32.mrb[0].mxu0
  %v206 = vadd.f32 %v51, %v205
  %v207 = vpop.f32.mrb[0].mxu0
  %v208 = vpop.f32.mrb[0].mxu0
  %v209 = vadd.f32 %v51, %v208
  %v210 = vpop.f32.mrb[0].mxu0
  %211 = vdwg.mxu0
  %v212 = vmax.f32 %v198, 0.0
  %v213 = vmax.f32 %v201, 0.0
  %v214 = vmax.f32 %v206, 0.0
  %v215 = vmax.f32 %v209, 0.0
  %v216 = vpack.c.bf16 %v213, %v212
  %v217 = vpack.c.bf16 %v215, %v214
  %v220 = vunpack.c.l.b16 %v216
  %v221 = vunpack.c.h.b16 %v216
  %v222 = vunpack.c.l.b16 %v217
  %v223 = vunpack.c.h.b16 %v217
  %v224 = vpack.c.b16 %v220, %v220
  %v225 = vpack.c.b16 %v221, %v221
  %v226 = vpack.c.b16 %v222, %v222
  %v227 = vpack.c.b16 %v223, %v223
  %vm232 = vcmask 257024
  %233 = vst.msk [vmem:[%s3] sm:$0xf] %vm232, %v224
  %234 = vst.msk [vmem:[%s3 + $0x4] sm:$0xf] %vm232, %v225
  %235 = vst.msk [vmem:[%s3 + $0x8] sm:$0xf] %vm232, %v226
  %236 = vst.msk [vmem:[%s3 + $0xc] sm:$0xf] %vm232, %v227
  // Predicated region
  $region14: #{one_stage_forward.8} parent=0 // pred_check
    _
  $region15: #{one_stage_forward.8} parent=0 // pred_check_branch
    %238 = sbr.rel (0) target = $region17
  $region16: #{one_stage_forward.8} parent=0 // pred_region
    _
  $region17: #{one_stage_forward.8} parent=0 // pred_fallthru
    _
  // Predicated region
  $region18: #{one_stage_forward.8} parent=0 // pred_check
    _
  $region19: #{one_stage_forward.8} parent=0 // pred_check_branch
    %240 = sbr.rel (0) target = $region21
  $region20: #{one_stage_forward.8} parent=0 // pred_region
    _
  $region21: #{one_stage_forward.8} parent=0 // pred_fallthru
    _

// kernel: one_stage_forward.9
$region0: #{one_stage_forward.9}
  #allocation0 [shape = 'u32[]', space=smem, size = 0x4, offset = 0x4, fixed_abs, tag = 'smem constant byte address 0x4 - core index']
  #allocation1 [shape = 'u32[144,128]{1,0:T(1,128)}', space=vmem, size = 0x12000, scoped, tag = 'internal scratch']
  %s0 = inlined_call_operand.vmem [shape: bf16[8,288], index: 0, kind: input, shape index: {}]
  %s1 = inlined_call_operand.vmem [shape: bf16[288,48], index: 1, kind: input, shape index: {}]
  %s2 = inlined_call_operand.vmem [shape: f32[1,48], index: 2, kind: input, shape index: {}]
  %s3 = inlined_call_operand.vmem [shape: bf16[8,48], index: 3, kind: output, shape index: {}]
  %s4 = sld [smem:[#allocation0]]
  $region22: #{one_stage_forward.9} parent=0
    _
  %s6 = ssub.s32 1, %s4
  %s7 = scalar_select 0, %s6, %s4
  // Predicated region
  $region2: #{one_stage_forward.9} parent=0 // pred_check
    _
  $region3: #{one_stage_forward.9} parent=0 // pred_check_branch
    %9 = sbr.rel (0) target = $region5
  $region4: #{one_stage_forward.9} parent=0 // pred_region
    _
  $region5: #{one_stage_forward.9} parent=0 // pred_fallthru
    _
  // Predicated region
  $region6: #{one_stage_forward.9} parent=0 // pred_check
    _
  $region7: #{one_stage_forward.9} parent=0 // pred_check_branch
    %11 = sbr.rel (0) target = $region9
  $region8: #{one_stage_forward.9} parent=0 // pred_region
    _
  $region9: #{one_stage_forward.9} parent=0 // pred_fallthru
    _
  // Predicated region
  $region10: #{one_stage_forward.9} parent=0 // pred_check
    _
  $region11: #{one_stage_forward.9} parent=0 // pred_check_branch
    %13 = sbr.rel (0) target = $region13
  $region12: #{one_stage_forward.9} parent=0 // pred_region
    _
  $region13: #{one_stage_forward.9} parent=0 // pred_fallthru
    _
  %v15 = vld [vmem:[%s0] sm:$0xff]
  %v16 = vld [vmem:[%s0 + $0x8] sm:$0xf]
  %v17 = vld [vmem:[%s1] sm:$0xf]
  %v18 = vld [vmem:[%s1 + $0x4] sm:$0xf]
  %v19 = vld [vmem:[%s1 + $0x8] sm:$0xf]
  %v20 = vld [vmem:[%s1 + $0xc] sm:$0xf]
  %v21 = vld [vmem:[%s1 + $0x10] sm:$0xf]
  %v22 = vld [vmem:[%s1 + $0x14] sm:$0xf]
  %v23 = vld [vmem:[%s1 + $0x18] sm:$0xf]
  %v24 = vld [vmem:[%s1 + $0x1c] sm:$0xf]
  %v25 = vld [vmem:[%s1 + $0x20] sm:$0xf]
  %v26 = vld [vmem:[%s1 + $0x24] sm:$0xf]
  %v27 = vld [vmem:[%s1 + $0x28] sm:$0xf]
  %v28 = vld [vmem:[%s1 + $0x2c] sm:$0xf]
  %v29 = vld [vmem:[%s1 + $0x30] sm:$0xf]
  %v30 = vld [vmem:[%s1 + $0x34] sm:$0xf]
  %v31 = vld [vmem:[%s1 + $0x38] sm:$0xf]
  %v32 = vld [vmem:[%s1 + $0x3c] sm:$0xf]
  %v33 = vld [vmem:[%s1 + $0x40] sm:$0xf]
  %v34 = vld [vmem:[%s1 + $0x44] sm:$0xf]
  %v35 = vld [vmem:[%s1 + $0x48] sm:$0xf]
  %v36 = vld [vmem:[%s1 + $0x4c] sm:$0xf]
  %v37 = vld [vmem:[%s1 + $0x50] sm:$0xf]
  %v38 = vld [vmem:[%s1 + $0x54] sm:$0xf]
  %v39 = vld [vmem:[%s1 + $0x58] sm:$0xf]
  %v40 = vld [vmem:[%s1 + $0x5c] sm:$0xf]
  %v41 = vld [vmem:[%s1 + $0x60] sm:$0xf]
  %v42 = vld [vmem:[%s1 + $0x64] sm:$0xf]
  %v43 = vld [vmem:[%s1 + $0x68] sm:$0xf]
  %v44 = vld [vmem:[%s1 + $0x6c] sm:$0xf]
  %v45 = vld [vmem:[%s1 + $0x70] sm:$0xf]
  %v46 = vld [vmem:[%s1 + $0x74] sm:$0xf]
  %v47 = vld [vmem:[%s1 + $0x78] sm:$0xf]
  %v48 = vld [vmem:[%s1 + $0x7c] sm:$0xf]
  %v49 = vld [vmem:[%s1 + $0x80] sm:$0xf]
  %v50 = vld [vmem:[%s1 + $0x84] sm:$0xf]
  %v51 = vld [vmem:[%s1 + $0x88] sm:$0xf]
  %v52 = vld [vmem:[%s1 + $0x8c] sm:$0xf]
  %v53 = vld [vmem:[%s2] sm:$0x1]
  %v55 = vlaneseq
  %v56 = vshrl.u32 %v55, 7
  %v57 = vsub.s32 0, %v56
  %v58 = vrot.slane %v53, %v57
  %v62 = vunpack.c.l.b16 %v15
  %v63 = vunpack.c.h.b16 %v15
  %v64 = vunpack.c.l.b16 %v16
  %v65 = vpack.c.b16 %v62, %v62
  %v66 = vpack.c.b16 %v63, %v63
  %v67 = vpack.c.b16 %v64, %v64
  %v106 = vunpack.c.l.b16 %v17
  %v107 = vunpack.c.l.b16 %v18
  %v108 = vunpack.c.l.b16 %v19
  %v109 = vunpack.c.l.b16 %v20
  %v110 = vunpack.c.l.b16 %v21
  %v111 = vunpack.c.l.b16 %v22
  %v112 = vunpack.c.l.b16 %v23
  %v113 = vunpack.c.l.b16 %v24
  %v114 = vunpack.c.l.b16 %v25
  %v115 = vunpack.c.l.b16 %v26
  %v116 = vunpack.c.l.b16 %v27
  %v117 = vunpack.c.l.b16 %v28
  %v118 = vunpack.c.l.b16 %v29
  %v119 = vunpack.c.l.b16 %v30
  %v120 = vunpack.c.l.b16 %v31
  %v121 = vunpack.c.l.b16 %v32
  %v122 = vunpack.c.l.b16 %v33
  %v123 = vunpack.c.l.b16 %v34
  %v124 = vunpack.c.l.b16 %v35
  %v125 = vunpack.c.l.b16 %v36
  %v126 = vunpack.c.l.b16 %v37
  %v127 = vunpack.c.l.b16 %v38
  %v128 = vunpack.c.l.b16 %v39
  %v129 = vunpack.c.l.b16 %v40
  %v130 = vunpack.c.l.b16 %v41
  %v131 = vunpack.c.l.b16 %v42
  %v132 = vunpack.c.l.b16 %v43
  %v133 = vunpack.c.l.b16 %v44
  %v134 = vunpack.c.l.b16 %v45
  %v135 = vunpack.c.l.b16 %v46
  %v136 = vunpack.c.l.b16 %v47
  %v137 = vunpack.c.l.b16 %v48
  %v138 = vunpack.c.l.b16 %v49
  %v139 = vunpack.c.l.b16 %v50
  %v140 = vunpack.c.l.b16 %v51
  %v141 = vunpack.c.l.b16 %v52
  %v142 = vpack.c.b16 %v107, %v106
  %v143 = vpack.c.b16 %v109, %v108
  %v144 = vpack.c.b16 %v111, %v110
  %v145 = vpack.c.b16 %v113, %v112
  %v146 = vpack.c.b16 %v115, %v114
  %v147 = vpack.c.b16 %v117, %v116
  %v148 = vpack.c.b16 %v119, %v118
  %v149 = vpack.c.b16 %v121, %v120
  %v150 = vpack.c.b16 %v123, %v122
  %v151 = vpack.c.b16 %v125, %v124
  %v152 = vpack.c.b16 %v127, %v126
  %v153 = vpack.c.b16 %v129, %v128
  %v154 = vpack.c.b16 %v131, %v130
  %v155 = vpack.c.b16 %v133, %v132
  %v156 = vpack.c.b16 %v135, %v134
  %v157 = vpack.c.b16 %v137, %v136
  %v158 = vpack.c.b16 %v139, %v138
  %v159 = vpack.c.b16 %v141, %v140
  %vm178 = vcmask 261120
  %v180 = vsel %vm178, %v67, 0
  %182 = vmatprep.subr.bf16.mxu0 0
  %183 = vmatpush1.bf16.msra.mxu0 %v142
  %184 = vmatprep.subr.bf16.mxu0 0
  %185 = vmatpush1.bf16.msra.mxu0 %v143
  %186 = vmatprep.subr.bf16.mxu0 0
  %187 = vmatpush1.bf16.msra.mxu0 %v144
  %188 = vmatprep.subr.bf16.mxu0 0
  %189 = vmatpush1.bf16.msra.mxu0 %v145
  %190 = vmatprep.subr.bf16.mxu0 0
  %191 = vmatpush1.bf16.msra.mxu0 %v146
  %192 = vmatprep.subr.bf16.mxu0 0
  %193 = vmatpush1.bf16.msra.mxu0 %v147
  %194 = vmatprep.subr.bf16.mxu0 0
  %195 = vmatpush1.bf16.msra.mxu0 %v148
  %196 = vmatprep.subr.bf16.mxu0 0
  %197 = vmatpush1.bf16.msra.mxu0 %v149
  %198 = vmatprep.subr.bf16.mxu0 0
  %199 = vmatpush1.bf16.msra.mxu0 %v150
  %200 = vmatprep.subr.bf16.mxu0 0
  %201 = vmatpush1.bf16.msra.mxu0 %v151
  %202 = vmatprep.subr.bf16.mxu0 0
  %203 = vmatpush1.bf16.msra.mxu0 %v152
  %204 = vmatprep.subr.bf16.mxu0 0
  %205 = vmatpush1.bf16.msra.mxu0 %v153
  %206 = vmatprep.subr.bf16.mxu0 0
  %207 = vmatpush1.bf16.msra.mxu0 %v154
  %208 = vmatprep.subr.bf16.mxu0 0
  %209 = vmatpush1.bf16.msra.mxu0 %v155
  %210 = vmatprep.subr.bf16.mxu0 0
  %211 = vmatpush1.bf16.msra.mxu0 %v156
  %212 = vmatprep.subr.bf16.mxu0 0
  %213 = vmatpush1.bf16.msra.mxu0 %v157
  %214 = vmatprep.mubr.bf16.mxu0 %v66
  %215 = vmatmul.mubr.bf16.gmra.mrb[0].mxu0 %v65
  %v216 = vpop.f32.mrb[0].mxu0
  %v217 = vadd.f32 %v58, %v216
  %v218 = vpop.f32.mrb[0].mxu0
  %v219 = vpop.f32.mrb[0].mxu0
  %v220 = vpop.f32.mrb[0].mxu0
  %221 = vdwg.mxu0
  %222 = vmatprep.subr.bf16.mxu0 0
  %223 = vmatpush1.bf16.msra.mxu0 %v158
  %224 = vmatprep.subr.bf16.mxu0 0
  %225 = vmatpush1.bf16.msra.mxu0 %v159
  %226 = vmatprep.subr.bf16.mxu0 0
  %227 = vmatpush1.bf16.msra.mxu0 0
  %228 = vmatprep.subr.bf16.mxu0 0
  %229 = vmatpush1.bf16.msra.mxu0 0
  %230 = vmatprep.subr.bf16.mxu0 0
  %231 = vmatpush1.bf16.msra.mxu0 0
  %232 = vmatprep.subr.bf16.mxu0 0
  %233 = vmatpush1.bf16.msra.mxu0 0
  %234 = vmatprep.subr.bf16.mxu0 0
  %235 = vmatpush1.bf16.msra.mxu0 0
  %236 = vmatprep.subr.bf16.mxu0 0
  %237 = vmatpush1.bf16.msra.mxu0 0
  %238 = vmatprep.subr.bf16.mxu0 0
  %239 = vmatpush1.bf16.msra.mxu0 0
  %240 = vmatprep.subr.bf16.mxu0 0
  %241 = vmatpush1.bf16.msra.mxu0 0
  %242 = vmatprep.subr.bf16.mxu0 0
  %243 = vmatpush1.bf16.msra.mxu0 0
  %244 = vmatprep.subr.bf16.mxu0 0
  %245 = vmatpush1.bf16.msra.mxu0 0
  %246 = vmatprep.subr.bf16.mxu0 0
  %247 = vmatpush1.bf16.msra.mxu0 0
  %248 = vmatprep.subr.bf16.mxu0 0
  %249 = vmatpush1.bf16.msra.mxu0 0
  %250 = vmatprep.subr.bf16.mxu0 0
  %251 = vmatpush1.bf16.msra.mxu0 0
  %252 = vmatprep.subr.bf16.mxu0 0
  %253 = vmatpush1.bf16.msra.mxu0 0
  %254 = vmatprep.mubr.bf16.mxu0 0
  %255 = vmatmul.mubr.bf16.gmra.mrb[0].mxu0 %v180
  %v256 = vpop.f32.mrb[0].mxu0
  %v257 = vadd.f32 %v217, %v256
  %v258 = vpop.f32.mrb[0].mxu0
  %v259 = vpop.f32.mrb[0].mxu0
  %v260 = vpop.f32.mrb[0].mxu0
  %261 = vdwg.mxu0
  %v262 = vmax.f32 %v257, 0.0
  %v263 = vpack.c.bf16 %v262, %v262
  %vm264 = vcmask 388096
  %265 = vst.msk [vmem:[%s3] sm:$0xf] %vm264, %v263
  // Predicated region
  $region14: #{one_stage_forward.9} parent=0 // pred_check
    _
  $region15: #{one_stage_forward.9} parent=0 // pred_check_branch
    %267 = sbr.rel (0) target = $region17
  $region16: #{one_stage_forward.9} parent=0 // pred_region
    _
  $region17: #{one_stage_forward.9} parent=0 // pred_fallthru
    _
  // Predicated region
  $region18: #{one_stage_forward.9} parent=0 // pred_check
    _
  $region19: #{one_stage_forward.9} parent=0 // pred_check_branch
    %269 = sbr.rel (0) target = $region21
  $region20: #{one_stage_forward.9} parent=0 // pred_region
    _
  $region21: #{one_stage_forward.9} parent=0 // pred_fallthru
    _

// kernel: one_stage_forward.10
$region0: #{one_stage_forward.10}
  #allocation0 [shape = 'u32[]', space=smem, size = 0x4, offset = 0x4, fixed_abs, tag = 'smem constant byte address 0x4 - core index']
  #allocation1 [shape = 'u32[144,128]{1,0:T(1,128)}', space=vmem, size = 0x12000, scoped, tag = 'internal scratch']
  %s0 = inlined_call_operand.vmem [shape: bf16[128,24], index: 0, kind: input, shape index: {}]
  %s1 = inlined_call_operand.vmem [shape: bf16[32,32], index: 1, kind: input, shape index: {}]
  %s2 = inlined_call_operand.vmem [shape: bf16[8,48], index: 2, kind: input, shape index: {}]
  %s3 = inlined_call_operand.vmem [shape: bf16[24,32], index: 3, kind: input, shape index: {}]
  %s4 = inlined_call_operand.vmem [shape: f32[1,32], index: 4, kind: input, shape index: {}]
  %s5 = inlined_call_operand.vmem [shape: bf16[32,32], index: 5, kind: input, shape index: {}]
  %s6 = inlined_call_operand.vmem [shape: f32[1,32], index: 6, kind: input, shape index: {}]
  %s7 = inlined_call_operand.vmem [shape: bf16[48,32], index: 7, kind: input, shape index: {}]
  %s8 = inlined_call_operand.vmem [shape: f32[1,32], index: 8, kind: input, shape index: {}]
  %s9 = inlined_call_operand.vmem [shape: f32[32,8], index: 9, kind: input, shape index: {}]
  %s10 = inlined_call_operand.vmem [shape: f32[128,32], index: 10, kind: input, shape index: {}]
  %s11 = inlined_call_operand.vmem [shape: bf16[128,32], index: 11, kind: output, shape index: {0}]
  %s12 = inlined_call_operand.vmem [shape: bf16[32,32], index: 12, kind: output, shape index: {1}]
  %s13 = inlined_call_operand.vmem [shape: bf16[8,32], index: 13, kind: output, shape index: {2}]
  %14 = xla_tuple %s11, %s12, %s13
  %s15 = sld [smem:[#allocation0]]
  $region70: #{one_stage_forward.10} parent=0
    _
  %s17 = ssub.s32 1, %s15
  %s18 = scalar_select 0, %s17, %s15
  // Predicated region
  $region2: #{one_stage_forward.10} parent=0 // pred_check
    _
  $region3: #{one_stage_forward.10} parent=0 // pred_check_branch
    %20 = sbr.rel (0) target = $region5
  $region4: #{one_stage_forward.10} parent=0 // pred_region
    _
  $region5: #{one_stage_forward.10} parent=0 // pred_fallthru
    _
  // Predicated region
  $region6: #{one_stage_forward.10} parent=0 // pred_check
    _
  $region7: #{one_stage_forward.10} parent=0 // pred_check_branch
    %22 = sbr.rel (0) target = $region9
  $region8: #{one_stage_forward.10} parent=0 // pred_region
    _
  $region9: #{one_stage_forward.10} parent=0 // pred_fallthru
    _
  // Predicated region
  $region10: #{one_stage_forward.10} parent=0 // pred_check
    _
  $region11: #{one_stage_forward.10} parent=0 // pred_check_branch
    %24 = sbr.rel (0) target = $region13
  $region12: #{one_stage_forward.10} parent=0 // pred_region
    _
  $region13: #{one_stage_forward.10} parent=0 // pred_fallthru
    _
  // Predicated region
  $region14: #{one_stage_forward.10} parent=0 // pred_check
    _
  $region15: #{one_stage_forward.10} parent=0 // pred_check_branch
    %26 = sbr.rel (0) target = $region17
  $region16: #{one_stage_forward.10} parent=0 // pred_region
    _
  $region17: #{one_stage_forward.10} parent=0 // pred_fallthru
    _
  // Predicated region
  $region18: #{one_stage_forward.10} parent=0 // pred_check
    _
  $region19: #{one_stage_forward.10} parent=0 // pred_check_branch
    %28 = sbr.rel (0) target = $region21
  $region20: #{one_stage_forward.10} parent=0 // pred_region
    _
  $region21: #{one_stage_forward.10} parent=0 // pred_fallthru
    _
  // Predicated region
  $region22: #{one_stage_forward.10} parent=0 // pred_check
    _
  $region23: #{one_stage_forward.10} parent=0 // pred_check_branch
    %30 = sbr.rel (0) target = $region25
  $region24: #{one_stage_forward.10} parent=0 // pred_region
    _
  $region25: #{one_stage_forward.10} parent=0 // pred_fallthru
    _
  // Predicated region
  $region26: #{one_stage_forward.10} parent=0 // pred_check
    _
  $region27: #{one_stage_forward.10} parent=0 // pred_check_branch
    %32 = sbr.rel (0) target = $region29
  $region28: #{one_stage_forward.10} parent=0 // pred_region
    _
  $region29: #{one_stage_forward.10} parent=0 // pred_fallthru
    _
  // Predicated region
  $region30: #{one_stage_forward.10} parent=0 // pred_check
    _
  $region31: #{one_stage_forward.10} parent=0 // pred_check_branch
    %34 = sbr.rel (0) target = $region33
  $region32: #{one_stage_forward.10} parent=0 // pred_region
    _
  $region33: #{one_stage_forward.10} parent=0 // pred_fallthru
    _
  // Predicated region
  $region34: #{one_stage_forward.10} parent=0 // pred_check
    _
  $region35: #{one_stage_forward.10} parent=0 // pred_check_branch
    %36 = sbr.rel (0) target = $region37
  $region36: #{one_stage_forward.10} parent=0 // pred_region
    _
  $region37: #{one_stage_forward.10} parent=0 // pred_fallthru
    _
  // Predicated region
  $region38: #{one_stage_forward.10} parent=0 // pred_check
    _
  $region39: #{one_stage_forward.10} parent=0 // pred_check_branch
    %38 = sbr.rel (0) target = $region41
  $region40: #{one_stage_forward.10} parent=0 // pred_region
    _
  $region41: #{one_stage_forward.10} parent=0 // pred_fallthru
    _
  // Predicated region
  $region42: #{one_stage_forward.10} parent=0 // pred_check
    _
  $region43: #{one_stage_forward.10} parent=0 // pred_check_branch
    %40 = sbr.rel (0) target = $region45
  $region44: #{one_stage_forward.10} parent=0 // pred_region
    _
  $region45: #{one_stage_forward.10} parent=0 // pred_fallthru
    _
  %v42 = vld [vmem:[%s2] sm:$0xf]
  %v43 = vld [vmem:[%s7] sm:$0xf]
  %v44 = vld [vmem:[%s7 + $0x4] sm:$0xf]
  %v45 = vld [vmem:[%s7 + $0x8] sm:$0xf]
  %v46 = vld [vmem:[%s7 + $0xc] sm:$0xf]
  %v47 = vld [vmem:[%s7 + $0x10] sm:$0xf]
  %v48 = vld [vmem:[%s7 + $0x14] sm:$0xf]
  %v49 = vld [vmem:[%s8] sm:$0x1]
  %v51 = vlaneseq
  %v52 = vshrl.u32 %v51, 7
  %v53 = vsub.s32 0, %v52
  %v54 = vrot.slane %v49, %v53
  %v62 = vunpack.c.l.b16 %v43
  %v63 = vunpack.c.l.b16 %v44
  %v64 = vunpack.c.l.b16 %v45
  %v65 = vunpack.c.l.b16 %v46
  %v66 = vunpack.c.l.b16 %v47
  %v67 = vunpack.c.l.b16 %v48
  %v68 = vpack.c.b16 %v63, %v62
  %v69 = vpack.c.b16 %v65, %v64
  %v70 = vpack.c.b16 %v67, %v66
  %vm74 = vcmask 392192
  %v76 = vsel %vm74, %v42, 0
  %78 = vmatprep.subr.bf16.mxu0 0
  %79 = vmatpush1.bf16.msra.mxu0 %v68
  %80 = vmatprep.subr.bf16.mxu0 0
  %81 = vmatpush1.bf16.msra.mxu0 %v69
  %82 = vmatprep.subr.bf16.mxu0 0
  %83 = vmatpush1.bf16.msra.mxu0 %v70
  %84 = vmatprep.subr.bf16.mxu0 0
  %85 = vmatpush1.bf16.msra.mxu0 0
  %86 = vmatprep.subr.bf16.mxu0 0
  %87 = vmatpush1.bf16.msra.mxu0 0
  %88 = vmatprep.subr.bf16.mxu0 0
  %89 = vmatpush1.bf16.msra.mxu0 0
  %90 = vmatprep.subr.bf16.mxu0 0
  %91 = vmatpush1.bf16.msra.mxu0 0
  %92 = vmatprep.subr.bf16.mxu0 0
  %93 = vmatpush1.bf16.msra.mxu0 0
  %94 = vmatprep.subr.bf16.mxu0 0
  %95 = vmatpush1.bf16.msra.mxu0 0
  %96 = vmatprep.subr.bf16.mxu0 0
  %97 = vmatpush1.bf16.msra.mxu0 0
  %98 = vmatprep.subr.bf16.mxu0 0
  %99 = vmatpush1.bf16.msra.mxu0 0
  %100 = vmatprep.subr.bf16.mxu0 0
  %101 = vmatpush1.bf16.msra.mxu0 0
  %102 = vmatprep.subr.bf16.mxu0 0
  %103 = vmatpush1.bf16.msra.mxu0 0
  %104 = vmatprep.subr.bf16.mxu0 0
  %105 = vmatpush1.bf16.msra.mxu0 0
  %106 = vmatprep.subr.bf16.mxu0 0
  %107 = vmatpush1.bf16.msra.mxu0 0
  %108 = vmatprep.subr.bf16.mxu0 0
  %109 = vmatpush1.bf16.msra.mxu0 0
  %110 = vmatprep.mubr.bf16.mxu0 0
  %111 = vmatmul.mubr.bf16.gmra.mrb[0].mxu0 %v76
  %v112 = vpop.f32.mrb[0].mxu0
  %v113 = vadd.f32 %v54, %v112
  %v114 = vpop.f32.mrb[0].mxu0
  %v115 = vpop.f32.mrb[0].mxu0
  %v116 = vpop.f32.mrb[0].mxu0
  %117 = vdwg.mxu0
  %v118 = vld [vmem:[%s1] sm:$0xf]
  %v119 = vld [vmem:[%s1 + $0x4] sm:$0xf]
  %v120 = vld [vmem:[%s1 + $0x8] sm:$0xf]
  %v121 = vld [vmem:[%s1 + $0xc] sm:$0xf]
  %v122 = vld [vmem:[%s5] sm:$0xf]
  %v123 = vld [vmem:[%s5 + $0x4] sm:$0xf]
  %v124 = vld [vmem:[%s5 + $0x8] sm:$0xf]
  %v125 = vld [vmem:[%s5 + $0xc] sm:$0xf]
  %v126 = vld [vmem:[%s6] sm:$0x1]
  %v128 = vlaneseq
  %v129 = vshrl.u32 %v128, 7
  %v130 = vsub.s32 0, %v129
  %v131 = vrot.slane %v126, %v130
  %v137 = vunpack.c.l.b16 %v118
  %v138 = vunpack.c.l.b16 %v119
  %v139 = vunpack.c.l.b16 %v120
  %v140 = vunpack.c.l.b16 %v121
  %v141 = vpack.c.b16 %v138, %v137
  %v142 = vpack.c.b16 %v140, %v139
  %v147 = vunpack.c.l.b16 %v122
  %v148 = vunpack.c.l.b16 %v123
  %v149 = vunpack.c.l.b16 %v124
  %v150 = vunpack.c.l.b16 %v125
  %v151 = vpack.c.b16 %v148, %v147
  %v152 = vpack.c.b16 %v150, %v149
  %vm155 = vcmask 261120
  %v157 = vsel %vm155, %v141, 0
  %v160 = vsel %vm155, %v142, 0
  %162 = vmatprep.subr.bf16.mxu0 0
  %163 = vmatpush1.bf16.msra.mxu0 %v151
  %164 = vmatprep.subr.bf16.mxu0 0
  %165 = vmatpush1.bf16.msra.mxu0 %v152
  %166 = vmatprep.subr.bf16.mxu0 0
  %167 = vmatpush1.bf16.msra.mxu0 0
  %168 = vmatprep.subr.bf16.mxu0 0
  %169 = vmatpush1.bf16.msra.mxu0 0
  %170 = vmatprep.subr.bf16.mxu0 0
  %171 = vmatpush1.bf16.msra.mxu0 0
  %172 = vmatprep.subr.bf16.mxu0 0
  %173 = vmatpush1.bf16.msra.mxu0 0
  %174 = vmatprep.subr.bf16.mxu0 0
  %175 = vmatpush1.bf16.msra.mxu0 0
  %176 = vmatprep.subr.bf16.mxu0 0
  %177 = vmatpush1.bf16.msra.mxu0 0
  %178 = vmatprep.subr.bf16.mxu0 0
  %179 = vmatpush1.bf16.msra.mxu0 0
  %180 = vmatprep.subr.bf16.mxu0 0
  %181 = vmatpush1.bf16.msra.mxu0 0
  %182 = vmatprep.subr.bf16.mxu0 0
  %183 = vmatpush1.bf16.msra.mxu0 0
  %184 = vmatprep.subr.bf16.mxu0 0
  %185 = vmatpush1.bf16.msra.mxu0 0
  %186 = vmatprep.subr.bf16.mxu0 0
  %187 = vmatpush1.bf16.msra.mxu0 0
  %188 = vmatprep.subr.bf16.mxu0 0
  %189 = vmatpush1.bf16.msra.mxu0 0
  %190 = vmatprep.subr.bf16.mxu0 0
  %191 = vmatpush1.bf16.msra.mxu0 0
  %192 = vmatprep.subr.bf16.mxu0 0
  %193 = vmatpush1.bf16.msra.mxu0 0
  %194 = vmatprep.mubr.bf16.mxu0 0
  %195 = vmatmul.mubr.bf16.gmra.mrb[0].mxu0 %v157
  %v196 = vpop.f32.mrb[0].mxu0
  %v197 = vadd.f32 %v131, %v196
  %v198 = vpop.f32.mrb[0].mxu0
  %v199 = vpop.f32.mrb[0].mxu0
  %v200 = vadd.f32 %v131, %v199
  %v201 = vpop.f32.mrb[0].mxu0
  %202 = vmatprep.mubr.bf16.mxu0 0
  %203 = vmatmul.mubr.bf16.gmra.mrb[0].mxu0 %v160
  %v204 = vpop.f32.mrb[0].mxu0
  %v205 = vadd.f32 %v131, %v204
  %v206 = vpop.f32.mrb[0].mxu0
  %v207 = vpop.f32.mrb[0].mxu0
  %v208 = vadd.f32 %v131, %v207
  %v209 = vpop.f32.mrb[0].mxu0
  %210 = vdwg.mxu0
  %v211 = vld [vmem:[%s9] sm:$0xff]
  %v212 = vld [vmem:[%s9 + $0x8] sm:$0xff]
  %v213 = vld [vmem:[%s9 + $0x10] sm:$0xff]
  %v214 = vld [vmem:[%s9 + $0x18] sm:$0xff]
  %vm215 = vcmask 64512
  %v217 = vsel %vm215, %v211, 0
  %v220 = vsel %vm215, %v212, 0
  %v223 = vsel %vm215, %v213, 0
  %v226 = vsel %vm215, %v214, 0
  %228 = vmatprep.subr.mxu0 0.0
  %229 = vmatpush1.msra.mxu0 %v113
  %230 = vmatprep.subr.mxu0 0.0
  %231 = vmatpush1.msra.mxu0 0.0
  %232 = vmatprep.subr.mxu0 0.0
  %233 = vmatpush1.msra.mxu0 0.0
  %234 = vmatprep.subr.mxu0 0.0
  %235 = vmatpush1.msra.mxu0 0.0
  %236 = vmatprep.subr.mxu0 0.0
  %237 = vmatpush1.msra.mxu0 0.0
  %238 = vmatprep.subr.mxu0 0.0
  %239 = vmatpush1.msra.mxu0 0.0
  %240 = vmatprep.subr.mxu0 0.0
  %241 = vmatpush1.msra.mxu0 0.0
  %242 = vmatprep.subr.mxu0 0.0
  %243 = vmatpush1.msra.mxu0 0.0
  %244 = vmatprep.subr.mxu0 0.0
  %245 = vmatpush1.msra.mxu0 0.0
  %246 = vmatprep.subr.mxu0 0.0
  %247 = vmatpush1.msra.mxu0 0.0
  %248 = vmatprep.subr.mxu0 0.0
  %249 = vmatpush1.msra.mxu0 0.0
  %250 = vmatprep.subr.mxu0 0.0
  %251 = vmatpush1.msra.mxu0 0.0
  %252 = vmatprep.subr.mxu0 0.0
  %253 = vmatpush1.msra.mxu0 0.0
  %254 = vmatprep.subr.mxu0 0.0
  %255 = vmatpush1.msra.mxu0 0.0
  %256 = vmatprep.subr.mxu0 0.0
  %257 = vmatpush1.msra.mxu0 0.0
  %258 = vmatprep.subr.mxu0 0.0
  %259 = vmatpush1.msra.mxu0 0.0
  %260 = vmatprep.subr.mxu0 0.0
  %261 = vmatpush1.msra.mxu0 0.0
  %262 = vmatprep.subr.mxu0 0.0
  %263 = vmatpush1.msra.mxu0 0.0
  %264 = vmatprep.subr.mxu0 0.0
  %265 = vmatpush1.msra.mxu0 0.0
  %266 = vmatprep.subr.mxu0 0.0
  %267 = vmatpush1.msra.mxu0 0.0
  %268 = vmatprep.subr.mxu0 0.0
  %269 = vmatpush1.msra.mxu0 0.0
  %270 = vmatprep.subr.mxu0 0.0
  %271 = vmatpush1.msra.mxu0 0.0
  %272 = vmatprep.subr.mxu0 0.0
  %273 = vmatpush1.msra.mxu0 0.0
  %274 = vmatprep.subr.mxu0 0.0
  %275 = vmatpush1.msra.mxu0 0.0
  %276 = vmatprep.subr.mxu0 0.0
  %277 = vmatpush1.msra.mxu0 0.0
  %278 = vmatprep.subr.mxu0 0.0
  %279 = vmatpush1.msra.mxu0 0.0
  %280 = vmatprep.subr.mxu0 0.0
  %281 = vmatpush1.msra.mxu0 0.0
  %282 = vmatprep.subr.mxu0 0.0
  %283 = vmatpush1.msra.mxu0 0.0
  %284 = vmatprep.subr.mxu0 0.0
  %285 = vmatpush1.msra.mxu0 0.0
  %286 = vmatprep.subr.mxu0 0.0
  %287 = vmatpush1.msra.mxu0 0.0
  %288 = vmatprep.subr.mxu0 0.0
  %289 = vmatpush1.msra.mxu0 0.0
  %290 = vmatprep.subr.mxu0 0.0
  %291 = vmatpush1.msra.mxu0 0.0
  %292 = vmatprep.mubr.f32.mxu0 0.0
  %293 = vmatmul.mubr.f32.gmra.mrb[0].mxu0 %v217
  %v294 = vpop.f32.mrb[0].mxu0
  %v295 = vadd.f32 0.0, %v294
  %v296 = vpop.f32.mrb[0].mxu0
  %297 = vmatprep.mubr.f32.mxu0 0.0
  %298 = vmatmul.mubr.f32.gmra.mrb[0].mxu0 %v220
  %v299 = vpop.f32.mrb[0].mxu0
  %v300 = vadd.f32 0.0, %v299
  %v301 = vpop.f32.mrb[0].mxu0
  %302 = vmatprep.mubr.f32.mxu0 0.0
  %303 = vmatmul.mubr.f32.gmra.mrb[0].mxu0 %v223
  %v304 = vpop.f32.mrb[0].mxu0
  %v305 = vadd.f32 0.0, %v304
  %v306 = vpop.f32.mrb[0].mxu0
  %307 = vmatprep.mubr.f32.mxu0 0.0
  %308 = vmatmul.mubr.f32.gmra.mrb[0].mxu0 %v226
  %v309 = vpop.f32.mrb[0].mxu0
  %v310 = vadd.f32 0.0, %v309
  %v311 = vpop.f32.mrb[0].mxu0
  %312 = vdwg.mxu0
  %v313 = vadd.f32 %v197, %v295
  %v314 = vadd.f32 %v200, %v300
  %v315 = vadd.f32 %v205, %v305
  %v316 = vadd.f32 %v208, %v310
  %v317 = vld [vmem:[%s0] sm:$0xf]
  %v318 = vld [vmem:[%s0 + $0x4] sm:$0xf]
  %v319 = vld [vmem:[%s0 + $0x8] sm:$0xf]
  %v320 = vld [vmem:[%s0 + $0xc] sm:$0xf]
  %v321 = vld [vmem:[%s0 + $0x10] sm:$0xf]
  %v322 = vld [vmem:[%s0 + $0x14] sm:$0xf]
  %v323 = vld [vmem:[%s0 + $0x18] sm:$0xf]
  %v324 = vld [vmem:[%s0 + $0x1c] sm:$0xf]
  %v325 = vld [vmem:[%s0 + $0x20] sm:$0xf]
  %v326 = vld [vmem:[%s0 + $0x24] sm:$0xf]
  %v327 = vld [vmem:[%s0 + $0x28] sm:$0xf]
  %v328 = vld [vmem:[%s0 + $0x2c] sm:$0xf]
  %v329 = vld [vmem:[%s0 + $0x30] sm:$0xf]
  %v330 = vld [vmem:[%s0 + $0x34] sm:$0xf]
  %v331 = vld [vmem:[%s0 + $0x38] sm:$0xf]
  %v332 = vld [vmem:[%s0 + $0x3c] sm:$0xf]
  %v333 = vld [vmem:[%s3] sm:$0xf]
  %v334 = vld [vmem:[%s3 + $0x4] sm:$0xf]
  %v335 = vld [vmem:[%s3 + $0x8] sm:$0xf]
  %v336 = vld [vmem:[%s4] sm:$0x1]
  %v338 = vlaneseq
  %v339 = vshrl.u32 %v338, 7
  %v340 = vsub.s32 0, %v339
  %v341 = vrot.slane %v336, %v340
  %v359 = vunpack.c.l.b16 %v317
  %v360 = vunpack.c.l.b16 %v318
  %v361 = vunpack.c.l.b16 %v319
  %v362 = vunpack.c.l.b16 %v320
  %v363 = vunpack.c.l.b16 %v321
  %v364 = vunpack.c.l.b16 %v322
  %v365 = vunpack.c.l.b16 %v323
  %v366 = vunpack.c.l.b16 %v324
  %v367 = vunpack.c.l.b16 %v325
  %v368 = vunpack.c.l.b16 %v326
  %v369 = vunpack.c.l.b16 %v327
  %v370 = vunpack.c.l.b16 %v328
  %v371 = vunpack.c.l.b16 %v329
  %v372 = vunpack.c.l.b16 %v330
  %v373 = vunpack.c.l.b16 %v331
  %v374 = vunpack.c.l.b16 %v332
  %v375 = vpack.c.b16 %v360, %v359
  %v376 = vpack.c.b16 %v362, %v361
  %v377 = vpack.c.b16 %v364, %v363
  %v378 = vpack.c.b16 %v366, %v365
  %v379 = vpack.c.b16 %v368, %v367
  %v380 = vpack.c.b16 %v370, %v369
  %v381 = vpack.c.b16 %v372, %v371
  %v382 = vpack.c.b16 %v374, %v373
  %v386 = vunpack.c.l.b16 %v333
  %v387 = vunpack.c.l.b16 %v334
  %v388 = vunpack.c.l.b16 %v335
  %v389 = vpack.c.b16 %v387, %v386
  %v390 = vpack.c.b16 %v388, %v388
  %vm392 = vcmask 195584
  %v394 = vsel %vm392, %v375, 0
  %v397 = vsel %vm392, %v376, 0
  %v400 = vsel %vm392, %v377, 0
  %v403 = vsel %vm392, %v378, 0
  %v406 = vsel %vm392, %v379, 0
  %v409 = vsel %vm392, %v380, 0
  %v412 = vsel %vm392, %v381, 0
  %v415 = vsel %vm392, %v382, 0
  %vm417 = vcmask 1043456
  %v419 = vsel %vm417, %v390, 0
  %421 = vmatprep.subr.bf16.mxu0 0
  %422 = vmatpush1.bf16.msra.mxu0 %v389
  %423 = vmatprep.subr.bf16.mxu0 0
  %424 = vmatpush1.bf16.msra.mxu0 %v419
  %425 = vmatprep.subr.bf16.mxu0 0
  %426 = vmatpush1.bf16.msra.mxu0 0
  %427 = vmatprep.subr.bf16.mxu0 0
  %428 = vmatpush1.bf16.msra.mxu0 0
  %429 = vmatprep.subr.bf16.mxu0 0
  %430 = vmatpush1.bf16.msra.mxu0 0
  %431 = vmatprep.subr.bf16.mxu0 0
  %432 = vmatpush1.bf16.msra.mxu0 0
  %433 = vmatprep.subr.bf16.mxu0 0
  %434 = vmatpush1.bf16.msra.mxu0 0
  %435 = vmatprep.subr.bf16.mxu0 0
  %436 = vmatpush1.bf16.msra.mxu0 0
  %437 = vmatprep.subr.bf16.mxu0 0
  %438 = vmatpush1.bf16.msra.mxu0 0
  %439 = vmatprep.subr.bf16.mxu0 0
  %440 = vmatpush1.bf16.msra.mxu0 0
  %441 = vmatprep.subr.bf16.mxu0 0
  %442 = vmatpush1.bf16.msra.mxu0 0
  %443 = vmatprep.subr.bf16.mxu0 0
  %444 = vmatpush1.bf16.msra.mxu0 0
  %445 = vmatprep.subr.bf16.mxu0 0
  %446 = vmatpush1.bf16.msra.mxu0 0
  %447 = vmatprep.subr.bf16.mxu0 0
  %448 = vmatpush1.bf16.msra.mxu0 0
  %449 = vmatprep.subr.bf16.mxu0 0
  %450 = vmatpush1.bf16.msra.mxu0 0
  %451 = vmatprep.subr.bf16.mxu0 0
  %452 = vmatpush1.bf16.msra.mxu0 0
  %453 = vmatprep.mubr.bf16.mxu0 0
  %454 = vmatmul.mubr.bf16.gmra.mrb[0].mxu0 %v394
  %v455 = vpop.f32.mrb[0].mxu0
  %v456 = vadd.f32 %v341, %v455
  %v457 = vpop.f32.mrb[0].mxu0
  %v458 = vpop.f32.mrb[0].mxu0
  %v459 = vadd.f32 %v341, %v458
  %v460 = vpop.f32.mrb[0].mxu0
  %461 = vmatprep.mubr.bf16.mxu0 0
  %462 = vmatmul.mubr.bf16.gmra.mrb[0].mxu0 %v397
  %v463 = vpop.f32.mrb[0].mxu0
  %v464 = vadd.f32 %v341, %v463
  %v465 = vpop.f32.mrb[0].mxu0
  %v466 = vpop.f32.mrb[0].mxu0
  %v467 = vadd.f32 %v341, %v466
  %v468 = vpop.f32.mrb[0].mxu0
  %469 = vmatprep.mubr.bf16.mxu0 0
  %470 = vmatmul.mubr.bf16.gmra.mrb[0].mxu0 %v400
  %v471 = vpop.f32.mrb[0].mxu0
  %v472 = vadd.f32 %v341, %v471
  %v473 = vpop.f32.mrb[0].mxu0
  %v474 = vpop.f32.mrb[0].mxu0
  %v475 = vadd.f32 %v341, %v474
  %v476 = vpop.f32.mrb[0].mxu0
  %477 = vmatprep.mubr.bf16.mxu0 0
  %478 = vmatmul.mubr.bf16.gmra.mrb[0].mxu0 %v403
  %v479 = vpop.f32.mrb[0].mxu0
  %v480 = vadd.f32 %v341, %v479
  %v481 = vpop.f32.mrb[0].mxu0
  %v482 = vpop.f32.mrb[0].mxu0
  %v483 = vadd.f32 %v341, %v482
  %v484 = vpop.f32.mrb[0].mxu0
  %485 = vmatprep.mubr.bf16.mxu0 0
  %486 = vmatmul.mubr.bf16.gmra.mrb[0].mxu0 %v406
  %v487 = vpop.f32.mrb[0].mxu0
  %v488 = vadd.f32 %v341, %v487
  %v489 = vpop.f32.mrb[0].mxu0
  %v490 = vpop.f32.mrb[0].mxu0
  %v491 = vadd.f32 %v341, %v490
  %v492 = vpop.f32.mrb[0].mxu0
  %493 = vmatprep.mubr.bf16.mxu0 0
  %494 = vmatmul.mubr.bf16.gmra.mrb[0].mxu0 %v409
  %v495 = vpop.f32.mrb[0].mxu0
  %v496 = vadd.f32 %v341, %v495
  %v497 = vpop.f32.mrb[0].mxu0
  %v498 = vpop.f32.mrb[0].mxu0
  %v499 = vadd.f32 %v341, %v498
  %v500 = vpop.f32.mrb[0].mxu0
  %501 = vmatprep.mubr.bf16.mxu0 0
  %502 = vmatmul.mubr.bf16.gmra.mrb[0].mxu0 %v412
  %v503 = vpop.f32.mrb[0].mxu0
  %v504 = vadd.f32 %v341, %v503
  %v505 = vpop.f32.mrb[0].mxu0
  %v506 = vpop.f32.mrb[0].mxu0
  %v507 = vadd.f32 %v341, %v506
  %v508 = vpop.f32.mrb[0].mxu0
  %509 = vmatprep.mubr.bf16.mxu0 0
  %510 = vmatmul.mubr.bf16.gmra.mrb[0].mxu0 %v415
  %v511 = vpop.f32.mrb[0].mxu0
  %v512 = vadd.f32 %v341, %v511
  %v513 = vpop.f32.mrb[0].mxu0
  %v514 = vpop.f32.mrb[0].mxu0
  %v515 = vadd.f32 %v341, %v514
  %v516 = vpop.f32.mrb[0].mxu0
  %517 = vdwg.mxu0
  %v518 = vld [vmem:[%s10] sm:$0xff]
  %v519 = vld [vmem:[%s10 + $0x8] sm:$0xff]
  %v520 = vld [vmem:[%s10 + $0x10] sm:$0xff]
  %v521 = vld [vmem:[%s10 + $0x18] sm:$0xff]
  %v522 = vld [vmem:[%s10 + $0x20] sm:$0xff]
  %v523 = vld [vmem:[%s10 + $0x28] sm:$0xff]
  %v524 = vld [vmem:[%s10 + $0x30] sm:$0xff]
  %v525 = vld [vmem:[%s10 + $0x38] sm:$0xff]
  %v526 = vld [vmem:[%s10 + $0x40] sm:$0xff]
  %v527 = vld [vmem:[%s10 + $0x48] sm:$0xff]
  %v528 = vld [vmem:[%s10 + $0x50] sm:$0xff]
  %v529 = vld [vmem:[%s10 + $0x58] sm:$0xff]
  %v530 = vld [vmem:[%s10 + $0x60] sm:$0xff]
  %v531 = vld [vmem:[%s10 + $0x68] sm:$0xff]
  %v532 = vld [vmem:[%s10 + $0x70] sm:$0xff]
  %v533 = vld [vmem:[%s10 + $0x78] sm:$0xff]
  %v535 = vsel %vm155, %v518, 0
  %v538 = vsel %vm155, %v519, 0
  %v541 = vsel %vm155, %v520, 0
  %v544 = vsel %vm155, %v521, 0
  %v547 = vsel %vm155, %v522, 0
  %v550 = vsel %vm155, %v523, 0
  %v553 = vsel %vm155, %v524, 0
  %v556 = vsel %vm155, %v525, 0
  %v559 = vsel %vm155, %v526, 0
  %v562 = vsel %vm155, %v527, 0
  %v565 = vsel %vm155, %v528, 0
  %v568 = vsel %vm155, %v529, 0
  %v571 = vsel %vm155, %v530, 0
  %v574 = vsel %vm155, %v531, 0
  %v577 = vsel %vm155, %v532, 0
  %v580 = vsel %vm155, %v533, 0
  %582 = vmatprep.subr.mxu0 0.0
  %583 = vmatpush1.msra.mxu0 %v313
  %584 = vmatprep.subr.mxu0 0.0
  %585 = vmatpush1.msra.mxu0 %v314
  %586 = vmatprep.subr.mxu0 0.0
  %587 = vmatpush1.msra.mxu0 %v315
  %588 = vmatprep.subr.mxu0 0.0
  %589 = vmatpush1.msra.mxu0 %v316
  %590 = vmatprep.subr.mxu0 0.0
  %591 = vmatpush1.msra.mxu0 0.0
  %592 = vmatprep.subr.mxu0 0.0
  %593 = vmatpush1.msra.mxu0 0.0
  %594 = vmatprep.subr.mxu0 0.0
  %595 = vmatpush1.msra.mxu0 0.0
  %596 = vmatprep.subr.mxu0 0.0
  %597 = vmatpush1.msra.mxu0 0.0
  %598 = vmatprep.subr.mxu0 0.0
  %599 = vmatpush1.msra.mxu0 0.0
  %600 = vmatprep.subr.mxu0 0.0
  %601 = vmatpush1.msra.mxu0 0.0
  %602 = vmatprep.subr.mxu0 0.0
  %603 = vmatpush1.msra.mxu0 0.0
  %604 = vmatprep.subr.mxu0 0.0
  %605 = vmatpush1.msra.mxu0 0.0
  %606 = vmatprep.subr.mxu0 0.0
  %607 = vmatpush1.msra.mxu0 0.0
  %608 = vmatprep.subr.mxu0 0.0
  %609 = vmatpush1.msra.mxu0 0.0
  %610 = vmatprep.subr.mxu0 0.0
  %611 = vmatpush1.msra.mxu0 0.0
  %612 = vmatprep.subr.mxu0 0.0
  %613 = vmatpush1.msra.mxu0 0.0
  %614 = vmatprep.subr.mxu0 0.0
  %615 = vmatpush1.msra.mxu0 0.0
  %616 = vmatprep.subr.mxu0 0.0
  %617 = vmatpush1.msra.mxu0 0.0
  %618 = vmatprep.subr.mxu0 0.0
  %619 = vmatpush1.msra.mxu0 0.0
  %620 = vmatprep.subr.mxu0 0.0
  %621 = vmatpush1.msra.mxu0 0.0
  %622 = vmatprep.subr.mxu0 0.0
  %623 = vmatpush1.msra.mxu0 0.0
  %624 = vmatprep.subr.mxu0 0.0
  %625 = vmatpush1.msra.mxu0 0.0
  %626 = vmatprep.subr.mxu0 0.0
  %627 = vmatpush1.msra.mxu0 0.0
  %628 = vmatprep.subr.mxu0 0.0
  %629 = vmatpush1.msra.mxu0 0.0
  %630 = vmatprep.subr.mxu0 0.0
  %631 = vmatpush1.msra.mxu0 0.0
  %632 = vmatprep.subr.mxu0 0.0
  %633 = vmatpush1.msra.mxu0 0.0
  %634 = vmatprep.subr.mxu0 0.0
  %635 = vmatpush1.msra.mxu0 0.0
  %636 = vmatprep.subr.mxu0 0.0
  %637 = vmatpush1.msra.mxu0 0.0
  %638 = vmatprep.subr.mxu0 0.0
  %639 = vmatpush1.msra.mxu0 0.0
  %640 = vmatprep.subr.mxu0 0.0
  %641 = vmatpush1.msra.mxu0 0.0
  %642 = vmatprep.subr.mxu0 0.0
  %643 = vmatpush1.msra.mxu0 0.0
  %644 = vmatprep.subr.mxu0 0.0
  %645 = vmatpush1.msra.mxu0 0.0
  %646 = vmatprep.mubr.f32.mxu0 0.0
  %647 = vmatmul.mubr.f32.gmra.mrb[0].mxu0 %v535
  %v648 = vpop.f32.mrb[0].mxu0
  %v649 = vadd.f32 0.0, %v648
  %v650 = vpop.f32.mrb[0].mxu0
  %651 = vmatprep.mubr.f32.mxu0 0.0
  %652 = vmatmul.mubr.f32.gmra.mrb[0].mxu0 %v538
  %v653 = vpop.f32.mrb[0].mxu0
  %v654 = vadd.f32 0.0, %v653
  %v655 = vpop.f32.mrb[0].mxu0
  %656 = vmatprep.mubr.f32.mxu0 0.0
  %657 = vmatmul.mubr.f32.gmra.mrb[0].mxu0 %v541
  %v658 = vpop.f32.mrb[0].mxu0
  %v659 = vadd.f32 0.0, %v658
  %v660 = vpop.f32.mrb[0].mxu0
  %661 = vmatprep.mubr.f32.mxu0 0.0
  %662 = vmatmul.mubr.f32.gmra.mrb[0].mxu0 %v544
  %v663 = vpop.f32.mrb[0].mxu0
  %v664 = vadd.f32 0.0, %v663
  %v665 = vpop.f32.mrb[0].mxu0
  %666 = vmatprep.mubr.f32.mxu0 0.0
  %667 = vmatmul.mubr.f32.gmra.mrb[0].mxu0 %v547
  %v668 = vpop.f32.mrb[0].mxu0
  %v669 = vadd.f32 0.0, %v668
  %v670 = vpop.f32.mrb[0].mxu0
  %671 = vmatprep.mubr.f32.mxu0 0.0
  %672 = vmatmul.mubr.f32.gmra.mrb[0].mxu0 %v550
  %v673 = vpop.f32.mrb[0].mxu0
  %v674 = vadd.f32 0.0, %v673
  %v675 = vpop.f32.mrb[0].mxu0
  %676 = vmatprep.mubr.f32.mxu0 0.0
  %677 = vmatmul.mubr.f32.gmra.mrb[0].mxu0 %v553
  %v678 = vpop.f32.mrb[0].mxu0
  %v679 = vadd.f32 0.0, %v678
  %v680 = vpop.f32.mrb[0].mxu0
  %681 = vmatprep.mubr.f32.mxu0 0.0
  %682 = vmatmul.mubr.f32.gmra.mrb[0].mxu0 %v556
  %v683 = vpop.f32.mrb[0].mxu0
  %v684 = vadd.f32 0.0, %v683
  %v685 = vpop.f32.mrb[0].mxu0
  %686 = vmatprep.mubr.f32.mxu0 0.0
  %687 = vmatmul.mubr.f32.gmra.mrb[0].mxu0 %v559
  %v688 = vpop.f32.mrb[0].mxu0
  %v689 = vadd.f32 0.0, %v688
  %v690 = vpop.f32.mrb[0].mxu0
  %691 = vmatprep.mubr.f32.mxu0 0.0
  %692 = vmatmul.mubr.f32.gmra.mrb[0].mxu0 %v562
  %v693 = vpop.f32.mrb[0].mxu0
  %v694 = vadd.f32 0.0, %v693
  %v695 = vpop.f32.mrb[0].mxu0
  %696 = vmatprep.mubr.f32.mxu0 0.0
  %697 = vmatmul.mubr.f32.gmra.mrb[0].mxu0 %v565
  %v698 = vpop.f32.mrb[0].mxu0
  %v699 = vadd.f32 0.0, %v698
  %v700 = vpop.f32.mrb[0].mxu0
  %701 = vmatprep.mubr.f32.mxu0 0.0
  %702 = vmatmul.mubr.f32.gmra.mrb[0].mxu0 %v568
  %v703 = vpop.f32.mrb[0].mxu0
  %v704 = vadd.f32 0.0, %v703
  %v705 = vpop.f32.mrb[0].mxu0
  %706 = vmatprep.mubr.f32.mxu0 0.0
  %707 = vmatmul.mubr.f32.gmra.mrb[0].mxu0 %v571
  %v708 = vpop.f32.mrb[0].mxu0
  %v709 = vadd.f32 0.0, %v708
  %v710 = vpop.f32.mrb[0].mxu0
  %711 = vmatprep.mubr.f32.mxu0 0.0
  %712 = vmatmul.mubr.f32.gmra.mrb[0].mxu0 %v574
  %v713 = vpop.f32.mrb[0].mxu0
  %v714 = vadd.f32 0.0, %v713
  %v715 = vpop.f32.mrb[0].mxu0
  %716 = vmatprep.mubr.f32.mxu0 0.0
  %717 = vmatmul.mubr.f32.gmra.mrb[0].mxu0 %v577
  %v718 = vpop.f32.mrb[0].mxu0
  %v719 = vadd.f32 0.0, %v718
  %v720 = vpop.f32.mrb[0].mxu0
  %721 = vmatprep.mubr.f32.mxu0 0.0
  %722 = vmatmul.mubr.f32.gmra.mrb[0].mxu0 %v580
  %v723 = vpop.f32.mrb[0].mxu0
  %v724 = vadd.f32 0.0, %v723
  %v725 = vpop.f32.mrb[0].mxu0
  %726 = vdwg.mxu0
  %v727 = vadd.f32 %v456, %v649
  %v728 = vadd.f32 %v459, %v654
  %v729 = vadd.f32 %v464, %v659
  %v730 = vadd.f32 %v467, %v664
  %v731 = vadd.f32 %v472, %v669
  %v732 = vadd.f32 %v475, %v674
  %v733 = vadd.f32 %v480, %v679
  %v734 = vadd.f32 %v483, %v684
  %v735 = vadd.f32 %v488, %v689
  %v736 = vadd.f32 %v491, %v694
  %v737 = vadd.f32 %v496, %v699
  %v738 = vadd.f32 %v499, %v704
  %v739 = vadd.f32 %v504, %v709
  %v740 = vadd.f32 %v507, %v714
  %v741 = vadd.f32 %v512, %v719
  %v742 = vadd.f32 %v515, %v724
  %v743 = vpack.c.bf16 %v728, %v727
  %v744 = vpack.c.bf16 %v730, %v729
  %v745 = vpack.c.bf16 %v732, %v731
  %v746 = vpack.c.bf16 %v734, %v733
  %v747 = vpack.c.bf16 %v736, %v735
  %v748 = vpack.c.bf16 %v738, %v737
  %v749 = vpack.c.bf16 %v740, %v739
  %v750 = vpack.c.bf16 %v742, %v741
  %v759 = vunpack.c.l.b16 %v743
  %v760 = vunpack.c.h.b16 %v743
  %v761 = vunpack.c.l.b16 %v744
  %v762 = vunpack.c.h.b16 %v744
  %v763 = vunpack.c.l.b16 %v745
  %v764 = vunpack.c.h.b16 %v745
  %v765 = vunpack.c.l.b16 %v746
  %v766 = vunpack.c.h.b16 %v746
  %v767 = vunpack.c.l.b16 %v747
  %v768 = vunpack.c.h.b16 %v747
  %v769 = vunpack.c.l.b16 %v748
  %v770 = vunpack.c.h.b16 %v748
  %v771 = vunpack.c.l.b16 %v749
  %v772 = vunpack.c.h.b16 %v749
  %v773 = vunpack.c.l.b16 %v750
  %v774 = vunpack.c.h.b16 %v750
  %v775 = vpack.c.b16 %v759, %v759
  %v776 = vpack.c.b16 %v760, %v760
  %v777 = vpack.c.b16 %v761, %v761
  %v778 = vpack.c.b16 %v762, %v762
  %v779 = vpack.c.b16 %v763, %v763
  %v780 = vpack.c.b16 %v764, %v764
  %v781 = vpack.c.b16 %v765, %v765
  %v782 = vpack.c.b16 %v766, %v766
  %v783 = vpack.c.b16 %v767, %v767
  %v784 = vpack.c.b16 %v768, %v768
  %v785 = vpack.c.b16 %v769, %v769
  %v786 = vpack.c.b16 %v770, %v770
  %v787 = vpack.c.b16 %v771, %v771
  %v788 = vpack.c.b16 %v772, %v772
  %v789 = vpack.c.b16 %v773, %v773
  %v790 = vpack.c.b16 %v774, %v774
  %vm807 = vcmask 257024
  %808 = vst.msk [vmem:[%s11] sm:$0xf] %vm807, %v775
  %809 = vst.msk [vmem:[%s11 + $0x4] sm:$0xf] %vm807, %v776
  %810 = vst.msk [vmem:[%s11 + $0x8] sm:$0xf] %vm807, %v777
  %811 = vst.msk [vmem:[%s11 + $0xc] sm:$0xf] %vm807, %v778
  %812 = vst.msk [vmem:[%s11 + $0x10] sm:$0xf] %vm807, %v779
  %813 = vst.msk [vmem:[%s11 + $0x14] sm:$0xf] %vm807, %v780
  %814 = vst.msk [vmem:[%s11 + $0x18] sm:$0xf] %vm807, %v781
  %815 = vst.msk [vmem:[%s11 + $0x1c] sm:$0xf] %vm807, %v782
  %816 = vst.msk [vmem:[%s11 + $0x20] sm:$0xf] %vm807, %v783
  %817 = vst.msk [vmem:[%s11 + $0x24] sm:$0xf] %vm807, %v784
  %818 = vst.msk [vmem:[%s11 + $0x28] sm:$0xf] %vm807, %v785
  %819 = vst.msk [vmem:[%s11 + $0x2c] sm:$0xf] %vm807, %v786
  %820 = vst.msk [vmem:[%s11 + $0x30] sm:$0xf] %vm807, %v787
  %821 = vst.msk [vmem:[%s11 + $0x34] sm:$0xf] %vm807, %v788
  %822 = vst.msk [vmem:[%s11 + $0x38] sm:$0xf] %vm807, %v789
  %823 = vst.msk [vmem:[%s11 + $0x3c] sm:$0xf] %vm807, %v790
  %v824 = vpack.c.bf16 %v314, %v313
  %v825 = vpack.c.bf16 %v316, %v315
  %v828 = vunpack.c.l.b16 %v824
  %v829 = vunpack.c.h.b16 %v824
  %v830 = vunpack.c.l.b16 %v825
  %v831 = vunpack.c.h.b16 %v825
  %v832 = vpack.c.b16 %v828, %v828
  %v833 = vpack.c.b16 %v829, %v829
  %v834 = vpack.c.b16 %v830, %v830
  %v835 = vpack.c.b16 %v831, %v831
  %840 = vst.msk [vmem:[%s12] sm:$0xf] %vm807, %v832
  %841 = vst.msk [vmem:[%s12 + $0x4] sm:$0xf] %vm807, %v833
  %842 = vst.msk [vmem:[%s12 + $0x8] sm:$0xf] %vm807, %v834
  %843 = vst.msk [vmem:[%s12 + $0xc] sm:$0xf] %vm807, %v835
  %v844 = vpack.c.bf16 %v113, %v113
  %845 = vst.msk [vmem:[%s13] sm:$0xf] %vm807, %v844
  // Predicated region
  $region46: #{one_stage_forward.10} parent=0 // pred_check
    _
  $region47: #{one_stage_forward.10} parent=0 // pred_check_branch
    %847 = sbr.rel (0) target = $region49
  $region48: #{one_stage_forward.10} parent=0 // pred_region
    _
  $region49: #{one_stage_forward.10} parent=0 // pred_fallthru
    _
  // Predicated region
  $region50: #{one_stage_forward.10} parent=0 // pred_check
    _
  $region51: #{one_stage_forward.10} parent=0 // pred_check_branch
    %849 = sbr.rel (0) target = $region53
  $region52: #{one_stage_forward.10} parent=0 // pred_region
    _
  $region53: #{one_stage_forward.10} parent=0 // pred_fallthru
    _
  // Predicated region
  $region54: #{one_stage_forward.10} parent=0 // pred_check
    _
  $region55: #{one_stage_forward.10} parent=0 // pred_check_branch
    %851 = sbr.rel (0) target = $region57
  $region56: #{one_stage_forward.10} parent=0 // pred_region
    _
  $region57: #{one_stage_forward.10} parent=0 // pred_fallthru
    _
  // Predicated region
  $region58: #{one_stage_forward.10} parent=0 // pred_check
    _
  $region59: #{one_stage_forward.10} parent=0 // pred_check_branch
    %853 = sbr.rel (0) target = $region61
  $region60: #{one_stage_forward.10} parent=0 // pred_region
    _
  $region61: #{one_stage_forward.10} parent=0 // pred_fallthru
    _
  // Predicated region
  $region62: #{one_stage_forward.10} parent=0 // pred_check
    _
  $region63: #{one_stage_forward.10} parent=0 // pred_check_branch
    %855 = sbr.rel (0) target = $region65
  $region64: #{one_stage_forward.10} parent=0 // pred_region
    _
  $region65: #{one_stage_forward.10} parent=0 // pred_fallthru
    _
  // Predicated region
  $region66: #{one_stage_forward.10} parent=0 // pred_check
    _
  $region67: #{one_stage_forward.10} parent=0 // pred_check_branch
    %857 = sbr.rel (0) target = $region69
  $region68: #{one_stage_forward.10} parent=0 // pred_region
    _
  $region69: #{one_stage_forward.10} parent=0 // pred_fallthru
    _

// kernel: one_stage_forward.11
$region0: #{one_stage_forward.11}
  #allocation0 [shape = 'u32[]', space=smem, size = 0x4, offset = 0x4, fixed_abs, tag = 'smem constant byte address 0x4 - core index']
  #allocation1 [shape = 'u32[144,128]{1,0:T(1,128)}', space=vmem, size = 0x12000, scoped, tag = 'internal scratch']
  %s0 = inlined_call_operand.vmem [shape: bf16[168,288], index: 0, kind: input, shape index: {}]
  %s1 = inlined_call_operand.vmem [shape: bf16[288,32], index: 1, kind: input, shape index: {}]
  %s2 = inlined_call_operand.vmem [shape: f32[1,32], index: 2, kind: input, shape index: {}]
  %s3 = inlined_call_operand.vmem [shape: bf16[32,36], index: 3, kind: input, shape index: {}]
  %s4 = inlined_call_operand.vmem [shape: f32[1,36], index: 4, kind: input, shape index: {}]
  %s5 = inlined_call_operand.vmem [shape: f32[168,36], index: 5, kind: output, shape index: {}]
  %s6 = sld [smem:[#allocation0]]
  $region30: #{one_stage_forward.11} parent=0
    _
  %s8 = ssub.s32 1, %s6
  %s9 = scalar_select 0, %s8, %s6
  // Predicated region
  $region2: #{one_stage_forward.11} parent=0 // pred_check
    _
  $region3: #{one_stage_forward.11} parent=0 // pred_check_branch
    %11 = sbr.rel (0) target = $region5
  $region4: #{one_stage_forward.11} parent=0 // pred_region
    _
  $region5: #{one_stage_forward.11} parent=0 // pred_fallthru
    _
  // Predicated region
  $region6: #{one_stage_forward.11} parent=0 // pred_check
    _
  $region7: #{one_stage_forward.11} parent=0 // pred_check_branch
    %13 = sbr.rel (0) target = $region9
  $region8: #{one_stage_forward.11} parent=0 // pred_region
    _
  $region9: #{one_stage_forward.11} parent=0 // pred_fallthru
    _
  // Predicated region
  $region10: #{one_stage_forward.11} parent=0 // pred_check
    _
  $region11: #{one_stage_forward.11} parent=0 // pred_check_branch
    %15 = sbr.rel (0) target = $region13
  $region12: #{one_stage_forward.11} parent=0 // pred_region
    _
  $region13: #{one_stage_forward.11} parent=0 // pred_fallthru
    _
  // Predicated region
  $region14: #{one_stage_forward.11} parent=0 // pred_check
    _
  $region15: #{one_stage_forward.11} parent=0 // pred_check_branch
    %17 = sbr.rel (0) target = $region17
  $region16: #{one_stage_forward.11} parent=0 // pred_region
    _
  $region17: #{one_stage_forward.11} parent=0 // pred_fallthru
    _
  // Predicated region
  $region18: #{one_stage_forward.11} parent=0 // pred_check
    _
  $region19: #{one_stage_forward.11} parent=0 // pred_check_branch
    %19 = sbr.rel (0) target = $region21
  $region20: #{one_stage_forward.11} parent=0 // pred_region
    _
  $region21: #{one_stage_forward.11} parent=0 // pred_fallthru
    _
  %v21 = vld [vmem:[%s0] sm:$0xff]
  %v22 = vld [vmem:[%s0 + $0x8] sm:$0xf]
  %v23 = vld [vmem:[%s0 + $0xc] sm:$0xff]
  %v24 = vld [vmem:[%s0 + $0x14] sm:$0xf]
  %v25 = vld [vmem:[%s0 + $0x18] sm:$0xff]
  %v26 = vld [vmem:[%s0 + $0x20] sm:$0xf]
  %v27 = vld [vmem:[%s0 + $0x24] sm:$0xff]
  %v28 = vld [vmem:[%s0 + $0x2c] sm:$0xf]
  %v29 = vld [vmem:[%s0 + $0x30] sm:$0xff]
  %v30 = vld [vmem:[%s0 + $0x38] sm:$0xf]
  %v31 = vld [vmem:[%s0 + $0x3c] sm:$0xff]
  %v32 = vld [vmem:[%s0 + $0x44] sm:$0xf]
  %v33 = vld [vmem:[%s0 + $0x48] sm:$0xff]
  %v34 = vld [vmem:[%s0 + $0x50] sm:$0xf]
  %v35 = vld [vmem:[%s0 + $0x54] sm:$0xff]
  %v36 = vld [vmem:[%s0 + $0x5c] sm:$0xf]
  %v37 = vld [vmem:[%s0 + $0x60] sm:$0xff]
  %v38 = vld [vmem:[%s0 + $0x68] sm:$0xf]
  %v39 = vld [vmem:[%s0 + $0x6c] sm:$0xff]
  %v40 = vld [vmem:[%s0 + $0x74] sm:$0xf]
  %v41 = vld [vmem:[%s0 + $0x78] sm:$0xff]
  %v42 = vld [vmem:[%s0 + $0x80] sm:$0xf]
  %v43 = vld [vmem:[%s0 + $0x84] sm:$0xff]
  %v44 = vld [vmem:[%s0 + $0x8c] sm:$0xf]
  %v45 = vld [vmem:[%s0 + $0x90] sm:$0xff]
  %v46 = vld [vmem:[%s0 + $0x98] sm:$0xf]
  %v47 = vld [vmem:[%s0 + $0x9c] sm:$0xff]
  %v48 = vld [vmem:[%s0 + $0xa4] sm:$0xf]
  %v49 = vld [vmem:[%s0 + $0xa8] sm:$0xff]
  %v50 = vld [vmem:[%s0 + $0xb0] sm:$0xf]
  %v51 = vld [vmem:[%s0 + $0xb4] sm:$0xff]
  %v52 = vld [vmem:[%s0 + $0xbc] sm:$0xf]
  %v53 = vld [vmem:[%s0 + $0xc0] sm:$0xff]
  %v54 = vld [vmem:[%s0 + $0xc8] sm:$0xf]
  %v55 = vld [vmem:[%s0 + $0xcc] sm:$0xff]
  %v56 = vld [vmem:[%s0 + $0xd4] sm:$0xf]
  %v57 = vld [vmem:[%s0 + $0xd8] sm:$0xff]
  %v58 = vld [vmem:[%s0 + $0xe0] sm:$0xf]
  %v59 = vld [vmem:[%s0 + $0xe4] sm:$0xff]
  %v60 = vld [vmem:[%s0 + $0xec] sm:$0xf]
  %v61 = vld [vmem:[%s0 + $0xf0] sm:$0xff]
  %v62 = vld [vmem:[%s0 + $0xf8] sm:$0xf]
  %v63 = vld [vmem:[%s1] sm:$0xf]
  %v64 = vld [vmem:[%s1 + $0x4] sm:$0xf]
  %v65 = vld [vmem:[%s1 + $0x8] sm:$0xf]
  %v66 = vld [vmem:[%s1 + $0xc] sm:$0xf]
  %v67 = vld [vmem:[%s1 + $0x10] sm:$0xf]
  %v68 = vld [vmem:[%s1 + $0x14] sm:$0xf]
  %v69 = vld [vmem:[%s1 + $0x18] sm:$0xf]
  %v70 = vld [vmem:[%s1 + $0x1c] sm:$0xf]
  %v71 = vld [vmem:[%s1 + $0x20] sm:$0xf]
  %v72 = vld [vmem:[%s1 + $0x24] sm:$0xf]
  %v73 = vld [vmem:[%s1 + $0x28] sm:$0xf]
  %v74 = vld [vmem:[%s1 + $0x2c] sm:$0xf]
  %v75 = vld [vmem:[%s1 + $0x30] sm:$0xf]
  %v76 = vld [vmem:[%s1 + $0x34] sm:$0xf]
  %v77 = vld [vmem:[%s1 + $0x38] sm:$0xf]
  %v78 = vld [vmem:[%s1 + $0x3c] sm:$0xf]
  %v79 = vld [vmem:[%s1 + $0x40] sm:$0xf]
  %v80 = vld [vmem:[%s1 + $0x44] sm:$0xf]
  %v81 = vld [vmem:[%s1 + $0x48] sm:$0xf]
  %v82 = vld [vmem:[%s1 + $0x4c] sm:$0xf]
  %v83 = vld [vmem:[%s1 + $0x50] sm:$0xf]
  %v84 = vld [vmem:[%s1 + $0x54] sm:$0xf]
  %v85 = vld [vmem:[%s1 + $0x58] sm:$0xf]
  %v86 = vld [vmem:[%s1 + $0x5c] sm:$0xf]
  %v87 = vld [vmem:[%s1 + $0x60] sm:$0xf]
  %v88 = vld [vmem:[%s1 + $0x64] sm:$0xf]
  %v89 = vld [vmem:[%s1 + $0x68] sm:$0xf]
  %v90 = vld [vmem:[%s1 + $0x6c] sm:$0xf]
  %v91 = vld [vmem:[%s1 + $0x70] sm:$0xf]
  %v92 = vld [vmem:[%s1 + $0x74] sm:$0xf]
  %v93 = vld [vmem:[%s1 + $0x78] sm:$0xf]
  %v94 = vld [vmem:[%s1 + $0x7c] sm:$0xf]
  %v95 = vld [vmem:[%s1 + $0x80] sm:$0xf]
  %v96 = vld [vmem:[%s1 + $0x84] sm:$0xf]
  %v97 = vld [vmem:[%s1 + $0x88] sm:$0xf]
  %v98 = vld [vmem:[%s1 + $0x8c] sm:$0xf]
  %v99 = vld [vmem:[%s2] sm:$0x1]
  %v101 = vlaneseq
  %v102 = vshrl.u32 %v101, 7
  %v103 = vsub.s32 0, %v102
  %v104 = vrot.slane %v99, %v103
  %v148 = vunpack.c.l.b16 %v21
  %v149 = vunpack.c.h.b16 %v21
  %v150 = vunpack.c.l.b16 %v22
  %v151 = vunpack.c.l.b16 %v23
  %v152 = vunpack.c.h.b16 %v23
  %v153 = vunpack.c.l.b16 %v24
  %v154 = vunpack.c.l.b16 %v25
  %v155 = vunpack.c.h.b16 %v25
  %v156 = vunpack.c.l.b16 %v26
  %v157 = vunpack.c.l.b16 %v27
  %v158 = vunpack.c.h.b16 %v27
  %v159 = vunpack.c.l.b16 %v28
  %v160 = vunpack.c.l.b16 %v29
  %v161 = vunpack.c.h.b16 %v29
  %v162 = vunpack.c.l.b16 %v30
  %v163 = vunpack.c.l.b16 %v31
  %v164 = vunpack.c.h.b16 %v31
  %v165 = vunpack.c.l.b16 %v32
  %v166 = vunpack.c.l.b16 %v33
  %v167 = vunpack.c.h.b16 %v33
  %v168 = vunpack.c.l.b16 %v34
  %v169 = vunpack.c.l.b16 %v35
  %v170 = vunpack.c.h.b16 %v35
  %v171 = vunpack.c.l.b16 %v36
  %v172 = vunpack.c.l.b16 %v37
  %v173 = vunpack.c.h.b16 %v37
  %v174 = vunpack.c.l.b16 %v38
  %v175 = vunpack.c.l.b16 %v39
  %v176 = vunpack.c.h.b16 %v39
  %v177 = vunpack.c.l.b16 %v40
  %v178 = vunpack.c.l.b16 %v41
  %v179 = vunpack.c.h.b16 %v41
  %v180 = vunpack.c.l.b16 %v42
  %v181 = vunpack.c.l.b16 %v43
  %v182 = vunpack.c.h.b16 %v43
  %v183 = vunpack.c.l.b16 %v44
  %v184 = vunpack.c.l.b16 %v45
  %v185 = vunpack.c.h.b16 %v45
  %v186 = vunpack.c.l.b16 %v46
  %v187 = vunpack.c.l.b16 %v47
  %v188 = vunpack.c.h.b16 %v47
  %v189 = vunpack.c.l.b16 %v48
  %v190 = vunpack.c.l.b16 %v49
  %v191 = vunpack.c.h.b16 %v49
  %v192 = vunpack.c.l.b16 %v50
  %v193 = vunpack.c.l.b16 %v51
  %v194 = vunpack.c.h.b16 %v51
  %v195 = vunpack.c.l.b16 %v52
  %v196 = vunpack.c.l.b16 %v53
  %v197 = vunpack.c.h.b16 %v53
  %v198 = vunpack.c.l.b16 %v54
  %v199 = vunpack.c.l.b16 %v55
  %v200 = vunpack.c.h.b16 %v55
  %v201 = vunpack.c.l.b16 %v56
  %v202 = vunpack.c.l.b16 %v57
  %v203 = vunpack.c.h.b16 %v57
  %v204 = vunpack.c.l.b16 %v58
  %v205 = vunpack.c.l.b16 %v59
  %v206 = vunpack.c.h.b16 %v59
  %v207 = vunpack.c.l.b16 %v60
  %v208 = vunpack.c.l.b16 %v61
  %v209 = vunpack.c.h.b16 %v61
  %v210 = vunpack.c.l.b16 %v62
  %v211 = vpack.c.b16 %v151, %v148
  %v212 = vpack.c.b16 %v152, %v149
  %v213 = vpack.c.b16 %v153, %v150
  %v214 = vpack.c.b16 %v157, %v154
  %v215 = vpack.c.b16 %v158, %v155
  %v216 = vpack.c.b16 %v159, %v156
  %v217 = vpack.c.b16 %v163, %v160
  %v218 = vpack.c.b16 %v164, %v161
  %v219 = vpack.c.b16 %v165, %v162
  %v220 = vpack.c.b16 %v169, %v166
  %v221 = vpack.c.b16 %v170, %v167
  %v222 = vpack.c.b16 %v171, %v168
  %v223 = vpack.c.b16 %v175, %v172
  %v224 = vpack.c.b16 %v176, %v173
  %v225 = vpack.c.b16 %v177, %v174
  %v226 = vpack.c.b16 %v181, %v178
  %v227 = vpack.c.b16 %v182, %v179
  %v228 = vpack.c.b16 %v183, %v180
  %v229 = vpack.c.b16 %v187, %v184
  %v230 = vpack.c.b16 %v188, %v185
  %v231 = vpack.c.b16 %v189, %v186
  %v232 = vpack.c.b16 %v193, %v190
  %v233 = vpack.c.b16 %v194, %v191
  %v234 = vpack.c.b16 %v195, %v192
  %v235 = vpack.c.b16 %v199, %v196
  %v236 = vpack.c.b16 %v200, %v197
  %v237 = vpack.c.b16 %v201, %v198
  %v238 = vpack.c.b16 %v205, %v202
  %v239 = vpack.c.b16 %v206, %v203
  %v240 = vpack.c.b16 %v207, %v204
  %v241 = vpack.c.b16 %v208, %v208
  %v242 = vpack.c.b16 %v209, %v209
  %v243 = vpack.c.b16 %v210, %v210
  %v302 = vunpack.c.l.b16 %v63
  %v303 = vunpack.c.l.b16 %v64
  %v304 = vunpack.c.l.b16 %v65
  %v305 = vunpack.c.l.b16 %v66
  %v306 = vunpack.c.l.b16 %v67
  %v307 = vunpack.c.l.b16 %v68
  %v308 = vunpack.c.l.b16 %v69
  %v309 = vunpack.c.l.b16 %v70
  %v310 = vunpack.c.l.b16 %v71
  %v311 = vunpack.c.l.b16 %v72
  %v312 = vunpack.c.l.b16 %v73
  %v313 = vunpack.c.l.b16 %v74
  %v314 = vunpack.c.l.b16 %v75
  %v315 = vunpack.c.l.b16 %v76
  %v316 = vunpack.c.l.b16 %v77
  %v317 = vunpack.c.l.b16 %v78
  %v318 = vunpack.c.l.b16 %v79
  %v319 = vunpack.c.l.b16 %v80
  %v320 = vunpack.c.l.b16 %v81
  %v321 = vunpack.c.l.b16 %v82
  %v322 = vunpack.c.l.b16 %v83
  %v323 = vunpack.c.l.b16 %v84
  %v324 = vunpack.c.l.b16 %v85
  %v325 = vunpack.c.l.b16 %v86
  %v326 = vunpack.c.l.b16 %v87
  %v327 = vunpack.c.l.b16 %v88
  %v328 = vunpack.c.l.b16 %v89
  %v329 = vunpack.c.l.b16 %v90
  %v330 = vunpack.c.l.b16 %v91
  %v331 = vunpack.c.l.b16 %v92
  %v332 = vunpack.c.l.b16 %v93
  %v333 = vunpack.c.l.b16 %v94
  %v334 = vunpack.c.l.b16 %v95
  %v335 = vunpack.c.l.b16 %v96
  %v336 = vunpack.c.l.b16 %v97
  %v337 = vunpack.c.l.b16 %v98
  %v338 = vpack.c.b16 %v303, %v302
  %v339 = vpack.c.b16 %v305, %v304
  %v340 = vpack.c.b16 %v307, %v306
  %v341 = vpack.c.b16 %v309, %v308
  %v342 = vpack.c.b16 %v311, %v310
  %v343 = vpack.c.b16 %v313, %v312
  %v344 = vpack.c.b16 %v315, %v314
  %v345 = vpack.c.b16 %v317, %v316
  %v346 = vpack.c.b16 %v319, %v318
  %v347 = vpack.c.b16 %v321, %v320
  %v348 = vpack.c.b16 %v323, %v322
  %v349 = vpack.c.b16 %v325, %v324
  %v350 = vpack.c.b16 %v327, %v326
  %v351 = vpack.c.b16 %v329, %v328
  %v352 = vpack.c.b16 %v331, %v330
  %v353 = vpack.c.b16 %v333, %v332
  %v354 = vpack.c.b16 %v335, %v334
  %v355 = vpack.c.b16 %v337, %v336
  %vm374 = vcmask 261120
  %v376 = vsel %vm374, %v213, 0
  %v379 = vsel %vm374, %v216, 0
  %v382 = vsel %vm374, %v219, 0
  %v385 = vsel %vm374, %v222, 0
  %v388 = vsel %vm374, %v225, 0
  %v391 = vsel %vm374, %v228, 0
  %v394 = vsel %vm374, %v231, 0
  %v397 = vsel %vm374, %v234, 0
  %v400 = vsel %vm374, %v237, 0
  %v403 = vsel %vm374, %v240, 0
  %v406 = vsel %vm374, %v243, 0
  %408 = vmatprep.subr.bf16.mxu0 0
  %409 = vmatpush1.bf16.msra.mxu0 %v338
  %410 = vmatprep.subr.bf16.mxu0 0
  %411 = vmatpush1.bf16.msra.mxu0 %v339
  %412 = vmatprep.subr.bf16.mxu0 0
  %413 = vmatpush1.bf16.msra.mxu0 %v340
  %414 = vmatprep.subr.bf16.mxu0 0
  %415 = vmatpush1.bf16.msra.mxu0 %v341
  %416 = vmatprep.subr.bf16.mxu0 0
  %417 = vmatpush1.bf16.msra.mxu0 %v342
  %418 = vmatprep.subr.bf16.mxu0 0
  %419 = vmatpush1.bf16.msra.mxu0 %v343
  %420 = vmatprep.subr.bf16.mxu0 0
  %421 = vmatpush1.bf16.msra.mxu0 %v344
  %422 = vmatprep.subr.bf16.mxu0 0
  %423 = vmatpush1.bf16.msra.mxu0 %v345
  %424 = vmatprep.subr.bf16.mxu0 0
  %425 = vmatpush1.bf16.msra.mxu0 %v346
  %426 = vmatprep.subr.bf16.mxu0 0
  %427 = vmatpush1.bf16.msra.mxu0 %v347
  %428 = vmatprep.subr.bf16.mxu0 0
  %429 = vmatpush1.bf16.msra.mxu0 %v348
  %430 = vmatprep.subr.bf16.mxu0 0
  %431 = vmatpush1.bf16.msra.mxu0 %v349
  %432 = vmatprep.subr.bf16.mxu0 0
  %433 = vmatpush1.bf16.msra.mxu0 %v350
  %434 = vmatprep.subr.bf16.mxu0 0
  %435 = vmatpush1.bf16.msra.mxu0 %v351
  %436 = vmatprep.subr.bf16.mxu0 0
  %437 = vmatpush1.bf16.msra.mxu0 %v352
  %438 = vmatprep.subr.bf16.mxu0 0
  %439 = vmatpush1.bf16.msra.mxu0 %v353
  %440 = vmatprep.mubr.bf16.mxu0 %v212
  %441 = vmatmul.mubr.bf16.gmra.mrb[0].mxu0 %v211
  %v442 = vpop.f32.mrb[0].mxu0
  %v443 = vadd.f32 %v104, %v442
  %v444 = vpop.f32.mrb[0].mxu0
  %v445 = vpop.f32.mrb[0].mxu0
  %v446 = vadd.f32 %v104, %v445
  %v447 = vpop.f32.mrb[0].mxu0
  %448 = vmatprep.mubr.bf16.mxu0 %v215
  %449 = vmatmul.mubr.bf16.gmra.mrb[0].mxu0 %v214
  %v450 = vpop.f32.mrb[0].mxu0
  %v451 = vadd.f32 %v104, %v450
  %v452 = vpop.f32.mrb[0].mxu0
  %v453 = vpop.f32.mrb[0].mxu0
  %v454 = vadd.f32 %v104, %v453
  %v455 = vpop.f32.mrb[0].mxu0
  %456 = vmatprep.mubr.bf16.mxu0 %v218
  %457 = vmatmul.mubr.bf16.gmra.mrb[0].mxu0 %v217
  %v458 = vpop.f32.mrb[0].mxu0
  %v459 = vadd.f32 %v104, %v458
  %v460 = vpop.f32.mrb[0].mxu0
  %v461 = vpop.f32.mrb[0].mxu0
  %v462 = vadd.f32 %v104, %v461
  %v463 = vpop.f32.mrb[0].mxu0
  %464 = vmatprep.mubr.bf16.mxu0 %v221
  %465 = vmatmul.mubr.bf16.gmra.mrb[0].mxu0 %v220
  %v466 = vpop.f32.mrb[0].mxu0
  %v467 = vadd.f32 %v104, %v466
  %v468 = vpop.f32.mrb[0].mxu0
  %v469 = vpop.f32.mrb[0].mxu0
  %v470 = vadd.f32 %v104, %v469
  %v471 = vpop.f32.mrb[0].mxu0
  %472 = vmatprep.mubr.bf16.mxu0 %v224
  %473 = vmatmul.mubr.bf16.gmra.mrb[0].mxu0 %v223
  %v474 = vpop.f32.mrb[0].mxu0
  %v475 = vadd.f32 %v104, %v474
  %v476 = vpop.f32.mrb[0].mxu0
  %v477 = vpop.f32.mrb[0].mxu0
  %v478 = vadd.f32 %v104, %v477
  %v479 = vpop.f32.mrb[0].mxu0
  %480 = vmatprep.mubr.bf16.mxu0 %v227
  %481 = vmatmul.mubr.bf16.gmra.mrb[0].mxu0 %v226
  %v482 = vpop.f32.mrb[0].mxu0
  %v483 = vadd.f32 %v104, %v482
  %v484 = vpop.f32.mrb[0].mxu0
  %v485 = vpop.f32.mrb[0].mxu0
  %v486 = vadd.f32 %v104, %v485
  %v487 = vpop.f32.mrb[0].mxu0
  %488 = vmatprep.mubr.bf16.mxu0 %v230
  %489 = vmatmul.mubr.bf16.gmra.mrb[0].mxu0 %v229
  %v490 = vpop.f32.mrb[0].mxu0
  %v491 = vadd.f32 %v104, %v490
  %v492 = vpop.f32.mrb[0].mxu0
  %v493 = vpop.f32.mrb[0].mxu0
  %v494 = vadd.f32 %v104, %v493
  %v495 = vpop.f32.mrb[0].mxu0
  %496 = vmatprep.mubr.bf16.mxu0 %v233
  %497 = vmatmul.mubr.bf16.gmra.mrb[0].mxu0 %v232
  %v498 = vpop.f32.mrb[0].mxu0
  %v499 = vadd.f32 %v104, %v498
  %v500 = vpop.f32.mrb[0].mxu0
  %v501 = vpop.f32.mrb[0].mxu0
  %v502 = vadd.f32 %v104, %v501
  %v503 = vpop.f32.mrb[0].mxu0
  %504 = vmatprep.mubr.bf16.mxu0 %v236
  %505 = vmatmul.mubr.bf16.gmra.mrb[0].mxu0 %v235
  %v506 = vpop.f32.mrb[0].mxu0
  %v507 = vadd.f32 %v104, %v506
  %v508 = vpop.f32.mrb[0].mxu0
  %v509 = vpop.f32.mrb[0].mxu0
  %v510 = vadd.f32 %v104, %v509
  %v511 = vpop.f32.mrb[0].mxu0
  %512 = vmatprep.mubr.bf16.mxu0 %v239
  %513 = vmatmul.mubr.bf16.gmra.mrb[0].mxu0 %v238
  %v514 = vpop.f32.mrb[0].mxu0
  %v515 = vadd.f32 %v104, %v514
  %v516 = vpop.f32.mrb[0].mxu0
  %v517 = vpop.f32.mrb[0].mxu0
  %v518 = vadd.f32 %v104, %v517
  %v519 = vpop.f32.mrb[0].mxu0
  %520 = vmatprep.mubr.bf16.mxu0 %v242
  %521 = vmatmul.mubr.bf16.gmra.mrb[0].mxu0 %v241
  %v522 = vpop.f32.mrb[0].mxu0
  %v523 = vadd.f32 %v104, %v522
  %v524 = vpop.f32.mrb[0].mxu0
  %v525 = vpop.f32.mrb[0].mxu0
  %v526 = vpop.f32.mrb[0].mxu0
  %527 = vdwg.mxu0
  %528 = vmatprep.subr.bf16.mxu0 0
  %529 = vmatpush1.bf16.msra.mxu0 %v354
  %530 = vmatprep.subr.bf16.mxu0 0
  %531 = vmatpush1.bf16.msra.mxu0 %v355
  %532 = vmatprep.subr.bf16.mxu0 0
  %533 = vmatpush1.bf16.msra.mxu0 0
  %534 = vmatprep.subr.bf16.mxu0 0
  %535 = vmatpush1.bf16.msra.mxu0 0
  %536 = vmatprep.subr.bf16.mxu0 0
  %537 = vmatpush1.bf16.msra.mxu0 0
  %538 = vmatprep.subr.bf16.mxu0 0
  %539 = vmatpush1.bf16.msra.mxu0 0
  %540 = vmatprep.subr.bf16.mxu0 0
  %541 = vmatpush1.bf16.msra.mxu0 0
  %542 = vmatprep.subr.bf16.mxu0 0
  %543 = vmatpush1.bf16.msra.mxu0 0
  %544 = vmatprep.subr.bf16.mxu0 0
  %545 = vmatpush1.bf16.msra.mxu0 0
  %546 = vmatprep.subr.bf16.mxu0 0
  %547 = vmatpush1.bf16.msra.mxu0 0
  %548 = vmatprep.subr.bf16.mxu0 0
  %549 = vmatpush1.bf16.msra.mxu0 0
  %550 = vmatprep.subr.bf16.mxu0 0
  %551 = vmatpush1.bf16.msra.mxu0 0
  %552 = vmatprep.subr.bf16.mxu0 0
  %553 = vmatpush1.bf16.msra.mxu0 0
  %554 = vmatprep.subr.bf16.mxu0 0
  %555 = vmatpush1.bf16.msra.mxu0 0
  %556 = vmatprep.subr.bf16.mxu0 0
  %557 = vmatpush1.bf16.msra.mxu0 0
  %558 = vmatprep.subr.bf16.mxu0 0
  %559 = vmatpush1.bf16.msra.mxu0 0
  %560 = vmatprep.mubr.bf16.mxu0 0
  %561 = vmatmul.mubr.bf16.gmra.mrb[0].mxu0 %v376
  %v562 = vpop.f32.mrb[0].mxu0
  %v563 = vadd.f32 %v443, %v562
  %v564 = vpop.f32.mrb[0].mxu0
  %v565 = vpop.f32.mrb[0].mxu0
  %v566 = vadd.f32 %v446, %v565
  %v567 = vpop.f32.mrb[0].mxu0
  %568 = vmatprep.mubr.bf16.mxu0 0
  %569 = vmatmul.mubr.bf16.gmra.mrb[0].mxu0 %v379
  %v570 = vpop.f32.mrb[0].mxu0
  %v571 = vadd.f32 %v451, %v570
  %v572 = vpop.f32.mrb[0].mxu0
  %v573 = vpop.f32.mrb[0].mxu0
  %v574 = vadd.f32 %v454, %v573
  %v575 = vpop.f32.mrb[0].mxu0
  %576 = vmatprep.mubr.bf16.mxu0 0
  %577 = vmatmul.mubr.bf16.gmra.mrb[0].mxu0 %v382
  %v578 = vpop.f32.mrb[0].mxu0
  %v579 = vadd.f32 %v459, %v578
  %v580 = vpop.f32.mrb[0].mxu0
  %v581 = vpop.f32.mrb[0].mxu0
  %v582 = vadd.f32 %v462, %v581
  %v583 = vpop.f32.mrb[0].mxu0
  %584 = vmatprep.mubr.bf16.mxu0 0
  %585 = vmatmul.mubr.bf16.gmra.mrb[0].mxu0 %v385
  %v586 = vpop.f32.mrb[0].mxu0
  %v587 = vadd.f32 %v467, %v586
  %v588 = vpop.f32.mrb[0].mxu0
  %v589 = vpop.f32.mrb[0].mxu0
  %v590 = vadd.f32 %v470, %v589
  %v591 = vpop.f32.mrb[0].mxu0
  %592 = vmatprep.mubr.bf16.mxu0 0
  %593 = vmatmul.mubr.bf16.gmra.mrb[0].mxu0 %v388
  %v594 = vpop.f32.mrb[0].mxu0
  %v595 = vadd.f32 %v475, %v594
  %v596 = vpop.f32.mrb[0].mxu0
  %v597 = vpop.f32.mrb[0].mxu0
  %v598 = vadd.f32 %v478, %v597
  %v599 = vpop.f32.mrb[0].mxu0
  %600 = vmatprep.mubr.bf16.mxu0 0
  %601 = vmatmul.mubr.bf16.gmra.mrb[0].mxu0 %v391
  %v602 = vpop.f32.mrb[0].mxu0
  %v603 = vadd.f32 %v483, %v602
  %v604 = vpop.f32.mrb[0].mxu0
  %v605 = vpop.f32.mrb[0].mxu0
  %v606 = vadd.f32 %v486, %v605
  %v607 = vpop.f32.mrb[0].mxu0
  %608 = vmatprep.mubr.bf16.mxu0 0
  %609 = vmatmul.mubr.bf16.gmra.mrb[0].mxu0 %v394
  %v610 = vpop.f32.mrb[0].mxu0
  %v611 = vadd.f32 %v491, %v610
  %v612 = vpop.f32.mrb[0].mxu0
  %v613 = vpop.f32.mrb[0].mxu0
  %v614 = vadd.f32 %v494, %v613
  %v615 = vpop.f32.mrb[0].mxu0
  %616 = vmatprep.mubr.bf16.mxu0 0
  %617 = vmatmul.mubr.bf16.gmra.mrb[0].mxu0 %v397
  %v618 = vpop.f32.mrb[0].mxu0
  %v619 = vadd.f32 %v499, %v618
  %v620 = vpop.f32.mrb[0].mxu0
  %v621 = vpop.f32.mrb[0].mxu0
  %v622 = vadd.f32 %v502, %v621
  %v623 = vpop.f32.mrb[0].mxu0
  %624 = vmatprep.mubr.bf16.mxu0 0
  %625 = vmatmul.mubr.bf16.gmra.mrb[0].mxu0 %v400
  %v626 = vpop.f32.mrb[0].mxu0
  %v627 = vadd.f32 %v507, %v626
  %v628 = vpop.f32.mrb[0].mxu0
  %v629 = vpop.f32.mrb[0].mxu0
  %v630 = vadd.f32 %v510, %v629
  %v631 = vpop.f32.mrb[0].mxu0
  %632 = vmatprep.mubr.bf16.mxu0 0
  %633 = vmatmul.mubr.bf16.gmra.mrb[0].mxu0 %v403
  %v634 = vpop.f32.mrb[0].mxu0
  %v635 = vadd.f32 %v515, %v634
  %v636 = vpop.f32.mrb[0].mxu0
  %v637 = vpop.f32.mrb[0].mxu0
  %v638 = vadd.f32 %v518, %v637
  %v639 = vpop.f32.mrb[0].mxu0
  %640 = vmatprep.mubr.bf16.mxu0 0
  %641 = vmatmul.mubr.bf16.gmra.mrb[0].mxu0 %v406
  %v642 = vpop.f32.mrb[0].mxu0
  %v643 = vadd.f32 %v523, %v642
  %v644 = vpop.f32.mrb[0].mxu0
  %v645 = vpop.f32.mrb[0].mxu0
  %v646 = vpop.f32.mrb[0].mxu0
  %647 = vdwg.mxu0
  %v648 = vmax.f32 %v563, 0.0
  %v649 = vmax.f32 %v566, 0.0
  %v650 = vmax.f32 %v571, 0.0
  %v651 = vmax.f32 %v574, 0.0
  %v652 = vmax.f32 %v579, 0.0
  %v653 = vmax.f32 %v582, 0.0
  %v654 = vmax.f32 %v587, 0.0
  %v655 = vmax.f32 %v590, 0.0
  %v656 = vmax.f32 %v595, 0.0
  %v657 = vmax.f32 %v598, 0.0
  %v658 = vmax.f32 %v603, 0.0
  %v659 = vmax.f32 %v606, 0.0
  %v660 = vmax.f32 %v611, 0.0
  %v661 = vmax.f32 %v614, 0.0
  %v662 = vmax.f32 %v619, 0.0
  %v663 = vmax.f32 %v622, 0.0
  %v664 = vmax.f32 %v627, 0.0
  %v665 = vmax.f32 %v630, 0.0
  %v666 = vmax.f32 %v635, 0.0
  %v667 = vmax.f32 %v638, 0.0
  %v668 = vmax.f32 %v643, 0.0
  %v669 = vpack.c.bf16 %v649, %v648
  %v670 = vpack.c.bf16 %v651, %v650
  %v671 = vpack.c.bf16 %v653, %v652
  %v672 = vpack.c.bf16 %v655, %v654
  %v673 = vpack.c.bf16 %v657, %v656
  %v674 = vpack.c.bf16 %v659, %v658
  %v675 = vpack.c.bf16 %v661, %v660
  %v676 = vpack.c.bf16 %v663, %v662
  %v677 = vpack.c.bf16 %v665, %v664
  %v678 = vpack.c.bf16 %v667, %v666
  %v679 = vpack.c.bf16 %v668, %v668
  %v680 = vld [vmem:[%s3] sm:$0xf]
  %v681 = vld [vmem:[%s3 + $0x4] sm:$0xf]
  %v682 = vld [vmem:[%s3 + $0x8] sm:$0xf]
  %v683 = vld [vmem:[%s3 + $0xc] sm:$0xf]
  %v684 = vld [vmem:[%s4] sm:$0x1]
  %v686 = vlaneseq
  %v687 = vshrl.u32 %v686, 7
  %v688 = vsub.s32 0, %v687
  %v689 = vrot.slane %v684, %v688
  %v695 = vunpack.c.l.b16 %v680
  %v696 = vunpack.c.l.b16 %v681
  %v697 = vunpack.c.l.b16 %v682
  %v698 = vunpack.c.l.b16 %v683
  %v699 = vpack.c.b16 %v696, %v695
  %v700 = vpack.c.b16 %v698, %v697
  %v704 = vsel %vm374, %v669, 0
  %v707 = vsel %vm374, %v670, 0
  %v710 = vsel %vm374, %v671, 0
  %v713 = vsel %vm374, %v672, 0
  %v716 = vsel %vm374, %v673, 0
  %v719 = vsel %vm374, %v674, 0
  %v722 = vsel %vm374, %v675, 0
  %v725 = vsel %vm374, %v676, 0
  %v728 = vsel %vm374, %v677, 0
  %v731 = vsel %vm374, %v678, 0
  %v734 = vsel %vm374, %v679, 0
  %736 = vmatprep.subr.bf16.mxu0 0
  %737 = vmatpush1.bf16.msra.mxu0 %v699
  %738 = vmatprep.subr.bf16.mxu0 0
  %739 = vmatpush1.bf16.msra.mxu0 %v700
  %740 = vmatprep.subr.bf16.mxu0 0
  %741 = vmatpush1.bf16.msra.mxu0 0
  %742 = vmatprep.subr.bf16.mxu0 0
  %743 = vmatpush1.bf16.msra.mxu0 0
  %744 = vmatprep.subr.bf16.mxu0 0
  %745 = vmatpush1.bf16.msra.mxu0 0
  %746 = vmatprep.subr.bf16.mxu0 0
  %747 = vmatpush1.bf16.msra.mxu0 0
  %748 = vmatprep.subr.bf16.mxu0 0
  %749 = vmatpush1.bf16.msra.mxu0 0
  %750 = vmatprep.subr.bf16.mxu0 0
  %751 = vmatpush1.bf16.msra.mxu0 0
  %752 = vmatprep.subr.bf16.mxu0 0
  %753 = vmatpush1.bf16.msra.mxu0 0
  %754 = vmatprep.subr.bf16.mxu0 0
  %755 = vmatpush1.bf16.msra.mxu0 0
  %756 = vmatprep.subr.bf16.mxu0 0
  %757 = vmatpush1.bf16.msra.mxu0 0
  %758 = vmatprep.subr.bf16.mxu0 0
  %759 = vmatpush1.bf16.msra.mxu0 0
  %760 = vmatprep.subr.bf16.mxu0 0
  %761 = vmatpush1.bf16.msra.mxu0 0
  %762 = vmatprep.subr.bf16.mxu0 0
  %763 = vmatpush1.bf16.msra.mxu0 0
  %764 = vmatprep.subr.bf16.mxu0 0
  %765 = vmatpush1.bf16.msra.mxu0 0
  %766 = vmatprep.subr.bf16.mxu0 0
  %767 = vmatpush1.bf16.msra.mxu0 0
  %768 = vmatprep.mubr.bf16.mxu0 0
  %769 = vmatmul.mubr.bf16.gmra.mrb[0].mxu0 %v704
  %v770 = vpop.f32.mrb[0].mxu0
  %v771 = vadd.f32 %v689, %v770
  %v772 = vpop.f32.mrb[0].mxu0
  %v773 = vpop.f32.mrb[0].mxu0
  %v774 = vadd.f32 %v689, %v773
  %v775 = vpop.f32.mrb[0].mxu0
  %776 = vmatprep.mubr.bf16.mxu0 0
  %777 = vmatmul.mubr.bf16.gmra.mrb[0].mxu0 %v707
  %v778 = vpop.f32.mrb[0].mxu0
  %v779 = vadd.f32 %v689, %v778
  %v780 = vpop.f32.mrb[0].mxu0
  %v781 = vpop.f32.mrb[0].mxu0
  %v782 = vadd.f32 %v689, %v781
  %v783 = vpop.f32.mrb[0].mxu0
  %784 = vmatprep.mubr.bf16.mxu0 0
  %785 = vmatmul.mubr.bf16.gmra.mrb[0].mxu0 %v710
  %v786 = vpop.f32.mrb[0].mxu0
  %v787 = vadd.f32 %v689, %v786
  %v788 = vpop.f32.mrb[0].mxu0
  %v789 = vpop.f32.mrb[0].mxu0
  %v790 = vadd.f32 %v689, %v789
  %v791 = vpop.f32.mrb[0].mxu0
  %792 = vmatprep.mubr.bf16.mxu0 0
  %793 = vmatmul.mubr.bf16.gmra.mrb[0].mxu0 %v713
  %v794 = vpop.f32.mrb[0].mxu0
  %v795 = vadd.f32 %v689, %v794
  %v796 = vpop.f32.mrb[0].mxu0
  %v797 = vpop.f32.mrb[0].mxu0
  %v798 = vadd.f32 %v689, %v797
  %v799 = vpop.f32.mrb[0].mxu0
  %800 = vmatprep.mubr.bf16.mxu0 0
  %801 = vmatmul.mubr.bf16.gmra.mrb[0].mxu0 %v716
  %v802 = vpop.f32.mrb[0].mxu0
  %v803 = vadd.f32 %v689, %v802
  %v804 = vpop.f32.mrb[0].mxu0
  %v805 = vpop.f32.mrb[0].mxu0
  %v806 = vadd.f32 %v689, %v805
  %v807 = vpop.f32.mrb[0].mxu0
  %808 = vmatprep.mubr.bf16.mxu0 0
  %809 = vmatmul.mubr.bf16.gmra.mrb[0].mxu0 %v719
  %v810 = vpop.f32.mrb[0].mxu0
  %v811 = vadd.f32 %v689, %v810
  %v812 = vpop.f32.mrb[0].mxu0
  %v813 = vpop.f32.mrb[0].mxu0
  %v814 = vadd.f32 %v689, %v813
  %v815 = vpop.f32.mrb[0].mxu0
  %816 = vmatprep.mubr.bf16.mxu0 0
  %817 = vmatmul.mubr.bf16.gmra.mrb[0].mxu0 %v722
  %v818 = vpop.f32.mrb[0].mxu0
  %v819 = vadd.f32 %v689, %v818
  %v820 = vpop.f32.mrb[0].mxu0
  %v821 = vpop.f32.mrb[0].mxu0
  %v822 = vadd.f32 %v689, %v821
  %v823 = vpop.f32.mrb[0].mxu0
  %824 = vmatprep.mubr.bf16.mxu0 0
  %825 = vmatmul.mubr.bf16.gmra.mrb[0].mxu0 %v725
  %v826 = vpop.f32.mrb[0].mxu0
  %v827 = vadd.f32 %v689, %v826
  %v828 = vpop.f32.mrb[0].mxu0
  %v829 = vpop.f32.mrb[0].mxu0
  %v830 = vadd.f32 %v689, %v829
  %v831 = vpop.f32.mrb[0].mxu0
  %832 = vmatprep.mubr.bf16.mxu0 0
  %833 = vmatmul.mubr.bf16.gmra.mrb[0].mxu0 %v728
  %v834 = vpop.f32.mrb[0].mxu0
  %v835 = vadd.f32 %v689, %v834
  %v836 = vpop.f32.mrb[0].mxu0
  %v837 = vpop.f32.mrb[0].mxu0
  %v838 = vadd.f32 %v689, %v837
  %v839 = vpop.f32.mrb[0].mxu0
  %840 = vmatprep.mubr.bf16.mxu0 0
  %841 = vmatmul.mubr.bf16.gmra.mrb[0].mxu0 %v731
  %v842 = vpop.f32.mrb[0].mxu0
  %v843 = vadd.f32 %v689, %v842
  %v844 = vpop.f32.mrb[0].mxu0
  %v845 = vpop.f32.mrb[0].mxu0
  %v846 = vadd.f32 %v689, %v845
  %v847 = vpop.f32.mrb[0].mxu0
  %848 = vmatprep.mubr.bf16.mxu0 0
  %849 = vmatmul.mubr.bf16.gmra.mrb[0].mxu0 %v734
  %v850 = vpop.f32.mrb[0].mxu0
  %v851 = vadd.f32 %v689, %v850
  %v852 = vpop.f32.mrb[0].mxu0
  %v853 = vpop.f32.mrb[0].mxu0
  %v854 = vpop.f32.mrb[0].mxu0
  %855 = vdwg.mxu0
  %vm856 = vcmask 293888
  %857 = vst.msk [vmem:[%s5] sm:$0xff] %vm856, %v771
  %858 = vst.msk [vmem:[%s5 + $0x8] sm:$0xff] %vm856, %v774
  %859 = vst.msk [vmem:[%s5 + $0x10] sm:$0xff] %vm856, %v779
  %860 = vst.msk [vmem:[%s5 + $0x18] sm:$0xff] %vm856, %v782
  %861 = vst.msk [vmem:[%s5 + $0x20] sm:$0xff] %vm856, %v787
  %862 = vst.msk [vmem:[%s5 + $0x28] sm:$0xff] %vm856, %v790
  %863 = vst.msk [vmem:[%s5 + $0x30] sm:$0xff] %vm856, %v795
  %864 = vst.msk [vmem:[%s5 + $0x38] sm:$0xff] %vm856, %v798
  %865 = vst.msk [vmem:[%s5 + $0x40] sm:$0xff] %vm856, %v803
  %866 = vst.msk [vmem:[%s5 + $0x48] sm:$0xff] %vm856, %v806
  %867 = vst.msk [vmem:[%s5 + $0x50] sm:$0xff] %vm856, %v811
  %868 = vst.msk [vmem:[%s5 + $0x58] sm:$0xff] %vm856, %v814
  %869 = vst.msk [vmem:[%s5 + $0x60] sm:$0xff] %vm856, %v819
  %870 = vst.msk [vmem:[%s5 + $0x68] sm:$0xff] %vm856, %v822
  %871 = vst.msk [vmem:[%s5 + $0x70] sm:$0xff] %vm856, %v827
  %872 = vst.msk [vmem:[%s5 + $0x78] sm:$0xff] %vm856, %v830
  %873 = vst.msk [vmem:[%s5 + $0x80] sm:$0xff] %vm856, %v835
  %874 = vst.msk [vmem:[%s5 + $0x88] sm:$0xff] %vm856, %v838
  %875 = vst.msk [vmem:[%s5 + $0x90] sm:$0xff] %vm856, %v843
  %876 = vst.msk [vmem:[%s5 + $0x98] sm:$0xff] %vm856, %v846
  %877 = vst.msk [vmem:[%s5 + $0xa0] sm:$0xff] %vm856, %v851
  // Predicated region
  $region22: #{one_stage_forward.11} parent=0 // pred_check
    _
  $region23: #{one_stage_forward.11} parent=0 // pred_check_branch
    %879 = sbr.rel (0) target = $region25
  $region24: #{one_stage_forward.11} parent=0 // pred_region
    _
  $region25: #{one_stage_forward.11} parent=0 // pred_fallthru
    _
  // Predicated region
  $region26: #{one_stage_forward.11} parent=0 // pred_check
    _
  $region27: #{one_stage_forward.11} parent=0 // pred_check_branch
    %881 = sbr.rel (0) target = $region29
  $region28: #{one_stage_forward.11} parent=0 // pred_region
    _
  $region29: #{one_stage_forward.11} parent=0 // pred_fallthru
    _

</llo_original>
